<compile_context>
chip_gen: v5e
topology: v5e:2x2
jax: 0.10.0
libtpu: 0.0.40
codegen_flags: <defaults>
</compile_context>

<pallas_src>
import functools

import jax
import jax.numpy as jnp
from jax import lax
from jax.experimental import pallas as pl
from jax.experimental.pallas import tpu as pltpu

EPS = 1e-5


def _sigmoid(y):
    # exp() runs on the EUP; the reciprocal is kept exact (approx=True would also
    # hit the EUP but at ~1e-4 relative error, too loose for the 1e-5 check).
    return pl.reciprocal(1.0 + jnp.exp(-y), approx=False)


def _conv_stats_kernel(x_ref, scale_ref, shift_ref, w_ref, raw_ref, stats_ref,
                       *, apply_input_bn):
    """One image per grid step.

    x_ref     : (1, H+2, W+2, Cin)  spatially padded input (NHWC)
    scale/shift: (1, Cin)           folded BN params for the *input* activation
    w_ref     : (9*Cin, Cout)       3x3 taps flattened into the contraction
    raw_ref   : (1, H, W, Cout)     pre-BN conv output
    stats_ref : (1, 2, Cout)        per-image [sum, sum-of-squares] over (H, W)
    """
    _, HP, WP, Cin = x_ref.shape
    H, W = HP - 2, WP - 2
    Cout = raw_ref.shape[-1]

    xp = x_ref[0].astype(jnp.float32)                       # (H+2, W+2, Cin)

    if apply_input_bn:
        # Previous block's BN + Sigmoid, fused into this conv's input read.
        # PyTorch pads the *activation* with zeros, so the 1-pixel halo must stay
        # exactly zero -> mask the border back to 0 after activating.
        act = _sigmoid(xp * scale_ref[...] + shift_ref[...])
        row = lax.broadcasted_iota(jnp.int32, xp.shape, 0)
        col = lax.broadcasted_iota(jnp.int32, xp.shape, 1)
        interior = (row >= 1) & (row <= H) & (col >= 1) & (col <= W)
        xp = jnp.where(interior, act, 0.0)

    # im2col: fold all 9 taps into one fat contraction (M = H*W, K = 9*Cin)
    # instead of nine K=Cin matmuls + eight VPU adds.
    pieces = [xp[dy:dy + H, dx:dx + W, :] for dy in range(3) for dx in range(3)]
    patch = jnp.concatenate(pieces, axis=-1).reshape(H * W, 9 * Cin)
    acc = lax.dot_general(patch, w_ref[...],
                          dimension_numbers=(((1,), (0,)), ((), ())),
                          preferred_element_type=jnp.float32)   # (H*W, Cout)

    raw_ref[0] = acc.reshape(H, W, Cout)

    # Single-pass batch-norm statistics for this image (finalized in JAX).
    s = jnp.sum(acc, axis=0, keepdims=True)                  # (1, Cout)
    ss = jnp.sum(acc * acc, axis=0, keepdims=True)           # (1, Cout)
    stats_ref[0] = jnp.concatenate([s, ss], axis=0)          # (2, Cout)


def _bn_act_kernel(x_ref, scale_ref, shift_ref, o_ref):
    o_ref[0] = _sigmoid(x_ref[0] * scale_ref[...] + shift_ref[...]).astype(o_ref.dtype)


def _compiler_params():
    return pltpu.CompilerParams(
        dimension_semantics=("parallel",),          # megacore / 2-TC sharding on v7x
        vmem_limit_bytes=32 * 1024 * 1024,          # explicit scoped-VMEM budget
    )


def _conv3x3_with_stats(x_pad_nhwc, w_flat, in_scale=None, in_shift=None):
    """x_pad_nhwc: (N, H+2, W+2, Cin) -> raw (N, H, W, Cout), stats (N, 2, Cout)."""
    N, HP, WP, Cin = x_pad_nhwc.shape
    H, W = HP - 2, WP - 2
    Cout = w_flat.shape[1]

    apply_in = in_scale is not None
    if not apply_in:
        in_scale = jnp.ones((1, Cin), jnp.float32)
        in_shift = jnp.zeros((1, Cin), jnp.float32)
    else:
        in_scale = in_scale.reshape(1, Cin).astype(jnp.float32)
        in_shift = in_shift.reshape(1, Cin).astype(jnp.float32)

    kernel = functools.partial(_conv_stats_kernel, apply_input_bn=apply_in)
    return pl.pallas_call(
        kernel,
        grid=(N,),
        in_specs=[
            pl.BlockSpec((1, HP, WP, Cin), lambda i: (i, 0, 0, 0)),
            pl.BlockSpec((1, Cin), lambda i: (0, 0)),
            pl.BlockSpec((1, Cin), lambda i: (0, 0)),
            pl.BlockSpec((9 * Cin, Cout), lambda i: (0, 0)),
        ],
        out_specs=(
            pl.BlockSpec((1, H, W, Cout), lambda i: (i, 0, 0, 0)),
            pl.BlockSpec((1, 2, Cout), lambda i: (i, 0, 0)),
        ),
        out_shape=(
            jax.ShapeDtypeStruct((N, H, W, Cout), jnp.float32),
            jax.ShapeDtypeStruct((N, 2, Cout), jnp.float32),
        ),
        compiler_params=_compiler_params(),
    )(x_pad_nhwc, in_scale, in_shift, w_flat)


def _bn_sigmoid(x_nhwc, scale, shift):
    N, H, W, C = x_nhwc.shape
    return pl.pallas_call(
        _bn_act_kernel,
        grid=(N,),
        in_specs=[
            pl.BlockSpec((1, H, W, C), lambda i: (i, 0, 0, 0)),
            pl.BlockSpec((1, C), lambda i: (0, 0)),
            pl.BlockSpec((1, C), lambda i: (0, 0)),
        ],
        out_specs=pl.BlockSpec((1, H, W, C), lambda i: (i, 0, 0, 0)),
        out_shape=jax.ShapeDtypeStruct((N, H, W, C), jnp.float32),
        compiler_params=_compiler_params(),
    )(x_nhwc, scale.reshape(1, C).astype(jnp.float32),
      shift.reshape(1, C).astype(jnp.float32))


def _flatten_taps(w_oihw):
    # (O, I, 3, 3) -> (3, 3, I, O) -> (9*I, O); row index = (dy*3 + dx)*I + ci,
    # matching the in-kernel im2col concat order.
    cout, cin = w_oihw.shape[0], w_oihw.shape[1]
    return jnp.transpose(w_oihw, (2, 3, 1, 0)).reshape(9 * cin, cout).astype(jnp.float32)


def _finalize_bn(stats, gamma, beta, count):
    # Reduce per-image single-pass stats and fold BN into y = x*scale + shift.
    s = jnp.sum(stats[:, 0, :], axis=0)
    ss = jnp.sum(stats[:, 1, :], axis=0)
    mean = s / count
    var = jnp.maximum(ss / count - mean * mean, 0.0)   # biased batch variance
    scale = gamma * lax.rsqrt(var + EPS)
    shift = beta - mean * scale
    return scale, shift


@jax.jit
def double_conv(x_nchw, w1, g1, b1, w2, g2, b2):
    """PyTorch DoubleConv forward (train-mode BN).  x_nchw: (N, Cin, H, W) -> (N, Cout, H, W)."""
    # TODO(synk): BatchNorm2d running_mean/running_var buffer updates (a training-time
    # side effect) are not materialized; the forward output does not depend on them.
    N, _, H, W = x_nchw.shape
    count = N * H * W

    x = jnp.transpose(x_nchw, (0, 2, 3, 1)).astype(jnp.float32)      # NCHW -> NHWC
    x = jnp.pad(x, ((0, 0), (1, 1), (1, 1), (0, 0)))                 # conv1 halo

    raw1, st1 = _conv3x3_with_stats(x, _flatten_taps(w1))            # conv1 (+ stats)
    sc1, sh1 = _finalize_bn(st1, g1, b1, count)

    raw1p = jnp.pad(raw1, ((0, 0), (1, 1), (1, 1), (0, 0)))          # conv2 halo (small)
    raw2, st2 = _conv3x3_with_stats(raw1p, _flatten_taps(w2), sc1, sh1)  # BN1+sig fused + conv2
    sc2, sh2 = _finalize_bn(st2, g2, b2, count)

    out = _bn_sigmoid(raw2, sc2, sh2)                                # BN2 + sigmoid
    return jnp.transpose(out, (0, 3, 1, 2))                          # NHWC -> NCHW


def _reference(x_nchw, w1, g1, b1, w2, g2, b2):
    def block(x, w, g, b):
        y = lax.conv_general_dilated(
            x, w, window_strides=(1, 1), padding="SAME",
            dimension_numbers=("NCHW", "OIHW", "NCHW"))
        mean = jnp.mean(y, axis=(0, 2, 3), keepdims=True)
        var = jnp.mean((y - mean) ** 2, axis=(0, 2, 3), keepdims=True)
        y = (y - mean) * lax.rsqrt(var + EPS) * g.reshape(1, -1, 1, 1) \
            + b.reshape(1, -1, 1, 1)
        return jax.nn.sigmoid(y)
    return block(block(x_nchw, w1, g1, b1), w2, g2, b2)


if __name__ == "__main__":
    key = jax.random.PRNGKey(0)
    N, Cin, Cout, H, W = 2, 4, 8, 16, 16

    kx, k1, k2 = jax.random.split(key, 3)
    x = jax.random.normal(kx, (N, Cin, H, W), jnp.float32)

    # Conv2d(bias=False) weights, OIHW, kaiming-ish scale
    w1 = jax.random.normal(k1, (Cout, Cin, 3, 3), jnp.float32) * (1.0 / (Cin * 9)) ** 0.5
    w2 = jax.random.normal(k2, (Cout, Cout, 3, 3), jnp.float32) * (1.0 / (Cout * 9)) ** 0.5
    # BatchNorm2d default init: gamma=1, beta=0
    g1 = jnp.ones((Cout,), jnp.float32); b1 = jnp.zeros((Cout,), jnp.float32)
    g2 = jnp.ones((Cout,), jnp.float32); b2 = jnp.zeros((Cout,), jnp.float32)

    out = jax.block_until_ready(double_conv(x, w1, g1, b1, w2, g2, b2))
    ref = jax.block_until_ready(_reference(x, w1, g1, b1, w2, g2, b2))

    assert out.shape == (N, Cout, H, W), out.shape
    err = float(jnp.max(jnp.abs(out - ref)))
    assert jnp.allclose(out, ref, atol=2e-5, rtol=2e-5), err
    print("KERNEL_OK")
</pallas_src>

<mosaic_0001>
module attributes {stable_mosaic.version = 11 : i64} {
  func.func @_conv_stats_kernel(%arg0: i32, %arg1: memref<1x18x18x4xf32, #tpu.memory_space<vmem>>, %arg2: memref<1x4xf32, #tpu.memory_space<vmem>>, %arg3: memref<1x4xf32, #tpu.memory_space<vmem>>, %arg4: memref<36x8xf32, #tpu.memory_space<vmem>>, %arg5: memref<1x16x16x8xf32, #tpu.memory_space<vmem>>, %arg6: memref<1x2x8xf32, #tpu.memory_space<vmem>>) attributes {dimension_semantics = [#tpu.dimension_semantics<parallel>], iteration_bounds = array<i64: 2>, scalar_prefetch = 0 : i64, scratch_operands = 0 : i64, tpu.core_type = #tpu.core_type<tc>, window_params = [{transform_indices = @transform_0, window_bounds = array<i64: 1, 18, 18, 4>}, {pipeline_mode = #tpu.pipeline_mode<synchronous>, transform_indices = @transform_1, window_bounds = array<i64: 1, 4>}, {pipeline_mode = #tpu.pipeline_mode<synchronous>, transform_indices = @transform_2, window_bounds = array<i64: 1, 4>}, {pipeline_mode = #tpu.pipeline_mode<synchronous>, transform_indices = @transform_3, window_bounds = array<i64: 36, 8>}, {transform_indices = @transform_4, window_bounds = array<i64: 1, 16, 16, 8>}, {transform_indices = @transform_5, window_bounds = array<i64: 1, 2, 8>}]} {
    %c0 = arith.constant 0 : index
    %c0_0 = arith.constant 0 : index
    %c0_1 = arith.constant 0 : index
    %c0_2 = arith.constant 0 : index
    %0 = vector.load %arg1[%c0, %c0_0, %c0_1, %c0_2] : memref<1x18x18x4xf32, #tpu.memory_space<vmem>>, vector<1x18x18x4xf32>
    %1 = vector.shape_cast %0 : vector<1x18x18x4xf32> to vector<18x18x4xf32>
    %2 = vector.extract_strided_slice %1 {offsets = [0, 0, 0], sizes = [16, 16, 4], strides = [1, 1, 1]} : vector<18x18x4xf32> to vector<16x16x4xf32>
    %3 = vector.extract_strided_slice %1 {offsets = [0, 1, 0], sizes = [16, 16, 4], strides = [1, 1, 1]} : vector<18x18x4xf32> to vector<16x16x4xf32>
    %4 = vector.extract_strided_slice %1 {offsets = [0, 2, 0], sizes = [16, 16, 4], strides = [1, 1, 1]} : vector<18x18x4xf32> to vector<16x16x4xf32>
    %5 = vector.extract_strided_slice %1 {offsets = [1, 0, 0], sizes = [16, 16, 4], strides = [1, 1, 1]} : vector<18x18x4xf32> to vector<16x16x4xf32>
    %6 = vector.extract_strided_slice %1 {offsets = [1, 1, 0], sizes = [16, 16, 4], strides = [1, 1, 1]} : vector<18x18x4xf32> to vector<16x16x4xf32>
    %7 = vector.extract_strided_slice %1 {offsets = [1, 2, 0], sizes = [16, 16, 4], strides = [1, 1, 1]} : vector<18x18x4xf32> to vector<16x16x4xf32>
    %8 = vector.extract_strided_slice %1 {offsets = [2, 0, 0], sizes = [16, 16, 4], strides = [1, 1, 1]} : vector<18x18x4xf32> to vector<16x16x4xf32>
    %9 = vector.extract_strided_slice %1 {offsets = [2, 1, 0], sizes = [16, 16, 4], strides = [1, 1, 1]} : vector<18x18x4xf32> to vector<16x16x4xf32>
    %10 = vector.extract_strided_slice %1 {offsets = [2, 2, 0], sizes = [16, 16, 4], strides = [1, 1, 1]} : vector<18x18x4xf32> to vector<16x16x4xf32>
    %11 = tpu.concatenate %2, %3, %4, %5, %6, %7, %8, %9, %10 in 2 : vector<16x16x4xf32>, vector<16x16x4xf32>, vector<16x16x4xf32>, vector<16x16x4xf32>, vector<16x16x4xf32>, vector<16x16x4xf32>, vector<16x16x4xf32>, vector<16x16x4xf32>, vector<16x16x4xf32> -> vector<16x16x36xf32>
    %12 = vector.shape_cast %11 : vector<16x16x36xf32> to vector<256x36xf32>
    %c0_3 = arith.constant 0 : index
    %c0_4 = arith.constant 0 : index
    %13 = vector.load %arg4[%c0_3, %c0_4] : memref<36x8xf32, #tpu.memory_space<vmem>>, vector<36x8xf32>
    %cst = arith.constant dense<0.000000e+00> : vector<256x8xf32>
    %14 = tpu.matmul %12, %13, %cst {dimension_numbers = #tpu.dot_dimension_numbers<[1], [0], [0], [1], [0, 0, 1, 1], [], []>} : vector<256x36xf32>, vector<36x8xf32>, vector<256x8xf32> -> vector<256x8xf32>
    %15 = vector.shape_cast %14 : vector<256x8xf32> to vector<16x16x8xf32>
    %c0_5 = arith.constant 0 : index
    %c0_6 = arith.constant 0 : index
    %c0_7 = arith.constant 0 : index
    %c0_8 = arith.constant 0 : index
    %16 = vector.load %arg5[%c0_5, %c0_6, %c0_7, %c0_8] : memref<1x16x16x8xf32, #tpu.memory_space<vmem>>, vector<1x16x16x8xf32>
    %17 = vector.shape_cast %16 : vector<1x16x16x8xf32> to vector<16x16x8xf32>
    %18 = vector.shape_cast %15 : vector<16x16x8xf32> to vector<1x16x16x8xf32>
    tpu.vector_store %arg5[%c0_5, %c0_6, %c0_7, %c0_8], %18 {strides = array<i32>} : memref<1x16x16x8xf32, #tpu.memory_space<vmem>>, vector<1x16x16x8xf32>,
    %cst_9 = arith.constant dense<0.000000e+00> : vector<8xf32>
    %19 = vector.multi_reduction <add>, %14, %cst_9 [0] : vector<256x8xf32> to vector<8xf32>
    %20 = vector.shape_cast %19 : vector<8xf32> to vector<1x8xf32>
    %21 = arith.mulf %14, %14 : vector<256x8xf32>
    %cst_10 = arith.constant dense<0.000000e+00> : vector<8xf32>
    %22 = vector.multi_reduction <add>, %21, %cst_10 [0] : vector<256x8xf32> to vector<8xf32>
    %23 = vector.shape_cast %22 : vector<8xf32> to vector<1x8xf32>
    %24 = tpu.concatenate %20, %23 in 0 : vector<1x8xf32>, vector<1x8xf32> -> vector<2x8xf32>
    %c0_11 = arith.constant 0 : index
    %c0_12 = arith.constant 0 : index
    %c0_13 = arith.constant 0 : index
    %25 = vector.load %arg6[%c0_11, %c0_12, %c0_13] : memref<1x2x8xf32, #tpu.memory_space<vmem>>, vector<1x2x8xf32>
    %26 = vector.shape_cast %25 : vector<1x2x8xf32> to vector<2x8xf32>
    %27 = vector.shape_cast %24 : vector<2x8xf32> to vector<1x2x8xf32>
    tpu.vector_store %arg6[%c0_11, %c0_12, %c0_13], %27 {strides = array<i32>} : memref<1x2x8xf32, #tpu.memory_space<vmem>>, vector<1x2x8xf32>,
    return
  }
  func.func @transform_0(%arg0: i32) -> (i32, i32, i32, i32) {
    %c0_i32 = arith.constant 0 : i32
    %c0_i32_0 = arith.constant 0 : i32
    %c0_i32_1 = arith.constant 0 : i32
    %c0_i32_2 = arith.constant 0 : i32
    return %arg0, %c0_i32, %c0_i32_0, %c0_i32_1 : i32, i32, i32, i32
  }
  func.func @transform_1(%arg0: i32) -> (i32, i32) {
    %c0_i32 = arith.constant 0 : i32
    %c0_i32_0 = arith.constant 0 : i32
    %c0_i32_1 = arith.constant 0 : i32
    return %c0_i32, %c0_i32_0 : i32, i32
  }
  func.func @transform_2(%arg0: i32) -> (i32, i32) {
    %c0_i32 = arith.constant 0 : i32
    %c0_i32_0 = arith.constant 0 : i32
    %c0_i32_1 = arith.constant 0 : i32
    return %c0_i32, %c0_i32_0 : i32, i32
  }
  func.func @transform_3(%arg0: i32) -> (i32, i32) {
    %c0_i32 = arith.constant 0 : i32
    %c0_i32_0 = arith.constant 0 : i32
    %c0_i32_1 = arith.constant 0 : i32
    return %c0_i32, %c0_i32_0 : i32, i32
  }
  func.func @transform_4(%arg0: i32) -> (i32, i32, i32, i32) {
    %c0_i32 = arith.constant 0 : i32
    %c0_i32_0 = arith.constant 0 : i32
    %c0_i32_1 = arith.constant 0 : i32
    %c0_i32_2 = arith.constant 0 : i32
    return %arg0, %c0_i32, %c0_i32_0, %c0_i32_1 : i32, i32, i32, i32
  }
  func.func @transform_5(%arg0: i32) -> (i32, i32, i32) {
    %c0_i32 = arith.constant 0 : i32
    %c0_i32_0 = arith.constant 0 : i32
    %c0_i32_1 = arith.constant 0 : i32
    return %arg0, %c0_i32, %c0_i32_0 : i32, i32, i32
  }
}

module attributes {stable_mosaic.version = 11 : i64} {
  func.func @_bn_act_kernel(%arg0: i32, %arg1: memref<1x16x16x8xf32, #tpu.memory_space<vmem>>, %arg2: memref<1x8xf32, #tpu.memory_space<vmem>>, %arg3: memref<1x8xf32, #tpu.memory_space<vmem>>, %arg4: memref<1x16x16x8xf32, #tpu.memory_space<vmem>>) attributes {dimension_semantics = [#tpu.dimension_semantics<parallel>], iteration_bounds = array<i64: 2>, scalar_prefetch = 0 : i64, scratch_operands = 0 : i64, tpu.core_type = #tpu.core_type<tc>, window_params = [{transform_indices = @transform_0, window_bounds = array<i64: 1, 16, 16, 8>}, {pipeline_mode = #tpu.pipeline_mode<synchronous>, transform_indices = @transform_1, window_bounds = array<i64: 1, 8>}, {pipeline_mode = #tpu.pipeline_mode<synchronous>, transform_indices = @transform_2, window_bounds = array<i64: 1, 8>}, {transform_indices = @transform_3, window_bounds = array<i64: 1, 16, 16, 8>}]} {
    %c0 = arith.constant 0 : index
    %c0_0 = arith.constant 0 : index
    %c0_1 = arith.constant 0 : index
    %c0_2 = arith.constant 0 : index
    %0 = vector.load %arg1[%c0, %c0_0, %c0_1, %c0_2] : memref<1x16x16x8xf32, #tpu.memory_space<vmem>>, vector<1x16x16x8xf32>
    %1 = vector.shape_cast %0 : vector<1x16x16x8xf32> to vector<16x16x8xf32>
    %c0_3 = arith.constant 0 : index
    %c0_4 = arith.constant 0 : index
    %2 = vector.load %arg2[%c0_3, %c0_4] : memref<1x8xf32, #tpu.memory_space<vmem>>, vector<1x8xf32>
    %3 = vector.shape_cast %2 : vector<1x8xf32> to vector<1x1x8xf32>
    %4 = vector.broadcast %3 : vector<1x1x8xf32> to vector<16x16x8xf32>
    %5 = arith.mulf %1, %4 : vector<16x16x8xf32>
    %c0_5 = arith.constant 0 : index
    %c0_6 = arith.constant 0 : index
    %6 = vector.load %arg3[%c0_5, %c0_6] : memref<1x8xf32, #tpu.memory_space<vmem>>, vector<1x8xf32>
    %7 = vector.shape_cast %6 : vector<1x8xf32> to vector<1x1x8xf32>
    %8 = vector.broadcast %7 : vector<1x1x8xf32> to vector<16x16x8xf32>
    %9 = arith.addf %5, %8 : vector<16x16x8xf32>
    %cst = arith.constant 0.000000e+00 : f32
    %10 = vector.broadcast %cst : f32 to vector<16x16x8xf32>
    %11 = arith.subf %10, %9 : vector<16x16x8xf32>
    %12 = math.exp %11 : vector<16x16x8xf32>
    %cst_7 = arith.constant 1.000000e+00 : f32
    %13 = vector.broadcast %cst_7 : f32 to vector<16x16x8xf32>
    %14 = arith.addf %13, %12 : vector<16x16x8xf32>
    %15 = tpu.reciprocal %14 : vector<16x16x8xf32> -> vector<16x16x8xf32>
    %c0_8 = arith.constant 0 : index
    %c0_9 = arith.constant 0 : index
    %c0_10 = arith.constant 0 : index
    %c0_11 = arith.constant 0 : index
    %16 = vector.load %arg4[%c0_8, %c0_9, %c0_10, %c0_11] : memref<1x16x16x8xf32, #tpu.memory_space<vmem>>, vector<1x16x16x8xf32>
    %17 = vector.shape_cast %16 : vector<1x16x16x8xf32> to vector<16x16x8xf32>
    %18 = vector.shape_cast %15 : vector<16x16x8xf32> to vector<1x16x16x8xf32>
    tpu.vector_store %arg4[%c0_8, %c0_9, %c0_10, %c0_11], %18 {strides = array<i32>} : memref<1x16x16x8xf32, #tpu.memory_space<vmem>>, vector<1x16x16x8xf32>,
    return
  }
  func.func @transform_0(%arg0: i32) -> (i32, i32, i32, i32) {
    %c0_i32 = arith.constant 0 : i32
    %c0_i32_0 = arith.constant 0 : i32
    %c0_i32_1 = arith.constant 0 : i32
    %c0_i32_2 = arith.constant 0 : i32
    return %arg0, %c0_i32, %c0_i32_0, %c0_i32_1 : i32, i32, i32, i32
  }
  func.func @transform_1(%arg0: i32) -> (i32, i32) {
    %c0_i32 = arith.constant 0 : i32
    %c0_i32_0 = arith.constant 0 : i32
    %c0_i32_1 = arith.constant 0 : i32
    return %c0_i32, %c0_i32_0 : i32, i32
  }
  func.func @transform_2(%arg0: i32) -> (i32, i32) {
    %c0_i32 = arith.constant 0 : i32
    %c0_i32_0 = arith.constant 0 : i32
    %c0_i32_1 = arith.constant 0 : i32
    return %c0_i32, %c0_i32_0 : i32, i32
  }
  func.func @transform_3(%arg0: i32) -> (i32, i32, i32, i32) {
    %c0_i32 = arith.constant 0 : i32
    %c0_i32_0 = arith.constant 0 : i32
    %c0_i32_1 = arith.constant 0 : i32
    %c0_i32_2 = arith.constant 0 : i32
    return %arg0, %c0_i32, %c0_i32_0, %c0_i32_1 : i32, i32, i32, i32
  }
}

module attributes {stable_mosaic.version = 11 : i64} {
  func.func @_conv_stats_kernel(%arg0: i32, %arg1: memref<1x18x18x8xf32, #tpu.memory_space<vmem>>, %arg2: memref<1x8xf32, #tpu.memory_space<vmem>>, %arg3: memref<1x8xf32, #tpu.memory_space<vmem>>, %arg4: memref<72x8xf32, #tpu.memory_space<vmem>>, %arg5: memref<1x16x16x8xf32, #tpu.memory_space<vmem>>, %arg6: memref<1x2x8xf32, #tpu.memory_space<vmem>>) attributes {dimension_semantics = [#tpu.dimension_semantics<parallel>], iteration_bounds = array<i64: 2>, scalar_prefetch = 0 : i64, scratch_operands = 0 : i64, tpu.core_type = #tpu.core_type<tc>, window_params = [{transform_indices = @transform_0, window_bounds = array<i64: 1, 18, 18, 8>}, {pipeline_mode = #tpu.pipeline_mode<synchronous>, transform_indices = @transform_1, window_bounds = array<i64: 1, 8>}, {pipeline_mode = #tpu.pipeline_mode<synchronous>, transform_indices = @transform_2, window_bounds = array<i64: 1, 8>}, {pipeline_mode = #tpu.pipeline_mode<synchronous>, transform_indices = @transform_3, window_bounds = array<i64: 72, 8>}, {transform_indices = @transform_4, window_bounds = array<i64: 1, 16, 16, 8>}, {transform_indices = @transform_5, window_bounds = array<i64: 1, 2, 8>}]} {
    %c0 = arith.constant 0 : index
    %c0_0 = arith.constant 0 : index
    %c0_1 = arith.constant 0 : index
    %c0_2 = arith.constant 0 : index
    %0 = vector.load %arg1[%c0, %c0_0, %c0_1, %c0_2] : memref<1x18x18x8xf32, #tpu.memory_space<vmem>>, vector<1x18x18x8xf32>
    %1 = vector.shape_cast %0 : vector<1x18x18x8xf32> to vector<18x18x8xf32>
    %c0_3 = arith.constant 0 : index
    %c0_4 = arith.constant 0 : index
    %2 = vector.load %arg2[%c0_3, %c0_4] : memref<1x8xf32, #tpu.memory_space<vmem>>, vector<1x8xf32>
    %3 = vector.shape_cast %2 : vector<1x8xf32> to vector<1x1x8xf32>
    %4 = vector.broadcast %3 : vector<1x1x8xf32> to vector<18x18x8xf32>
    %5 = arith.mulf %1, %4 : vector<18x18x8xf32>
    %c0_5 = arith.constant 0 : index
    %c0_6 = arith.constant 0 : index
    %6 = vector.load %arg3[%c0_5, %c0_6] : memref<1x8xf32, #tpu.memory_space<vmem>>, vector<1x8xf32>
    %7 = vector.shape_cast %6 : vector<1x8xf32> to vector<1x1x8xf32>
    %8 = vector.broadcast %7 : vector<1x1x8xf32> to vector<18x18x8xf32>
    %9 = arith.addf %5, %8 : vector<18x18x8xf32>
    %cst = arith.constant 0.000000e+00 : f32
    %10 = vector.broadcast %cst : f32 to vector<18x18x8xf32>
    %11 = arith.subf %10, %9 : vector<18x18x8xf32>
    %12 = math.exp %11 : vector<18x18x8xf32>
    %cst_7 = arith.constant 1.000000e+00 : f32
    %13 = vector.broadcast %cst_7 : f32 to vector<18x18x8xf32>
    %14 = arith.addf %13, %12 : vector<18x18x8xf32>
    %15 = tpu.reciprocal %14 : vector<18x18x8xf32> -> vector<18x18x8xf32>
    %16 = tpu.iota {dimensions = array<i32: 0>} : vector<18x18x8xi32>
    %17 = tpu.iota {dimensions = array<i32: 1>} : vector<18x18x8xi32>
    %c1_i32 = arith.constant 1 : i32
    %18 = vector.broadcast %c1_i32 : i32 to vector<18x18x8xi32>
    %19 = arith.cmpi sge, %16, %18 : vector<18x18x8xi32>
    %c16_i32 = arith.constant 16 : i32
    %20 = vector.broadcast %c16_i32 : i32 to vector<18x18x8xi32>
    %21 = arith.cmpi sle, %16, %20 : vector<18x18x8xi32>
    %22 = arith.andi %19, %21 : vector<18x18x8xi1>
    %c1_i32_8 = arith.constant 1 : i32
    %23 = vector.broadcast %c1_i32_8 : i32 to vector<18x18x8xi32>
    %24 = arith.cmpi sge, %17, %23 : vector<18x18x8xi32>
    %25 = arith.andi %22, %24 : vector<18x18x8xi1>
    %c16_i32_9 = arith.constant 16 : i32
    %26 = vector.broadcast %c16_i32_9 : i32 to vector<18x18x8xi32>
    %27 = arith.cmpi sle, %17, %26 : vector<18x18x8xi32>
    %28 = arith.andi %25, %27 : vector<18x18x8xi1>
    %cst_10 = arith.constant 0.000000e+00 : f32
    %29 = vector.broadcast %cst_10 : f32 to vector<18x18x8xf32>
    %30 = arith.select %28, %15, %29 : vector<18x18x8xi1>, vector<18x18x8xf32>
    %31 = vector.extract_strided_slice %30 {offsets = [0, 0, 0], sizes = [16, 16, 8], strides = [1, 1, 1]} : vector<18x18x8xf32> to vector<16x16x8xf32>
    %32 = vector.extract_strided_slice %30 {offsets = [0, 1, 0], sizes = [16, 16, 8], strides = [1, 1, 1]} : vector<18x18x8xf32> to vector<16x16x8xf32>
    %33 = vector.extract_strided_slice %30 {offsets = [0, 2, 0], sizes = [16, 16, 8], strides = [1, 1, 1]} : vector<18x18x8xf32> to vector<16x16x8xf32>
    %34 = vector.extract_strided_slice %30 {offsets = [1, 0, 0], sizes = [16, 16, 8], strides = [1, 1, 1]} : vector<18x18x8xf32> to vector<16x16x8xf32>
    %35 = vector.extract_strided_slice %30 {offsets = [1, 1, 0], sizes = [16, 16, 8], strides = [1, 1, 1]} : vector<18x18x8xf32> to vector<16x16x8xf32>
    %36 = vector.extract_strided_slice %30 {offsets = [1, 2, 0], sizes = [16, 16, 8], strides = [1, 1, 1]} : vector<18x18x8xf32> to vector<16x16x8xf32>
    %37 = vector.extract_strided_slice %30 {offsets = [2, 0, 0], sizes = [16, 16, 8], strides = [1, 1, 1]} : vector<18x18x8xf32> to vector<16x16x8xf32>
    %38 = vector.extract_strided_slice %30 {offsets = [2, 1, 0], sizes = [16, 16, 8], strides = [1, 1, 1]} : vector<18x18x8xf32> to vector<16x16x8xf32>
    %39 = vector.extract_strided_slice %30 {offsets = [2, 2, 0], sizes = [16, 16, 8], strides = [1, 1, 1]} : vector<18x18x8xf32> to vector<16x16x8xf32>
    %40 = tpu.concatenate %31, %32, %33, %34, %35, %36, %37, %38, %39 in 2 : vector<16x16x8xf32>, vector<16x16x8xf32>, vector<16x16x8xf32>, vector<16x16x8xf32>, vector<16x16x8xf32>, vector<16x16x8xf32>, vector<16x16x8xf32>, vector<16x16x8xf32>, vector<16x16x8xf32> -> vector<16x16x72xf32>
    %41 = vector.shape_cast %40 : vector<16x16x72xf32> to vector<256x72xf32>
    %c0_11 = arith.constant 0 : index
    %c0_12 = arith.constant 0 : index
    %42 = vector.load %arg4[%c0_11, %c0_12] : memref<72x8xf32, #tpu.memory_space<vmem>>, vector<72x8xf32>
    %cst_13 = arith.constant dense<0.000000e+00> : vector<256x8xf32>
    %43 = tpu.matmul %41, %42, %cst_13 {dimension_numbers = #tpu.dot_dimension_numbers<[1], [0], [0], [1], [0, 0, 1, 1], [], []>} : vector<256x72xf32>, vector<72x8xf32>, vector<256x8xf32> -> vector<256x8xf32>
    %44 = vector.shape_cast %43 : vector<256x8xf32> to vector<16x16x8xf32>
    %c0_14 = arith.constant 0 : index
    %c0_15 = arith.constant 0 : index
    %c0_16 = arith.constant 0 : index
    %c0_17 = arith.constant 0 : index
    %45 = vector.load %arg5[%c0_14, %c0_15, %c0_16, %c0_17] : memref<1x16x16x8xf32, #tpu.memory_space<vmem>>, vector<1x16x16x8xf32>
    %46 = vector.shape_cast %45 : vector<1x16x16x8xf32> to vector<16x16x8xf32>
    %47 = vector.shape_cast %44 : vector<16x16x8xf32> to vector<1x16x16x8xf32>
    tpu.vector_store %arg5[%c0_14, %c0_15, %c0_16, %c0_17], %47 {strides = array<i32>} : memref<1x16x16x8xf32, #tpu.memory_space<vmem>>, vector<1x16x16x8xf32>,
    %cst_18 = arith.constant dense<0.000000e+00> : vector<8xf32>
    %48 = vector.multi_reduction <add>, %43, %cst_18 [0] : vector<256x8xf32> to vector<8xf32>
    %49 = vector.shape_cast %48 : vector<8xf32> to vector<1x8xf32>
    %50 = arith.mulf %43, %43 : vector<256x8xf32>
    %cst_19 = arith.constant dense<0.000000e+00> : vector<8xf32>
    %51 = vector.multi_reduction <add>, %50, %cst_19 [0] : vector<256x8xf32> to vector<8xf32>
    %52 = vector.shape_cast %51 : vector<8xf32> to vector<1x8xf32>
    %53 = tpu.concatenate %49, %52 in 0 : vector<1x8xf32>, vector<1x8xf32> -> vector<2x8xf32>
    %c0_20 = arith.constant 0 : index
    %c0_21 = arith.constant 0 : index
    %c0_22 = arith.constant 0 : index
    %54 = vector.load %arg6[%c0_20, %c0_21, %c0_22] : memref<1x2x8xf32, #tpu.memory_space<vmem>>, vector<1x2x8xf32>
    %55 = vector.shape_cast %54 : vector<1x2x8xf32> to vector<2x8xf32>
    %56 = vector.shape_cast %53 : vector<2x8xf32> to vector<1x2x8xf32>
    tpu.vector_store %arg6[%c0_20, %c0_21, %c0_22], %56 {strides = array<i32>} : memref<1x2x8xf32, #tpu.memory_space<vmem>>, vector<1x2x8xf32>,
    return
  }
  func.func @transform_0(%arg0: i32) -> (i32, i32, i32, i32) {
    %c0_i32 = arith.constant 0 : i32
    %c0_i32_0 = arith.constant 0 : i32
    %c0_i32_1 = arith.constant 0 : i32
    %c0_i32_2 = arith.constant 0 : i32
    return %arg0, %c0_i32, %c0_i32_0, %c0_i32_1 : i32, i32, i32, i32
  }
  func.func @transform_1(%arg0: i32) -> (i32, i32) {
    %c0_i32 = arith.constant 0 : i32
    %c0_i32_0 = arith.constant 0 : i32
    %c0_i32_1 = arith.constant 0 : i32
    return %c0_i32, %c0_i32_0 : i32, i32
  }
  func.func @transform_2(%arg0: i32) -> (i32, i32) {
    %c0_i32 = arith.constant 0 : i32
    %c0_i32_0 = arith.constant 0 : i32
    %c0_i32_1 = arith.constant 0 : i32
    return %c0_i32, %c0_i32_0 : i32, i32
  }
  func.func @transform_3(%arg0: i32) -> (i32, i32) {
    %c0_i32 = arith.constant 0 : i32
    %c0_i32_0 = arith.constant 0 : i32
    %c0_i32_1 = arith.constant 0 : i32
    return %c0_i32, %c0_i32_0 : i32, i32
  }
  func.func @transform_4(%arg0: i32) -> (i32, i32, i32, i32) {
    %c0_i32 = arith.constant 0 : i32
    %c0_i32_0 = arith.constant 0 : i32
    %c0_i32_1 = arith.constant 0 : i32
    %c0_i32_2 = arith.constant 0 : i32
    return %arg0, %c0_i32, %c0_i32_0, %c0_i32_1 : i32, i32, i32, i32
  }
  func.func @transform_5(%arg0: i32) -> (i32, i32, i32) {
    %c0_i32 = arith.constant 0 : i32
    %c0_i32_0 = arith.constant 0 : i32
    %c0_i32_1 = arith.constant 0 : i32
    return %arg0, %c0_i32, %c0_i32_0 : i32, i32, i32
  }
}

</mosaic_0001>

<llo_original>
// kernel: double_conv.5
$region0: #{double_conv.5}
  #allocation0 [shape = 'u32[]', space=smem, size = 0x4, offset = 0x4, fixed_abs, tag = 'smem constant byte address 0x4 - core index']
  #allocation1 [shape = 'u32[72,128]{1,0:T(1,128)}', space=vmem, size = 0x9000, scoped, tag = 'internal scratch']
  %s0 = inlined_call_operand.vmem [shape: f32[2,16,16,8], index: 0, kind: input, shape index: {}]
  %s1 = inlined_call_operand.vmem [shape: f32[1,8], index: 1, kind: input, shape index: {}]
  %s2 = inlined_call_operand.vmem [shape: f32[1,8], index: 2, kind: input, shape index: {}]
  %s3 = inlined_call_operand.vmem [shape: f32[2,16,16,8], index: 3, kind: output, shape index: {}]
  %s4 = sld [smem:[#allocation0]]
  $region45: #{double_conv.5} parent=0
    _
  %s6 = ssub.s32 1, %s4
  %s7 = scalar_select 0, %s6, %s4
  loop: start=0, step=1, limit=4
  $region2: #{double_conv.5} parent=0 // loop_pre_header
    _
  $region3: #{double_conv.5} parent=0 // loop_header
    %s9 = sphi 0, %s13
    %p10 = scmp.ge.s32.totalorder %s9, 4
    %s19 = sphi 0, %s21
    %s22 = sphi 0, %s19
    %s23 = sphi 0, %s22
    %s39 = sphi 0, %s23
    %s43 = sphi 0, %s43
    %s45 = sphi 0, %s43
    %s46 = sphi 0, %s45
    %s60 = sphi 0, %s46
    %s64 = sphi 0, %s64
    %s66 = sphi 0, %s64
    %s67 = sphi 0, %s66
    %s81 = sphi 0, %s67
    %s87 = sphi 0, %s89
    %s90 = sphi 0, %s87
    %s91 = sphi 0, %s90
    %s107 = sphi 0, %s91
  $region4: #{double_conv.5} parent=0 // loop_header_branch
    %12 = sbr.rel (%p10) target = $region8
  $region5: #{double_conv.5} parent=0 // loop_body
    %s14 = ssub.s32 %s9, 1
    %s15 = ssub.s32 %s9, 2
    %s16 = sadd.s32 %s9, 1
    %s17 = ssub.s32 %s9, %s16
    %p18 = scmp.eq.s32.totalorder %s17, 0
    %s20 = sadd.s32 %s19, 1
    %s21 = scalar_select %p18, %s19, %s20
    %p24 = pneg %p18
    %p25 = scmp.eq.s32.totalorder %s9, 1
    %p26 = por %p24, %p25
    %p27 = scmp.ne.s32.totalorder %s19, %s22
    %p28 = scmp.eq.s32.totalorder %s9, 0
    %p29 = por %p27, %p28
    %p30 = scmp.ne.s32.totalorder %s19, %s22
    %p31 = scmp.eq.s32.totalorder %s14, 1
    %p32 = por %p30, %p31
    %p33 = scmp.ne.s32.totalorder %s22, %s23
    %p34 = scmp.eq.s32.totalorder %s14, 0
    %p35 = por %p33, %p34
    %p36 = scmp.ne.s32.totalorder %s22, %s23
    %p37 = scmp.eq.s32.totalorder %s15, 1
    %p38 = por %p36, %p37
    %p40 = scmp.ne.s32.totalorder %s23, %s39
    %p41 = scmp.eq.s32.totalorder %s15, 0
    %p42 = por %p40, %p41
    %s44 = sadd.s32 %s43, 1
    %p47 = scmp.eq.s32.totalorder %s9, 1
    %p48 = scmp.ne.s32.totalorder %s43, %s45
    %p49 = scmp.eq.s32.totalorder %s9, 0
    %p50 = por %p48, %p49
    %p51 = scmp.ne.s32.totalorder %s43, %s45
    %p52 = scmp.eq.s32.totalorder %s14, 1
    %p53 = por %p51, %p52
    %p54 = scmp.ne.s32.totalorder %s45, %s46
    %p55 = scmp.eq.s32.totalorder %s14, 0
    %p56 = por %p54, %p55
    %p57 = scmp.ne.s32.totalorder %s45, %s46
    %p58 = scmp.eq.s32.totalorder %s15, 1
    %p59 = por %p57, %p58
    %p61 = scmp.ne.s32.totalorder %s46, %s60
    %p62 = scmp.eq.s32.totalorder %s15, 0
    %p63 = por %p61, %p62
    %s65 = sadd.s32 %s64, 1
    %p68 = scmp.eq.s32.totalorder %s9, 1
    %p69 = scmp.ne.s32.totalorder %s64, %s66
    %p70 = scmp.eq.s32.totalorder %s9, 0
    %p71 = por %p69, %p70
    %p72 = scmp.ne.s32.totalorder %s64, %s66
    %p73 = scmp.eq.s32.totalorder %s14, 1
    %p74 = por %p72, %p73
    %p75 = scmp.ne.s32.totalorder %s66, %s67
    %p76 = scmp.eq.s32.totalorder %s14, 0
    %p77 = por %p75, %p76
    %p78 = scmp.ne.s32.totalorder %s66, %s67
    %p79 = scmp.eq.s32.totalorder %s15, 1
    %p80 = por %p78, %p79
    %p82 = scmp.ne.s32.totalorder %s67, %s81
    %p83 = scmp.eq.s32.totalorder %s15, 0
    %p84 = por %p82, %p83
    %s85 = ssub.s32 %s9, %s16
    %p86 = scmp.eq.s32.totalorder %s85, 0
    %s88 = sadd.s32 %s87, 1
    %s89 = scalar_select %p86, %s87, %s88
    %p92 = pneg %p86
    %p93 = scmp.eq.s32.totalorder %s9, 1
    %p94 = por %p92, %p93
    %p95 = scmp.ne.s32.totalorder %s87, %s90
    %p96 = scmp.eq.s32.totalorder %s9, 0
    %p97 = por %p95, %p96
    %p98 = scmp.ne.s32.totalorder %s87, %s90
    %p99 = scmp.eq.s32.totalorder %s14, 1
    %p100 = por %p98, %p99
    %p101 = scmp.ne.s32.totalorder %s90, %s91
    %p102 = scmp.eq.s32.totalorder %s14, 0
    %p103 = por %p101, %p102
    %p104 = scmp.ne.s32.totalorder %s90, %s91
    %p105 = scmp.eq.s32.totalorder %s15, 1
    %p106 = por %p104, %p105
    %p108 = scmp.ne.s32.totalorder %s91, %s107
    %p109 = scmp.eq.s32.totalorder %s15, 0
    %p110 = por %p108, %p109
    %p111 = scmp.le.s32.totalorder 1, %s9
    %p112 = scmp.lt.s32.totalorder %s9, 3
    %p113 = pnand %p111, %p112
    %p114 = pneg %p113
    // Predicated region
    $region9: #{double_conv.5} parent=5 // pred_check
      _
    $region10: #{double_conv.5} parent=5 // pred_check_branch
      %116 = sbr.rel (%p113) target = $region12
    $region11: #{double_conv.5} parent=5 // pred_region
      %s117 = ssub.s32 %s9, 1
      // Predicated region
      $region13: #{double_conv.5} parent=11 // pred_check
        %p118 = pneg %p56
      $region14: #{double_conv.5} parent=11 // pred_check_branch
        %120 = sbr.rel (%p118) target = $region16
      $region15: #{double_conv.5} parent=11 // pred_region
        _
      $region16: #{double_conv.5} parent=11 // pred_fallthru
        _
      // Predicated region
      $region17: #{double_conv.5} parent=11 // pred_check
        %p121 = pneg %p77
      $region18: #{double_conv.5} parent=11 // pred_check_branch
        %123 = sbr.rel (%p121) target = $region20
      $region19: #{double_conv.5} parent=11 // pred_region
        _
      $region20: #{double_conv.5} parent=11 // pred_fallthru
        _
    $region12: #{double_conv.5} parent=5 // pred_fallthru
      _
    %p124 = scmp.lt.s32.totalorder %s9, 2
    // Predicated region
    $region21: #{double_conv.5} parent=5 // pred_check
      %p125 = pneg %p124
    $region22: #{double_conv.5} parent=5 // pred_check_branch
      %127 = sbr.rel (%p125) target = $region24
    $region23: #{double_conv.5} parent=5 // pred_region
      // Predicated region
      $region25: #{double_conv.5} parent=23 // pred_check
        %p128 = pneg %p29
      $region26: #{double_conv.5} parent=23 // pred_check_branch
        %130 = sbr.rel (%p128) target = $region28
      $region27: #{double_conv.5} parent=23 // pred_region
        %p131 = scmp.lt.s32.totalorder %s9, 1
        %s132 = scalar_select %p131, %s9, 1
        %s133 = smul.addr %s132, 32
        %s134 = smul.addr %s133, 8
        %s135 = scalar_lea.vmem %s0, %s134
      $region28: #{double_conv.5} parent=23 // pred_fallthru
        _
    $region24: #{double_conv.5} parent=5 // pred_fallthru
      _
    %p136 = scmp.le.s32.totalorder 1, %s9
    %p137 = scmp.lt.s32.totalorder %s9, 3
    %p138 = pnand %p136, %p137
    %p139 = pneg %p138
    // Predicated region
    $region29: #{double_conv.5} parent=5 // pred_check
      _
    $region30: #{double_conv.5} parent=5 // pred_check_branch
      %141 = sbr.rel (%p138) target = $region32
    $region31: #{double_conv.5} parent=5 // pred_region
      %s142 = ssub.s32 %s9, 1
      %p143 = scmp.lt.s32.totalorder %s14, 1
      %s144 = scalar_select %p143, %s14, 1
      %s145 = smul.addr %s144, 32
      %s146 = smul.addr %s145, 8
      %s147 = scalar_lea.vmem %s0, %s146
      %p148 = pneg %p35
      %p149 = pneg %p32
      %p150 = pneg %p56
      %p151 = pneg %p53
      %p152 = pneg %p77
      %p153 = pneg %p74
      %p154 = pneg %p103
      %p155 = pneg %p100
      %p156 = scmp.lt.s32.totalorder %s14, 1
      %s157 = scalar_select %p156, %s14, 1
      %s158 = smul.addr %s157, 32
      %s159 = smul.addr %s158, 8
      %s160 = scalar_lea.vmem %s3, %s159
      %p161 = scmp.lt.s32.totalorder %s14, 1
      %s162 = scalar_select %p161, %s14, 1
      %s163 = smul.addr %s162, 32
      %s164 = smul.addr %s163, 8
      %s165 = scalar_lea.vmem %s0, %s164
      %p166 = scmp.lt.s32.totalorder %s14, 1
      %s167 = scalar_select %p166, %s14, 1
      %s168 = smul.addr %s167, 32
      %s169 = smul.addr %s168, 8
      %s170 = scalar_lea.vmem %s3, %s169
      %v171 = vld [vmem:[%s165] sm:$0xff]
      %v172 = vld [vmem:[%s165 + $0x8] sm:$0xff]
      %v173 = vld [vmem:[%s165 + $0x10] sm:$0xff]
      %v174 = vld [vmem:[%s165 + $0x18] sm:$0xff]
      %v175 = vld [vmem:[%s165 + $0x20] sm:$0xff]
      %v176 = vld [vmem:[%s165 + $0x28] sm:$0xff]
      %v177 = vld [vmem:[%s165 + $0x30] sm:$0xff]
      %v178 = vld [vmem:[%s165 + $0x38] sm:$0xff]
      %v179 = vld [vmem:[%s165 + $0x40] sm:$0xff]
      %v180 = vld [vmem:[%s165 + $0x48] sm:$0xff]
      %v181 = vld [vmem:[%s165 + $0x50] sm:$0xff]
      %v182 = vld [vmem:[%s165 + $0x58] sm:$0xff]
      %v183 = vld [vmem:[%s165 + $0x60] sm:$0xff]
      %v184 = vld [vmem:[%s165 + $0x68] sm:$0xff]
      %v185 = vld [vmem:[%s165 + $0x70] sm:$0xff]
      %v186 = vld [vmem:[%s165 + $0x78] sm:$0xff]
      %v187 = vld [vmem:[%s165 + $0x80] sm:$0xff]
      %v188 = vld [vmem:[%s165 + $0x88] sm:$0xff]
      %v189 = vld [vmem:[%s165 + $0x90] sm:$0xff]
      %v190 = vld [vmem:[%s165 + $0x98] sm:$0xff]
      %v191 = vld [vmem:[%s165 + $0xa0] sm:$0xff]
      %v192 = vld [vmem:[%s165 + $0xa8] sm:$0xff]
      %v193 = vld [vmem:[%s165 + $0xb0] sm:$0xff]
      %v194 = vld [vmem:[%s165 + $0xb8] sm:$0xff]
      %v195 = vld [vmem:[%s165 + $0xc0] sm:$0xff]
      %v196 = vld [vmem:[%s165 + $0xc8] sm:$0xff]
      %v197 = vld [vmem:[%s165 + $0xd0] sm:$0xff]
      %v198 = vld [vmem:[%s165 + $0xd8] sm:$0xff]
      %v199 = vld [vmem:[%s165 + $0xe0] sm:$0xff]
      %v200 = vld [vmem:[%s165 + $0xe8] sm:$0xff]
      %v201 = vld [vmem:[%s165 + $0xf0] sm:$0xff]
      %v202 = vld [vmem:[%s165 + $0xf8] sm:$0xff]
      %v203 = vld [vmem:[%s1] sm:$0x1]
      %v205 = vperm.slane %v203, 0
      %v207 = vmul.f32 %v171, %v205
      %v208 = vmul.f32 %v172, %v205
      %v209 = vmul.f32 %v173, %v205
      %v210 = vmul.f32 %v174, %v205
      %v211 = vmul.f32 %v175, %v205
      %v212 = vmul.f32 %v176, %v205
      %v213 = vmul.f32 %v177, %v205
      %v214 = vmul.f32 %v178, %v205
      %v215 = vmul.f32 %v179, %v205
      %v216 = vmul.f32 %v180, %v205
      %v217 = vmul.f32 %v181, %v205
      %v218 = vmul.f32 %v182, %v205
      %v219 = vmul.f32 %v183, %v205
      %v220 = vmul.f32 %v184, %v205
      %v221 = vmul.f32 %v185, %v205
      %v222 = vmul.f32 %v186, %v205
      %v223 = vmul.f32 %v187, %v205
      %v224 = vmul.f32 %v188, %v205
      %v225 = vmul.f32 %v189, %v205
      %v226 = vmul.f32 %v190, %v205
      %v227 = vmul.f32 %v191, %v205
      %v228 = vmul.f32 %v192, %v205
      %v229 = vmul.f32 %v193, %v205
      %v230 = vmul.f32 %v194, %v205
      %v231 = vmul.f32 %v195, %v205
      %v232 = vmul.f32 %v196, %v205
      %v233 = vmul.f32 %v197, %v205
      %v234 = vmul.f32 %v198, %v205
      %v235 = vmul.f32 %v199, %v205
      %v236 = vmul.f32 %v200, %v205
      %v237 = vmul.f32 %v201, %v205
      %v238 = vmul.f32 %v202, %v205
      %v239 = vld [vmem:[%s2] sm:$0x1]
      %v241 = vperm.slane %v239, 0
      %v243 = vadd.f32 %v207, %v241
      %v244 = vadd.f32 %v208, %v241
      %v245 = vadd.f32 %v209, %v241
      %v246 = vadd.f32 %v210, %v241
      %v247 = vadd.f32 %v211, %v241
      %v248 = vadd.f32 %v212, %v241
      %v249 = vadd.f32 %v213, %v241
      %v250 = vadd.f32 %v214, %v241
      %v251 = vadd.f32 %v215, %v241
      %v252 = vadd.f32 %v216, %v241
      %v253 = vadd.f32 %v217, %v241
      %v254 = vadd.f32 %v218, %v241
      %v255 = vadd.f32 %v219, %v241
      %v256 = vadd.f32 %v220, %v241
      %v257 = vadd.f32 %v221, %v241
      %v258 = vadd.f32 %v222, %v241
      %v259 = vadd.f32 %v223, %v241
      %v260 = vadd.f32 %v224, %v241
      %v261 = vadd.f32 %v225, %v241
      %v262 = vadd.f32 %v226, %v241
      %v263 = vadd.f32 %v227, %v241
      %v264 = vadd.f32 %v228, %v241
      %v265 = vadd.f32 %v229, %v241
      %v266 = vadd.f32 %v230, %v241
      %v267 = vadd.f32 %v231, %v241
      %v268 = vadd.f32 %v232, %v241
      %v269 = vadd.f32 %v233, %v241
      %v270 = vadd.f32 %v234, %v241
      %v271 = vadd.f32 %v235, %v241
      %v272 = vadd.f32 %v236, %v241
      %v273 = vadd.f32 %v237, %v241
      %v274 = vadd.f32 %v238, %v241
      %v275 = vsub.f32 0.0, %v243
      %v276 = vsub.f32 0.0, %v244
      %v277 = vsub.f32 0.0, %v245
      %v278 = vsub.f32 0.0, %v246
      %v279 = vsub.f32 0.0, %v247
      %v280 = vsub.f32 0.0, %v248
      %v281 = vsub.f32 0.0, %v249
      %v282 = vsub.f32 0.0, %v250
      %v283 = vsub.f32 0.0, %v251
      %v284 = vsub.f32 0.0, %v252
      %v285 = vsub.f32 0.0, %v253
      %v286 = vsub.f32 0.0, %v254
      %v287 = vsub.f32 0.0, %v255
      %v288 = vsub.f32 0.0, %v256
      %v289 = vsub.f32 0.0, %v257
      %v290 = vsub.f32 0.0, %v258
      %v291 = vsub.f32 0.0, %v259
      %v292 = vsub.f32 0.0, %v260
      %v293 = vsub.f32 0.0, %v261
      %v294 = vsub.f32 0.0, %v262
      %v295 = vsub.f32 0.0, %v263
      %v296 = vsub.f32 0.0, %v264
      %v297 = vsub.f32 0.0, %v265
      %v298 = vsub.f32 0.0, %v266
      %v299 = vsub.f32 0.0, %v267
      %v300 = vsub.f32 0.0, %v268
      %v301 = vsub.f32 0.0, %v269
      %v302 = vsub.f32 0.0, %v270
      %v303 = vsub.f32 0.0, %v271
      %v304 = vsub.f32 0.0, %v272
      %v305 = vsub.f32 0.0, %v273
      %v306 = vsub.f32 0.0, %v274
      %v307 = vmul.f32 %v275, 1.442695
      %v308 = vpow.pop %v307
      %v309 = vmul.f32 %v276, 1.442695
      %v310 = vpow.pop %v309
      %v311 = vmul.f32 %v277, 1.442695
      %v312 = vpow.pop %v311
      %v313 = vmul.f32 %v278, 1.442695
      %v314 = vpow.pop %v313
      %v315 = vmul.f32 %v279, 1.442695
      %v316 = vpow.pop %v315
      %v317 = vmul.f32 %v280, 1.442695
      %v318 = vpow.pop %v317
      %v319 = vmul.f32 %v281, 1.442695
      %v320 = vpow.pop %v319
      %v321 = vmul.f32 %v282, 1.442695
      %v322 = vpow.pop %v321
      %v323 = vmul.f32 %v283, 1.442695
      %v324 = vpow.pop %v323
      %v325 = vmul.f32 %v284, 1.442695
      %v326 = vpow.pop %v325
      %v327 = vmul.f32 %v285, 1.442695
      %v328 = vpow.pop %v327
      %v329 = vmul.f32 %v286, 1.442695
      %v330 = vpow.pop %v329
      %v331 = vmul.f32 %v287, 1.442695
      %v332 = vpow.pop %v331
      %v333 = vmul.f32 %v288, 1.442695
      %v334 = vpow.pop %v333
      %v335 = vmul.f32 %v289, 1.442695
      %v336 = vpow.pop %v335
      %v337 = vmul.f32 %v290, 1.442695
      %v338 = vpow.pop %v337
      %v339 = vmul.f32 %v291, 1.442695
      %v340 = vpow.pop %v339
      %v341 = vmul.f32 %v292, 1.442695
      %v342 = vpow.pop %v341
      %v343 = vmul.f32 %v293, 1.442695
      %v344 = vpow.pop %v343
      %v345 = vmul.f32 %v294, 1.442695
      %v346 = vpow.pop %v345
      %v347 = vmul.f32 %v295, 1.442695
      %v348 = vpow.pop %v347
      %v349 = vmul.f32 %v296, 1.442695
      %v350 = vpow.pop %v349
      %v351 = vmul.f32 %v297, 1.442695
      %v352 = vpow.pop %v351
      %v353 = vmul.f32 %v298, 1.442695
      %v354 = vpow.pop %v353
      %v355 = vmul.f32 %v299, 1.442695
      %v356 = vpow.pop %v355
      %v357 = vmul.f32 %v300, 1.442695
      %v358 = vpow.pop %v357
      %v359 = vmul.f32 %v301, 1.442695
      %v360 = vpow.pop %v359
      %v361 = vmul.f32 %v302, 1.442695
      %v362 = vpow.pop %v361
      %v363 = vmul.f32 %v303, 1.442695
      %v364 = vpow.pop %v363
      %v365 = vmul.f32 %v304, 1.442695
      %v366 = vpow.pop %v365
      %v367 = vmul.f32 %v305, 1.442695
      %v368 = vpow.pop %v367
      %v369 = vmul.f32 %v306, 1.442695
      %v370 = vpow.pop %v369
      %v371 = vadd.f32 %v308, 1.0
      %v372 = vadd.f32 %v310, 1.0
      %v373 = vadd.f32 %v312, 1.0
      %v374 = vadd.f32 %v314, 1.0
      %v375 = vadd.f32 %v316, 1.0
      %v376 = vadd.f32 %v318, 1.0
      %v377 = vadd.f32 %v320, 1.0
      %v378 = vadd.f32 %v322, 1.0
      %v379 = vadd.f32 %v324, 1.0
      %v380 = vadd.f32 %v326, 1.0
      %v381 = vadd.f32 %v328, 1.0
      %v382 = vadd.f32 %v330, 1.0
      %v383 = vadd.f32 %v332, 1.0
      %v384 = vadd.f32 %v334, 1.0
      %v385 = vadd.f32 %v336, 1.0
      %v386 = vadd.f32 %v338, 1.0
      %v387 = vadd.f32 %v340, 1.0
      %v388 = vadd.f32 %v342, 1.0
      %v389 = vadd.f32 %v344, 1.0
      %v390 = vadd.f32 %v346, 1.0
      %v391 = vadd.f32 %v348, 1.0
      %v392 = vadd.f32 %v350, 1.0
      %v393 = vadd.f32 %v352, 1.0
      %v394 = vadd.f32 %v354, 1.0
      %v395 = vadd.f32 %v356, 1.0
      %v396 = vadd.f32 %v358, 1.0
      %v397 = vadd.f32 %v360, 1.0
      %v398 = vadd.f32 %v362, 1.0
      %v399 = vadd.f32 %v364, 1.0
      %v400 = vadd.f32 %v366, 1.0
      %v401 = vadd.f32 %v368, 1.0
      %v402 = vadd.f32 %v370, 1.0
      %v403 = vrcp.pop %v371
      %v404 = vmul.f32 %v371, %v403
      %v405 = vsub.f32 1.0, %v404
      %v406 = vmul.f32 %v403, %v405
      %v407 = vadd.f32 %v403, %v406
      %vm408 = vweird.f32 %v371
      %vm409 = vweird.f32 %v403
      %vm410 = vmor %vm408, %vm409
      %v411 = vsel %vm410, %v403, %v407
      %v412 = vand.u32 2147483647, %v371
      %vm413 = vcmp.eq.f32.partialorder %v412, 8.507059e+37
      %v414 = vand.u32 %v371, 2147483648
      %v415 = vor.u32 1.1754944e-38, %v414
      %v416 = vsel %vm413, %v415, %v411
      %v417 = vrcp.pop %v372
      %v418 = vmul.f32 %v372, %v417
      %v419 = vsub.f32 1.0, %v418
      %v420 = vmul.f32 %v417, %v419
      %v421 = vadd.f32 %v417, %v420
      %vm422 = vweird.f32 %v372
      %vm423 = vweird.f32 %v417
      %vm424 = vmor %vm422, %vm423
      %v425 = vsel %vm424, %v417, %v421
      %v426 = vand.u32 2147483647, %v372
      %vm427 = vcmp.eq.f32.partialorder %v426, 8.507059e+37
      %v428 = vand.u32 %v372, 2147483648
      %v429 = vor.u32 1.1754944e-38, %v428
      %v430 = vsel %vm427, %v429, %v425
      %v431 = vrcp.pop %v373
      %v432 = vmul.f32 %v373, %v431
      %v433 = vsub.f32 1.0, %v432
      %v434 = vmul.f32 %v431, %v433
      %v435 = vadd.f32 %v431, %v434
      %vm436 = vweird.f32 %v373
      %vm437 = vweird.f32 %v431
      %vm438 = vmor %vm436, %vm437
      %v439 = vsel %vm438, %v431, %v435
      %v440 = vand.u32 2147483647, %v373
      %vm441 = vcmp.eq.f32.partialorder %v440, 8.507059e+37
      %v442 = vand.u32 %v373, 2147483648
      %v443 = vor.u32 1.1754944e-38, %v442
      %v444 = vsel %vm441, %v443, %v439
      %v445 = vrcp.pop %v374
      %v446 = vmul.f32 %v374, %v445
      %v447 = vsub.f32 1.0, %v446
      %v448 = vmul.f32 %v445, %v447
      %v449 = vadd.f32 %v445, %v448
      %vm450 = vweird.f32 %v374
      %vm451 = vweird.f32 %v445
      %vm452 = vmor %vm450, %vm451
      %v453 = vsel %vm452, %v445, %v449
      %v454 = vand.u32 2147483647, %v374
      %vm455 = vcmp.eq.f32.partialorder %v454, 8.507059e+37
      %v456 = vand.u32 %v374, 2147483648
      %v457 = vor.u32 1.1754944e-38, %v456
      %v458 = vsel %vm455, %v457, %v453
      %v459 = vrcp.pop %v375
      %v460 = vmul.f32 %v375, %v459
      %v461 = vsub.f32 1.0, %v460
      %v462 = vmul.f32 %v459, %v461
      %v463 = vadd.f32 %v459, %v462
      %vm464 = vweird.f32 %v375
      %vm465 = vweird.f32 %v459
      %vm466 = vmor %vm464, %vm465
      %v467 = vsel %vm466, %v459, %v463
      %v468 = vand.u32 2147483647, %v375
      %vm469 = vcmp.eq.f32.partialorder %v468, 8.507059e+37
      %v470 = vand.u32 %v375, 2147483648
      %v471 = vor.u32 1.1754944e-38, %v470
      %v472 = vsel %vm469, %v471, %v467
      %v473 = vrcp.pop %v376
      %v474 = vmul.f32 %v376, %v473
      %v475 = vsub.f32 1.0, %v474
      %v476 = vmul.f32 %v473, %v475
      %v477 = vadd.f32 %v473, %v476
      %vm478 = vweird.f32 %v376
      %vm479 = vweird.f32 %v473
      %vm480 = vmor %vm478, %vm479
      %v481 = vsel %vm480, %v473, %v477
      %v482 = vand.u32 2147483647, %v376
      %vm483 = vcmp.eq.f32.partialorder %v482, 8.507059e+37
      %v484 = vand.u32 %v376, 2147483648
      %v485 = vor.u32 1.1754944e-38, %v484
      %v486 = vsel %vm483, %v485, %v481
      %v487 = vrcp.pop %v377
      %v488 = vmul.f32 %v377, %v487
      %v489 = vsub.f32 1.0, %v488
      %v490 = vmul.f32 %v487, %v489
      %v491 = vadd.f32 %v487, %v490
      %vm492 = vweird.f32 %v377
      %vm493 = vweird.f32 %v487
      %vm494 = vmor %vm492, %vm493
      %v495 = vsel %vm494, %v487, %v491
      %v496 = vand.u32 2147483647, %v377
      %vm497 = vcmp.eq.f32.partialorder %v496, 8.507059e+37
      %v498 = vand.u32 %v377, 2147483648
      %v499 = vor.u32 1.1754944e-38, %v498
      %v500 = vsel %vm497, %v499, %v495
      %v501 = vrcp.pop %v378
      %v502 = vmul.f32 %v378, %v501
      %v503 = vsub.f32 1.0, %v502
      %v504 = vmul.f32 %v501, %v503
      %v505 = vadd.f32 %v501, %v504
      %vm506 = vweird.f32 %v378
      %vm507 = vweird.f32 %v501
      %vm508 = vmor %vm506, %vm507
      %v509 = vsel %vm508, %v501, %v505
      %v510 = vand.u32 2147483647, %v378
      %vm511 = vcmp.eq.f32.partialorder %v510, 8.507059e+37
      %v512 = vand.u32 %v378, 2147483648
      %v513 = vor.u32 1.1754944e-38, %v512
      %v514 = vsel %vm511, %v513, %v509
      %v515 = vrcp.pop %v379
      %v516 = vmul.f32 %v379, %v515
      %v517 = vsub.f32 1.0, %v516
      %v518 = vmul.f32 %v515, %v517
      %v519 = vadd.f32 %v515, %v518
      %vm520 = vweird.f32 %v379
      %vm521 = vweird.f32 %v515
      %vm522 = vmor %vm520, %vm521
      %v523 = vsel %vm522, %v515, %v519
      %v524 = vand.u32 2147483647, %v379
      %vm525 = vcmp.eq.f32.partialorder %v524, 8.507059e+37
      %v526 = vand.u32 %v379, 2147483648
      %v527 = vor.u32 1.1754944e-38, %v526
      %v528 = vsel %vm525, %v527, %v523
      %v529 = vrcp.pop %v380
      %v530 = vmul.f32 %v380, %v529
      %v531 = vsub.f32 1.0, %v530
      %v532 = vmul.f32 %v529, %v531
      %v533 = vadd.f32 %v529, %v532
      %vm534 = vweird.f32 %v380
      %vm535 = vweird.f32 %v529
      %vm536 = vmor %vm534, %vm535
      %v537 = vsel %vm536, %v529, %v533
      %v538 = vand.u32 2147483647, %v380
      %vm539 = vcmp.eq.f32.partialorder %v538, 8.507059e+37
      %v540 = vand.u32 %v380, 2147483648
      %v541 = vor.u32 1.1754944e-38, %v540
      %v542 = vsel %vm539, %v541, %v537
      %v543 = vrcp.pop %v381
      %v544 = vmul.f32 %v381, %v543
      %v545 = vsub.f32 1.0, %v544
      %v546 = vmul.f32 %v543, %v545
      %v547 = vadd.f32 %v543, %v546
      %vm548 = vweird.f32 %v381
      %vm549 = vweird.f32 %v543
      %vm550 = vmor %vm548, %vm549
      %v551 = vsel %vm550, %v543, %v547
      %v552 = vand.u32 2147483647, %v381
      %vm553 = vcmp.eq.f32.partialorder %v552, 8.507059e+37
      %v554 = vand.u32 %v381, 2147483648
      %v555 = vor.u32 1.1754944e-38, %v554
      %v556 = vsel %vm553, %v555, %v551
      %v557 = vrcp.pop %v382
      %v558 = vmul.f32 %v382, %v557
      %v559 = vsub.f32 1.0, %v558
      %v560 = vmul.f32 %v557, %v559
      %v561 = vadd.f32 %v557, %v560
      %vm562 = vweird.f32 %v382
      %vm563 = vweird.f32 %v557
      %vm564 = vmor %vm562, %vm563
      %v565 = vsel %vm564, %v557, %v561
      %v566 = vand.u32 2147483647, %v382
      %vm567 = vcmp.eq.f32.partialorder %v566, 8.507059e+37
      %v568 = vand.u32 %v382, 2147483648
      %v569 = vor.u32 1.1754944e-38, %v568
      %v570 = vsel %vm567, %v569, %v565
      %v571 = vrcp.pop %v383
      %v572 = vmul.f32 %v383, %v571
      %v573 = vsub.f32 1.0, %v572
      %v574 = vmul.f32 %v571, %v573
      %v575 = vadd.f32 %v571, %v574
      %vm576 = vweird.f32 %v383
      %vm577 = vweird.f32 %v571
      %vm578 = vmor %vm576, %vm577
      %v579 = vsel %vm578, %v571, %v575
      %v580 = vand.u32 2147483647, %v383
      %vm581 = vcmp.eq.f32.partialorder %v580, 8.507059e+37
      %v582 = vand.u32 %v383, 2147483648
      %v583 = vor.u32 1.1754944e-38, %v582
      %v584 = vsel %vm581, %v583, %v579
      %v585 = vrcp.pop %v384
      %v586 = vmul.f32 %v384, %v585
      %v587 = vsub.f32 1.0, %v586
      %v588 = vmul.f32 %v585, %v587
      %v589 = vadd.f32 %v585, %v588
      %vm590 = vweird.f32 %v384
      %vm591 = vweird.f32 %v585
      %vm592 = vmor %vm590, %vm591
      %v593 = vsel %vm592, %v585, %v589
      %v594 = vand.u32 2147483647, %v384
      %vm595 = vcmp.eq.f32.partialorder %v594, 8.507059e+37
      %v596 = vand.u32 %v384, 2147483648
      %v597 = vor.u32 1.1754944e-38, %v596
      %v598 = vsel %vm595, %v597, %v593
      %v599 = vrcp.pop %v385
      %v600 = vmul.f32 %v385, %v599
      %v601 = vsub.f32 1.0, %v600
      %v602 = vmul.f32 %v599, %v601
      %v603 = vadd.f32 %v599, %v602
      %vm604 = vweird.f32 %v385
      %vm605 = vweird.f32 %v599
      %vm606 = vmor %vm604, %vm605
      %v607 = vsel %vm606, %v599, %v603
      %v608 = vand.u32 2147483647, %v385
      %vm609 = vcmp.eq.f32.partialorder %v608, 8.507059e+37
      %v610 = vand.u32 %v385, 2147483648
      %v611 = vor.u32 1.1754944e-38, %v610
      %v612 = vsel %vm609, %v611, %v607
      %v613 = vrcp.pop %v386
      %v614 = vmul.f32 %v386, %v613
      %v615 = vsub.f32 1.0, %v614
      %v616 = vmul.f32 %v613, %v615
      %v617 = vadd.f32 %v613, %v616
      %vm618 = vweird.f32 %v386
      %vm619 = vweird.f32 %v613
      %vm620 = vmor %vm618, %vm619
      %v621 = vsel %vm620, %v613, %v617
      %v622 = vand.u32 2147483647, %v386
      %vm623 = vcmp.eq.f32.partialorder %v622, 8.507059e+37
      %v624 = vand.u32 %v386, 2147483648
      %v625 = vor.u32 1.1754944e-38, %v624
      %v626 = vsel %vm623, %v625, %v621
      %v627 = vrcp.pop %v387
      %v628 = vmul.f32 %v387, %v627
      %v629 = vsub.f32 1.0, %v628
      %v630 = vmul.f32 %v627, %v629
      %v631 = vadd.f32 %v627, %v630
      %vm632 = vweird.f32 %v387
      %vm633 = vweird.f32 %v627
      %vm634 = vmor %vm632, %vm633
      %v635 = vsel %vm634, %v627, %v631
      %v636 = vand.u32 2147483647, %v387
      %vm637 = vcmp.eq.f32.partialorder %v636, 8.507059e+37
      %v638 = vand.u32 %v387, 2147483648
      %v639 = vor.u32 1.1754944e-38, %v638
      %v640 = vsel %vm637, %v639, %v635
      %v641 = vrcp.pop %v388
      %v642 = vmul.f32 %v388, %v641
      %v643 = vsub.f32 1.0, %v642
      %v644 = vmul.f32 %v641, %v643
      %v645 = vadd.f32 %v641, %v644
      %vm646 = vweird.f32 %v388
      %vm647 = vweird.f32 %v641
      %vm648 = vmor %vm646, %vm647
      %v649 = vsel %vm648, %v641, %v645
      %v650 = vand.u32 2147483647, %v388
      %vm651 = vcmp.eq.f32.partialorder %v650, 8.507059e+37
      %v652 = vand.u32 %v388, 2147483648
      %v653 = vor.u32 1.1754944e-38, %v652
      %v654 = vsel %vm651, %v653, %v649
      %v655 = vrcp.pop %v389
      %v656 = vmul.f32 %v389, %v655
      %v657 = vsub.f32 1.0, %v656
      %v658 = vmul.f32 %v655, %v657
      %v659 = vadd.f32 %v655, %v658
      %vm660 = vweird.f32 %v389
      %vm661 = vweird.f32 %v655
      %vm662 = vmor %vm660, %vm661
      %v663 = vsel %vm662, %v655, %v659
      %v664 = vand.u32 2147483647, %v389
      %vm665 = vcmp.eq.f32.partialorder %v664, 8.507059e+37
      %v666 = vand.u32 %v389, 2147483648
      %v667 = vor.u32 1.1754944e-38, %v666
      %v668 = vsel %vm665, %v667, %v663
      %v669 = vrcp.pop %v390
      %v670 = vmul.f32 %v390, %v669
      %v671 = vsub.f32 1.0, %v670
      %v672 = vmul.f32 %v669, %v671
      %v673 = vadd.f32 %v669, %v672
      %vm674 = vweird.f32 %v390
      %vm675 = vweird.f32 %v669
      %vm676 = vmor %vm674, %vm675
      %v677 = vsel %vm676, %v669, %v673
      %v678 = vand.u32 2147483647, %v390
      %vm679 = vcmp.eq.f32.partialorder %v678, 8.507059e+37
      %v680 = vand.u32 %v390, 2147483648
      %v681 = vor.u32 1.1754944e-38, %v680
      %v682 = vsel %vm679, %v681, %v677
      %v683 = vrcp.pop %v391
      %v684 = vmul.f32 %v391, %v683
      %v685 = vsub.f32 1.0, %v684
      %v686 = vmul.f32 %v683, %v685
      %v687 = vadd.f32 %v683, %v686
      %vm688 = vweird.f32 %v391
      %vm689 = vweird.f32 %v683
      %vm690 = vmor %vm688, %vm689
      %v691 = vsel %vm690, %v683, %v687
      %v692 = vand.u32 2147483647, %v391
      %vm693 = vcmp.eq.f32.partialorder %v692, 8.507059e+37
      %v694 = vand.u32 %v391, 2147483648
      %v695 = vor.u32 1.1754944e-38, %v694
      %v696 = vsel %vm693, %v695, %v691
      %v697 = vrcp.pop %v392
      %v698 = vmul.f32 %v392, %v697
      %v699 = vsub.f32 1.0, %v698
      %v700 = vmul.f32 %v697, %v699
      %v701 = vadd.f32 %v697, %v700
      %vm702 = vweird.f32 %v392
      %vm703 = vweird.f32 %v697
      %vm704 = vmor %vm702, %vm703
      %v705 = vsel %vm704, %v697, %v701
      %v706 = vand.u32 2147483647, %v392
      %vm707 = vcmp.eq.f32.partialorder %v706, 8.507059e+37
      %v708 = vand.u32 %v392, 2147483648
      %v709 = vor.u32 1.1754944e-38, %v708
      %v710 = vsel %vm707, %v709, %v705
      %v711 = vrcp.pop %v393
      %v712 = vmul.f32 %v393, %v711
      %v713 = vsub.f32 1.0, %v712
      %v714 = vmul.f32 %v711, %v713
      %v715 = vadd.f32 %v711, %v714
      %vm716 = vweird.f32 %v393
      %vm717 = vweird.f32 %v711
      %vm718 = vmor %vm716, %vm717
      %v719 = vsel %vm718, %v711, %v715
      %v720 = vand.u32 2147483647, %v393
      %vm721 = vcmp.eq.f32.partialorder %v720, 8.507059e+37
      %v722 = vand.u32 %v393, 2147483648
      %v723 = vor.u32 1.1754944e-38, %v722
      %v724 = vsel %vm721, %v723, %v719
      %v725 = vrcp.pop %v394
      %v726 = vmul.f32 %v394, %v725
      %v727 = vsub.f32 1.0, %v726
      %v728 = vmul.f32 %v725, %v727
      %v729 = vadd.f32 %v725, %v728
      %vm730 = vweird.f32 %v394
      %vm731 = vweird.f32 %v725
      %vm732 = vmor %vm730, %vm731
      %v733 = vsel %vm732, %v725, %v729
      %v734 = vand.u32 2147483647, %v394
      %vm735 = vcmp.eq.f32.partialorder %v734, 8.507059e+37
      %v736 = vand.u32 %v394, 2147483648
      %v737 = vor.u32 1.1754944e-38, %v736
      %v738 = vsel %vm735, %v737, %v733
      %v739 = vrcp.pop %v395
      %v740 = vmul.f32 %v395, %v739
      %v741 = vsub.f32 1.0, %v740
      %v742 = vmul.f32 %v739, %v741
      %v743 = vadd.f32 %v739, %v742
      %vm744 = vweird.f32 %v395
      %vm745 = vweird.f32 %v739
      %vm746 = vmor %vm744, %vm745
      %v747 = vsel %vm746, %v739, %v743
      %v748 = vand.u32 2147483647, %v395
      %vm749 = vcmp.eq.f32.partialorder %v748, 8.507059e+37
      %v750 = vand.u32 %v395, 2147483648
      %v751 = vor.u32 1.1754944e-38, %v750
      %v752 = vsel %vm749, %v751, %v747
      %v753 = vrcp.pop %v396
      %v754 = vmul.f32 %v396, %v753
      %v755 = vsub.f32 1.0, %v754
      %v756 = vmul.f32 %v753, %v755
      %v757 = vadd.f32 %v753, %v756
      %vm758 = vweird.f32 %v396
      %vm759 = vweird.f32 %v753
      %vm760 = vmor %vm758, %vm759
      %v761 = vsel %vm760, %v753, %v757
      %v762 = vand.u32 2147483647, %v396
      %vm763 = vcmp.eq.f32.partialorder %v762, 8.507059e+37
      %v764 = vand.u32 %v396, 2147483648
      %v765 = vor.u32 1.1754944e-38, %v764
      %v766 = vsel %vm763, %v765, %v761
      %v767 = vrcp.pop %v397
      %v768 = vmul.f32 %v397, %v767
      %v769 = vsub.f32 1.0, %v768
      %v770 = vmul.f32 %v767, %v769
      %v771 = vadd.f32 %v767, %v770
      %vm772 = vweird.f32 %v397
      %vm773 = vweird.f32 %v767
      %vm774 = vmor %vm772, %vm773
      %v775 = vsel %vm774, %v767, %v771
      %v776 = vand.u32 2147483647, %v397
      %vm777 = vcmp.eq.f32.partialorder %v776, 8.507059e+37
      %v778 = vand.u32 %v397, 2147483648
      %v779 = vor.u32 1.1754944e-38, %v778
      %v780 = vsel %vm777, %v779, %v775
      %v781 = vrcp.pop %v398
      %v782 = vmul.f32 %v398, %v781
      %v783 = vsub.f32 1.0, %v782
      %v784 = vmul.f32 %v781, %v783
      %v785 = vadd.f32 %v781, %v784
      %vm786 = vweird.f32 %v398
      %vm787 = vweird.f32 %v781
      %vm788 = vmor %vm786, %vm787
      %v789 = vsel %vm788, %v781, %v785
      %v790 = vand.u32 2147483647, %v398
      %vm791 = vcmp.eq.f32.partialorder %v790, 8.507059e+37
      %v792 = vand.u32 %v398, 2147483648
      %v793 = vor.u32 1.1754944e-38, %v792
      %v794 = vsel %vm791, %v793, %v789
      %v795 = vrcp.pop %v399
      %v796 = vmul.f32 %v399, %v795
      %v797 = vsub.f32 1.0, %v796
      %v798 = vmul.f32 %v795, %v797
      %v799 = vadd.f32 %v795, %v798
      %vm800 = vweird.f32 %v399
      %vm801 = vweird.f32 %v795
      %vm802 = vmor %vm800, %vm801
      %v803 = vsel %vm802, %v795, %v799
      %v804 = vand.u32 2147483647, %v399
      %vm805 = vcmp.eq.f32.partialorder %v804, 8.507059e+37
      %v806 = vand.u32 %v399, 2147483648
      %v807 = vor.u32 1.1754944e-38, %v806
      %v808 = vsel %vm805, %v807, %v803
      %v809 = vrcp.pop %v400
      %v810 = vmul.f32 %v400, %v809
      %v811 = vsub.f32 1.0, %v810
      %v812 = vmul.f32 %v809, %v811
      %v813 = vadd.f32 %v809, %v812
      %vm814 = vweird.f32 %v400
      %vm815 = vweird.f32 %v809
      %vm816 = vmor %vm814, %vm815
      %v817 = vsel %vm816, %v809, %v813
      %v818 = vand.u32 2147483647, %v400
      %vm819 = vcmp.eq.f32.partialorder %v818, 8.507059e+37
      %v820 = vand.u32 %v400, 2147483648
      %v821 = vor.u32 1.1754944e-38, %v820
      %v822 = vsel %vm819, %v821, %v817
      %v823 = vrcp.pop %v401
      %v824 = vmul.f32 %v401, %v823
      %v825 = vsub.f32 1.0, %v824
      %v826 = vmul.f32 %v823, %v825
      %v827 = vadd.f32 %v823, %v826
      %vm828 = vweird.f32 %v401
      %vm829 = vweird.f32 %v823
      %vm830 = vmor %vm828, %vm829
      %v831 = vsel %vm830, %v823, %v827
      %v832 = vand.u32 2147483647, %v401
      %vm833 = vcmp.eq.f32.partialorder %v832, 8.507059e+37
      %v834 = vand.u32 %v401, 2147483648
      %v835 = vor.u32 1.1754944e-38, %v834
      %v836 = vsel %vm833, %v835, %v831
      %v837 = vrcp.pop %v402
      %v838 = vmul.f32 %v402, %v837
      %v839 = vsub.f32 1.0, %v838
      %v840 = vmul.f32 %v837, %v839
      %v841 = vadd.f32 %v837, %v840
      %vm842 = vweird.f32 %v402
      %vm843 = vweird.f32 %v837
      %vm844 = vmor %vm842, %vm843
      %v845 = vsel %vm844, %v837, %v841
      %v846 = vand.u32 2147483647, %v402
      %vm847 = vcmp.eq.f32.partialorder %v846, 8.507059e+37
      %v848 = vand.u32 %v402, 2147483648
      %v849 = vor.u32 1.1754944e-38, %v848
      %v850 = vsel %vm847, %v849, %v845
      %vm851 = vcmask 64512
      %852 = vst.msk [vmem:[%s170] sm:$0xff] %vm851, %v416
      %853 = vst.msk [vmem:[%s170 + $0x8] sm:$0xff] %vm851, %v430
      %854 = vst.msk [vmem:[%s170 + $0x10] sm:$0xff] %vm851, %v444
      %855 = vst.msk [vmem:[%s170 + $0x18] sm:$0xff] %vm851, %v458
      %856 = vst.msk [vmem:[%s170 + $0x20] sm:$0xff] %vm851, %v472
      %857 = vst.msk [vmem:[%s170 + $0x28] sm:$0xff] %vm851, %v486
      %858 = vst.msk [vmem:[%s170 + $0x30] sm:$0xff] %vm851, %v500
      %859 = vst.msk [vmem:[%s170 + $0x38] sm:$0xff] %vm851, %v514
      %860 = vst.msk [vmem:[%s170 + $0x40] sm:$0xff] %vm851, %v528
      %861 = vst.msk [vmem:[%s170 + $0x48] sm:$0xff] %vm851, %v542
      %862 = vst.msk [vmem:[%s170 + $0x50] sm:$0xff] %vm851, %v556
      %863 = vst.msk [vmem:[%s170 + $0x58] sm:$0xff] %vm851, %v570
      %864 = vst.msk [vmem:[%s170 + $0x60] sm:$0xff] %vm851, %v584
      %865 = vst.msk [vmem:[%s170 + $0x68] sm:$0xff] %vm851, %v598
      %866 = vst.msk [vmem:[%s170 + $0x70] sm:$0xff] %vm851, %v612
      %867 = vst.msk [vmem:[%s170 + $0x78] sm:$0xff] %vm851, %v626
      %868 = vst.msk [vmem:[%s170 + $0x80] sm:$0xff] %vm851, %v640
      %869 = vst.msk [vmem:[%s170 + $0x88] sm:$0xff] %vm851, %v654
      %870 = vst.msk [vmem:[%s170 + $0x90] sm:$0xff] %vm851, %v668
      %871 = vst.msk [vmem:[%s170 + $0x98] sm:$0xff] %vm851, %v682
      %872 = vst.msk [vmem:[%s170 + $0xa0] sm:$0xff] %vm851, %v696
      %873 = vst.msk [vmem:[%s170 + $0xa8] sm:$0xff] %vm851, %v710
      %874 = vst.msk [vmem:[%s170 + $0xb0] sm:$0xff] %vm851, %v724
      %875 = vst.msk [vmem:[%s170 + $0xb8] sm:$0xff] %vm851, %v738
      %876 = vst.msk [vmem:[%s170 + $0xc0] sm:$0xff] %vm851, %v752
      %877 = vst.msk [vmem:[%s170 + $0xc8] sm:$0xff] %vm851, %v766
      %878 = vst.msk [vmem:[%s170 + $0xd0] sm:$0xff] %vm851, %v780
      %879 = vst.msk [vmem:[%s170 + $0xd8] sm:$0xff] %vm851, %v794
      %880 = vst.msk [vmem:[%s170 + $0xe0] sm:$0xff] %vm851, %v808
      %881 = vst.msk [vmem:[%s170 + $0xe8] sm:$0xff] %vm851, %v822
      %882 = vst.msk [vmem:[%s170 + $0xf0] sm:$0xff] %vm851, %v836
      %883 = vst.msk [vmem:[%s170 + $0xf8] sm:$0xff] %vm851, %v850
      %p884 = scmp.lt.s32.totalorder %s14, 1
      %s885 = scalar_select %p884, %s14, 1
      %s886 = smul.addr %s885, 32
      %s887 = smul.addr %s886, 8
      %s888 = scalar_lea.vmem %s3, %s887
      // Predicated region
      $region33: #{double_conv.5} parent=31 // pred_check
        %p889 = pneg %p100
      $region34: #{double_conv.5} parent=31 // pred_check_branch
        %891 = sbr.rel (%p889) target = $region36
      $region35: #{double_conv.5} parent=31 // pred_region
        _
      $region36: #{double_conv.5} parent=31 // pred_fallthru
        _
    $region32: #{double_conv.5} parent=5 // pred_fallthru
      _
    %p892 = scmp.le.s32.totalorder 2, %s9
    // Predicated region
    $region37: #{double_conv.5} parent=5 // pred_check
      %p893 = pneg %p892
    $region38: #{double_conv.5} parent=5 // pred_check_branch
      %895 = sbr.rel (%p893) target = $region40
    $region39: #{double_conv.5} parent=5 // pred_region
      %s896 = ssub.s32 %s9, 2
      // Predicated region
      $region41: #{double_conv.5} parent=39 // pred_check
        %p897 = pneg %p106
      $region42: #{double_conv.5} parent=39 // pred_check_branch
        %899 = sbr.rel (%p897) target = $region44
      $region43: #{double_conv.5} parent=39 // pred_region
        %p900 = scmp.lt.s32.totalorder %s15, 1
        %s901 = scalar_select %p900, %s15, 1
        %s902 = smul.addr %s901, 32
        %s903 = smul.addr %s902, 8
        %s904 = scalar_lea.vmem %s3, %s903
      $region44: #{double_conv.5} parent=39 // pred_fallthru
        _
    $region40: #{double_conv.5} parent=5 // pred_fallthru
      _
  $region6: #{double_conv.5} parent=0 // loop_footer
    %s13 = sadd.s32 1, %s9
  $region7: #{double_conv.5} parent=0 // loop_footer_branch
    %8 = sbr.rel target = $region3
  $region8: #{double_conv.5} parent=0 // loop_exit
    _

// kernel: double_conv.3
$region0: #{double_conv.3}
  #allocation0 [shape = 'u32[]', space=smem, size = 0x4, offset = 0x4, fixed_abs, tag = 'smem constant byte address 0x4 - core index']
  #allocation1 [shape = 'u32[72,128]{1,0:T(1,128)}', space=vmem, size = 0x9000, scoped, tag = 'internal scratch']
  %s0 = inlined_call_operand.vmem [shape: f32[2,18,18,4], index: 0, kind: input, shape index: {}]
  %s1 = inlined_call_operand.vmem [shape: f32[1,4], index: 1, kind: input, shape index: {}]
  %s2 = inlined_call_operand.vmem [shape: f32[1,4], index: 2, kind: input, shape index: {}]
  %s3 = inlined_call_operand.vmem [shape: f32[36,8], index: 3, kind: input, shape index: {}]
  %s4 = inlined_call_operand.vmem [shape: f32[2,16,16,8], index: 4, kind: output, shape index: {0}]
  %s5 = inlined_call_operand.vmem [shape: f32[2,2,8], index: 5, kind: output, shape index: {1}]
  %6 = xla_tuple %s4, %s5
  %s7 = sld [smem:[#allocation0]]
  $region57: #{double_conv.3} parent=0
    _
  %s9 = ssub.s32 1, %s7
  %s10 = scalar_select 0, %s9, %s7
  loop: start=0, step=1, limit=4
  $region2: #{double_conv.3} parent=0 // loop_pre_header
    _
  $region3: #{double_conv.3} parent=0 // loop_header
    %s12 = sphi 0, %s16
    %p13 = scmp.ge.s32.totalorder %s12, 4
    %s22 = sphi 0, %s24
    %s25 = sphi 0, %s22
    %s26 = sphi 0, %s25
    %s42 = sphi 0, %s26
    %s46 = sphi 0, %s46
    %s48 = sphi 0, %s46
    %s49 = sphi 0, %s48
    %s63 = sphi 0, %s49
    %s67 = sphi 0, %s67
    %s69 = sphi 0, %s67
    %s70 = sphi 0, %s69
    %s84 = sphi 0, %s70
    %s88 = sphi 0, %s88
    %s90 = sphi 0, %s88
    %s91 = sphi 0, %s90
    %s105 = sphi 0, %s91
    %s111 = sphi 0, %s113
    %s114 = sphi 0, %s111
    %s115 = sphi 0, %s114
    %s131 = sphi 0, %s115
    %s137 = sphi 0, %s139
    %s140 = sphi 0, %s137
    %s141 = sphi 0, %s140
    %s157 = sphi 0, %s141
  $region4: #{double_conv.3} parent=0 // loop_header_branch
    %15 = sbr.rel (%p13) target = $region8
  $region5: #{double_conv.3} parent=0 // loop_body
    %s17 = ssub.s32 %s12, 1
    %s18 = ssub.s32 %s12, 2
    %s19 = sadd.s32 %s12, 1
    %s20 = ssub.s32 %s12, %s19
    %p21 = scmp.eq.s32.totalorder %s20, 0
    %s23 = sadd.s32 %s22, 1
    %s24 = scalar_select %p21, %s22, %s23
    %p27 = pneg %p21
    %p28 = scmp.eq.s32.totalorder %s12, 1
    %p29 = por %p27, %p28
    %p30 = scmp.ne.s32.totalorder %s22, %s25
    %p31 = scmp.eq.s32.totalorder %s12, 0
    %p32 = por %p30, %p31
    %p33 = scmp.ne.s32.totalorder %s22, %s25
    %p34 = scmp.eq.s32.totalorder %s17, 1
    %p35 = por %p33, %p34
    %p36 = scmp.ne.s32.totalorder %s25, %s26
    %p37 = scmp.eq.s32.totalorder %s17, 0
    %p38 = por %p36, %p37
    %p39 = scmp.ne.s32.totalorder %s25, %s26
    %p40 = scmp.eq.s32.totalorder %s18, 1
    %p41 = por %p39, %p40
    %p43 = scmp.ne.s32.totalorder %s26, %s42
    %p44 = scmp.eq.s32.totalorder %s18, 0
    %p45 = por %p43, %p44
    %s47 = sadd.s32 %s46, 1
    %p50 = scmp.eq.s32.totalorder %s12, 1
    %p51 = scmp.ne.s32.totalorder %s46, %s48
    %p52 = scmp.eq.s32.totalorder %s12, 0
    %p53 = por %p51, %p52
    %p54 = scmp.ne.s32.totalorder %s46, %s48
    %p55 = scmp.eq.s32.totalorder %s17, 1
    %p56 = por %p54, %p55
    %p57 = scmp.ne.s32.totalorder %s48, %s49
    %p58 = scmp.eq.s32.totalorder %s17, 0
    %p59 = por %p57, %p58
    %p60 = scmp.ne.s32.totalorder %s48, %s49
    %p61 = scmp.eq.s32.totalorder %s18, 1
    %p62 = por %p60, %p61
    %p64 = scmp.ne.s32.totalorder %s49, %s63
    %p65 = scmp.eq.s32.totalorder %s18, 0
    %p66 = por %p64, %p65
    %s68 = sadd.s32 %s67, 1
    %p71 = scmp.eq.s32.totalorder %s12, 1
    %p72 = scmp.ne.s32.totalorder %s67, %s69
    %p73 = scmp.eq.s32.totalorder %s12, 0
    %p74 = por %p72, %p73
    %p75 = scmp.ne.s32.totalorder %s67, %s69
    %p76 = scmp.eq.s32.totalorder %s17, 1
    %p77 = por %p75, %p76
    %p78 = scmp.ne.s32.totalorder %s69, %s70
    %p79 = scmp.eq.s32.totalorder %s17, 0
    %p80 = por %p78, %p79
    %p81 = scmp.ne.s32.totalorder %s69, %s70
    %p82 = scmp.eq.s32.totalorder %s18, 1
    %p83 = por %p81, %p82
    %p85 = scmp.ne.s32.totalorder %s70, %s84
    %p86 = scmp.eq.s32.totalorder %s18, 0
    %p87 = por %p85, %p86
    %s89 = sadd.s32 %s88, 1
    %p92 = scmp.eq.s32.totalorder %s12, 1
    %p93 = scmp.ne.s32.totalorder %s88, %s90
    %p94 = scmp.eq.s32.totalorder %s12, 0
    %p95 = por %p93, %p94
    %p96 = scmp.ne.s32.totalorder %s88, %s90
    %p97 = scmp.eq.s32.totalorder %s17, 1
    %p98 = por %p96, %p97
    %p99 = scmp.ne.s32.totalorder %s90, %s91
    %p100 = scmp.eq.s32.totalorder %s17, 0
    %p101 = por %p99, %p100
    %p102 = scmp.ne.s32.totalorder %s90, %s91
    %p103 = scmp.eq.s32.totalorder %s18, 1
    %p104 = por %p102, %p103
    %p106 = scmp.ne.s32.totalorder %s91, %s105
    %p107 = scmp.eq.s32.totalorder %s18, 0
    %p108 = por %p106, %p107
    %s109 = ssub.s32 %s12, %s19
    %p110 = scmp.eq.s32.totalorder %s109, 0
    %s112 = sadd.s32 %s111, 1
    %s113 = scalar_select %p110, %s111, %s112
    %p116 = pneg %p110
    %p117 = scmp.eq.s32.totalorder %s12, 1
    %p118 = por %p116, %p117
    %p119 = scmp.ne.s32.totalorder %s111, %s114
    %p120 = scmp.eq.s32.totalorder %s12, 0
    %p121 = por %p119, %p120
    %p122 = scmp.ne.s32.totalorder %s111, %s114
    %p123 = scmp.eq.s32.totalorder %s17, 1
    %p124 = por %p122, %p123
    %p125 = scmp.ne.s32.totalorder %s114, %s115
    %p126 = scmp.eq.s32.totalorder %s17, 0
    %p127 = por %p125, %p126
    %p128 = scmp.ne.s32.totalorder %s114, %s115
    %p129 = scmp.eq.s32.totalorder %s18, 1
    %p130 = por %p128, %p129
    %p132 = scmp.ne.s32.totalorder %s115, %s131
    %p133 = scmp.eq.s32.totalorder %s18, 0
    %p134 = por %p132, %p133
    %s135 = ssub.s32 %s12, %s19
    %p136 = scmp.eq.s32.totalorder %s135, 0
    %s138 = sadd.s32 %s137, 1
    %s139 = scalar_select %p136, %s137, %s138
    %p142 = pneg %p136
    %p143 = scmp.eq.s32.totalorder %s12, 1
    %p144 = por %p142, %p143
    %p145 = scmp.ne.s32.totalorder %s137, %s140
    %p146 = scmp.eq.s32.totalorder %s12, 0
    %p147 = por %p145, %p146
    %p148 = scmp.ne.s32.totalorder %s137, %s140
    %p149 = scmp.eq.s32.totalorder %s17, 1
    %p150 = por %p148, %p149
    %p151 = scmp.ne.s32.totalorder %s140, %s141
    %p152 = scmp.eq.s32.totalorder %s17, 0
    %p153 = por %p151, %p152
    %p154 = scmp.ne.s32.totalorder %s140, %s141
    %p155 = scmp.eq.s32.totalorder %s18, 1
    %p156 = por %p154, %p155
    %p158 = scmp.ne.s32.totalorder %s141, %s157
    %p159 = scmp.eq.s32.totalorder %s18, 0
    %p160 = por %p158, %p159
    %p161 = scmp.le.s32.totalorder 1, %s12
    %p162 = scmp.lt.s32.totalorder %s12, 3
    %p163 = pnand %p161, %p162
    %p164 = pneg %p163
    // Predicated region
    $region9: #{double_conv.3} parent=5 // pred_check
      _
    $region10: #{double_conv.3} parent=5 // pred_check_branch
      %166 = sbr.rel (%p163) target = $region12
    $region11: #{double_conv.3} parent=5 // pred_region
      %s167 = ssub.s32 %s12, 1
      // Predicated region
      $region13: #{double_conv.3} parent=11 // pred_check
        %p168 = pneg %p59
      $region14: #{double_conv.3} parent=11 // pred_check_branch
        %170 = sbr.rel (%p168) target = $region16
      $region15: #{double_conv.3} parent=11 // pred_region
        _
      $region16: #{double_conv.3} parent=11 // pred_fallthru
        _
      // Predicated region
      $region17: #{double_conv.3} parent=11 // pred_check
        %p171 = pneg %p80
      $region18: #{double_conv.3} parent=11 // pred_check_branch
        %173 = sbr.rel (%p171) target = $region20
      $region19: #{double_conv.3} parent=11 // pred_region
        _
      $region20: #{double_conv.3} parent=11 // pred_fallthru
        _
      // Predicated region
      $region21: #{double_conv.3} parent=11 // pred_check
        %p174 = pneg %p101
      $region22: #{double_conv.3} parent=11 // pred_check_branch
        %176 = sbr.rel (%p174) target = $region24
      $region23: #{double_conv.3} parent=11 // pred_region
        _
      $region24: #{double_conv.3} parent=11 // pred_fallthru
        _
    $region12: #{double_conv.3} parent=5 // pred_fallthru
      _
    %p177 = scmp.lt.s32.totalorder %s12, 2
    // Predicated region
    $region25: #{double_conv.3} parent=5 // pred_check
      %p178 = pneg %p177
    $region26: #{double_conv.3} parent=5 // pred_check_branch
      %180 = sbr.rel (%p178) target = $region28
    $region27: #{double_conv.3} parent=5 // pred_region
      // Predicated region
      $region29: #{double_conv.3} parent=27 // pred_check
        %p181 = pneg %p32
      $region30: #{double_conv.3} parent=27 // pred_check_branch
        %183 = sbr.rel (%p181) target = $region32
      $region31: #{double_conv.3} parent=27 // pred_region
        %p184 = scmp.lt.s32.totalorder %s12, 1
        %s185 = scalar_select %p184, %s12, 1
        %s186 = smul.addr %s185, 54
        %s187 = smul.addr %s186, 8
        %s188 = scalar_lea.vmem %s0, %s187
      $region32: #{double_conv.3} parent=27 // pred_fallthru
        _
    $region28: #{double_conv.3} parent=5 // pred_fallthru
      _
    %p189 = scmp.le.s32.totalorder 1, %s12
    %p190 = scmp.lt.s32.totalorder %s12, 3
    %p191 = pnand %p189, %p190
    %p192 = pneg %p191
    // Predicated region
    $region33: #{double_conv.3} parent=5 // pred_check
      _
    $region34: #{double_conv.3} parent=5 // pred_check_branch
      %194 = sbr.rel (%p191) target = $region36
    $region35: #{double_conv.3} parent=5 // pred_region
      %s195 = ssub.s32 %s12, 1
      %p196 = scmp.lt.s32.totalorder %s17, 1
      %s197 = scalar_select %p196, %s17, 1
      %s198 = smul.addr %s197, 54
      %s199 = smul.addr %s198, 8
      %s200 = scalar_lea.vmem %s0, %s199
      %p201 = pneg %p38
      %p202 = pneg %p35
      %p203 = pneg %p59
      %p204 = pneg %p56
      %p205 = pneg %p80
      %p206 = pneg %p77
      %p207 = pneg %p101
      %p208 = pneg %p98
      %p209 = pneg %p127
      %p210 = pneg %p124
      %p211 = scmp.lt.s32.totalorder %s17, 1
      %s212 = scalar_select %p211, %s17, 1
      %s213 = smul.addr %s212, 32
      %s214 = smul.addr %s213, 8
      %s215 = scalar_lea.vmem %s4, %s214
      %p216 = pneg %p153
      %p217 = pneg %p150
      %p218 = scmp.lt.s32.totalorder %s17, 1
      %s219 = scalar_select %p218, %s17, 1
      %s220 = smul.addr %s219, 2
      %s221 = scalar_lea.vmem %s5, %s220
      %p222 = scmp.lt.s32.totalorder %s17, 1
      %s223 = scalar_select %p222, %s17, 1
      %s224 = smul.addr %s223, 54
      %s225 = smul.addr %s224, 8
      %s226 = scalar_lea.vmem %s0, %s225
      %p227 = scmp.lt.s32.totalorder %s17, 1
      %s228 = scalar_select %p227, %s17, 1
      %s229 = smul.addr %s228, 32
      %s230 = smul.addr %s229, 8
      %s231 = scalar_lea.vmem %s4, %s230
      %p232 = scmp.lt.s32.totalorder %s17, 1
      %s233 = scalar_select %p232, %s17, 1
      %s234 = smul.addr %s233, 2
      %s235 = scalar_lea.vmem %s5, %s234
      %v236 = vld [vmem:[%s226] sm:$0xff]
      %v237 = vld [vmem:[%s226 + $0x8] sm:$0xff]
      %v238 = vld [vmem:[%s226 + $0x10] sm:$0x3]
      %v239 = vld [vmem:[%s226 + $0x18] sm:$0xff]
      %v240 = vld [vmem:[%s226 + $0x20] sm:$0xff]
      %v241 = vld [vmem:[%s226 + $0x28] sm:$0x3]
      %v242 = vld [vmem:[%s226 + $0x30] sm:$0xff]
      %v243 = vld [vmem:[%s226 + $0x38] sm:$0xff]
      %v244 = vld [vmem:[%s226 + $0x40] sm:$0x3]
      %v245 = vld [vmem:[%s226 + $0x48] sm:$0xff]
      %v246 = vld [vmem:[%s226 + $0x50] sm:$0xff]
      %v247 = vld [vmem:[%s226 + $0x58] sm:$0x3]
      %v248 = vld [vmem:[%s226 + $0x60] sm:$0xff]
      %v249 = vld [vmem:[%s226 + $0x68] sm:$0xff]
      %v250 = vld [vmem:[%s226 + $0x70] sm:$0x3]
      %v251 = vld [vmem:[%s226 + $0x78] sm:$0xff]
      %v252 = vld [vmem:[%s226 + $0x80] sm:$0xff]
      %v253 = vld [vmem:[%s226 + $0x88] sm:$0x3]
      %v254 = vld [vmem:[%s226 + $0x90] sm:$0xff]
      %v255 = vld [vmem:[%s226 + $0x98] sm:$0xff]
      %v256 = vld [vmem:[%s226 + $0xa0] sm:$0x3]
      %v257 = vld [vmem:[%s226 + $0xa8] sm:$0xff]
      %v258 = vld [vmem:[%s226 + $0xb0] sm:$0xff]
      %v259 = vld [vmem:[%s226 + $0xb8] sm:$0x3]
      %v260 = vld [vmem:[%s226 + $0xc0] sm:$0xff]
      %v261 = vld [vmem:[%s226 + $0xc8] sm:$0xff]
      %v262 = vld [vmem:[%s226 + $0xd0] sm:$0x3]
      %v263 = vld [vmem:[%s226 + $0xd8] sm:$0xff]
      %v264 = vld [vmem:[%s226 + $0xe0] sm:$0xff]
      %v265 = vld [vmem:[%s226 + $0xe8] sm:$0x3]
      %v266 = vld [vmem:[%s226 + $0xf0] sm:$0xff]
      %v267 = vld [vmem:[%s226 + $0xf8] sm:$0xff]
      %v268 = vld [vmem:[%s226 + $0x100] sm:$0x3]
      %v269 = vld [vmem:[%s226 + $0x108] sm:$0xff]
      %v270 = vld [vmem:[%s226 + $0x110] sm:$0xff]
      %v271 = vld [vmem:[%s226 + $0x118] sm:$0x3]
      %v272 = vld [vmem:[%s226 + $0x120] sm:$0xff]
      %v273 = vld [vmem:[%s226 + $0x128] sm:$0xff]
      %v274 = vld [vmem:[%s226 + $0x130] sm:$0x3]
      %v275 = vld [vmem:[%s226 + $0x138] sm:$0xff]
      %v276 = vld [vmem:[%s226 + $0x140] sm:$0xff]
      %v277 = vld [vmem:[%s226 + $0x148] sm:$0x3]
      %v278 = vld [vmem:[%s226 + $0x150] sm:$0xff]
      %v279 = vld [vmem:[%s226 + $0x158] sm:$0xff]
      %v280 = vld [vmem:[%s226 + $0x160] sm:$0x3]
      %v281 = vld [vmem:[%s226 + $0x168] sm:$0xff]
      %v282 = vld [vmem:[%s226 + $0x170] sm:$0xff]
      %v283 = vld [vmem:[%s226 + $0x178] sm:$0x3]
      %v284 = vld [vmem:[%s226 + $0x180] sm:$0xff]
      %v285 = vld [vmem:[%s226 + $0x188] sm:$0xff]
      %v286 = vld [vmem:[%s226 + $0x190] sm:$0x3]
      %v287 = vld [vmem:[%s226 + $0x198] sm:$0xff]
      %v288 = vld [vmem:[%s226 + $0x1a0] sm:$0xff]
      %v289 = vld [vmem:[%s226 + $0x1a8] sm:$0x3]
      %vm338 = vcmask 1046528
      %v339 = vrot.slane %v236, 1
      %v340 = vrot.slane %v237, 1
      %v341 = vsel %vm338, %v339, %v340
      %v342 = vrot.slane %v238, 1
      %v343 = vsel %vm338, %v340, %v342
      %v344 = vrot.slane %v239, 1
      %v345 = vrot.slane %v240, 1
      %v346 = vsel %vm338, %v344, %v345
      %v347 = vrot.slane %v241, 1
      %v348 = vsel %vm338, %v345, %v347
      %v349 = vrot.slane %v242, 1
      %v350 = vrot.slane %v243, 1
      %v351 = vsel %vm338, %v349, %v350
      %v352 = vrot.slane %v244, 1
      %v353 = vsel %vm338, %v350, %v352
      %v354 = vrot.slane %v245, 1
      %v355 = vrot.slane %v246, 1
      %v356 = vsel %vm338, %v354, %v355
      %v357 = vrot.slane %v247, 1
      %v358 = vsel %vm338, %v355, %v357
      %v359 = vrot.slane %v248, 1
      %v360 = vrot.slane %v249, 1
      %v361 = vsel %vm338, %v359, %v360
      %v362 = vrot.slane %v250, 1
      %v363 = vsel %vm338, %v360, %v362
      %v364 = vrot.slane %v251, 1
      %v365 = vrot.slane %v252, 1
      %v366 = vsel %vm338, %v364, %v365
      %v367 = vrot.slane %v253, 1
      %v368 = vsel %vm338, %v365, %v367
      %v369 = vrot.slane %v254, 1
      %v370 = vrot.slane %v255, 1
      %v371 = vsel %vm338, %v369, %v370
      %v372 = vrot.slane %v256, 1
      %v373 = vsel %vm338, %v370, %v372
      %v374 = vrot.slane %v257, 1
      %v375 = vrot.slane %v258, 1
      %v376 = vsel %vm338, %v374, %v375
      %v377 = vrot.slane %v259, 1
      %v378 = vsel %vm338, %v375, %v377
      %v379 = vrot.slane %v260, 1
      %v380 = vrot.slane %v261, 1
      %v381 = vsel %vm338, %v379, %v380
      %v382 = vrot.slane %v262, 1
      %v383 = vsel %vm338, %v380, %v382
      %v384 = vrot.slane %v263, 1
      %v385 = vrot.slane %v264, 1
      %v386 = vsel %vm338, %v384, %v385
      %v387 = vrot.slane %v265, 1
      %v388 = vsel %vm338, %v385, %v387
      %v389 = vrot.slane %v266, 1
      %v390 = vrot.slane %v267, 1
      %v391 = vsel %vm338, %v389, %v390
      %v392 = vrot.slane %v268, 1
      %v393 = vsel %vm338, %v390, %v392
      %v394 = vrot.slane %v269, 1
      %v395 = vrot.slane %v270, 1
      %v396 = vsel %vm338, %v394, %v395
      %v397 = vrot.slane %v271, 1
      %v398 = vsel %vm338, %v395, %v397
      %v399 = vrot.slane %v272, 1
      %v400 = vrot.slane %v273, 1
      %v401 = vsel %vm338, %v399, %v400
      %v402 = vrot.slane %v274, 1
      %v403 = vsel %vm338, %v400, %v402
      %v404 = vrot.slane %v275, 1
      %v405 = vrot.slane %v276, 1
      %v406 = vsel %vm338, %v404, %v405
      %v407 = vrot.slane %v277, 1
      %v408 = vsel %vm338, %v405, %v407
      %v409 = vrot.slane %v278, 1
      %v410 = vrot.slane %v279, 1
      %v411 = vsel %vm338, %v409, %v410
      %v412 = vrot.slane %v280, 1
      %v413 = vsel %vm338, %v410, %v412
      %v414 = vrot.slane %v281, 1
      %v415 = vrot.slane %v282, 1
      %v416 = vsel %vm338, %v414, %v415
      %v417 = vrot.slane %v283, 1
      %v418 = vsel %vm338, %v415, %v417
      %419 = vrot.lane.b32.xlu0 %v341, 4
      %v420 = vpop.permute.xlu0 %419
      %421 = vrot.lane.b32.xlu0 %v343, 4
      %v422 = vpop.permute.xlu0 %421
      %423 = vrot.lane.b32.xlu0 %v346, 4
      %v424 = vpop.permute.xlu0 %423
      %425 = vrot.lane.b32.xlu0 %v348, 4
      %v426 = vpop.permute.xlu0 %425
      %427 = vrot.lane.b32.xlu0 %v351, 4
      %v428 = vpop.permute.xlu0 %427
      %429 = vrot.lane.b32.xlu0 %v353, 4
      %v430 = vpop.permute.xlu0 %429
      %431 = vrot.lane.b32.xlu0 %v356, 4
      %v432 = vpop.permute.xlu0 %431
      %433 = vrot.lane.b32.xlu0 %v358, 4
      %v434 = vpop.permute.xlu0 %433
      %435 = vrot.lane.b32.xlu0 %v361, 4
      %v436 = vpop.permute.xlu0 %435
      %437 = vrot.lane.b32.xlu0 %v363, 4
      %v438 = vpop.permute.xlu0 %437
      %439 = vrot.lane.b32.xlu0 %v366, 4
      %v440 = vpop.permute.xlu0 %439
      %441 = vrot.lane.b32.xlu0 %v368, 4
      %v442 = vpop.permute.xlu0 %441
      %443 = vrot.lane.b32.xlu0 %v371, 4
      %v444 = vpop.permute.xlu0 %443
      %445 = vrot.lane.b32.xlu0 %v373, 4
      %v446 = vpop.permute.xlu0 %445
      %447 = vrot.lane.b32.xlu0 %v376, 4
      %v448 = vpop.permute.xlu0 %447
      %449 = vrot.lane.b32.xlu0 %v378, 4
      %v450 = vpop.permute.xlu0 %449
      %451 = vrot.lane.b32.xlu0 %v381, 4
      %v452 = vpop.permute.xlu0 %451
      %453 = vrot.lane.b32.xlu0 %v383, 4
      %v454 = vpop.permute.xlu0 %453
      %455 = vrot.lane.b32.xlu0 %v386, 4
      %v456 = vpop.permute.xlu0 %455
      %457 = vrot.lane.b32.xlu0 %v388, 4
      %v458 = vpop.permute.xlu0 %457
      %459 = vrot.lane.b32.xlu0 %v391, 4
      %v460 = vpop.permute.xlu0 %459
      %461 = vrot.lane.b32.xlu0 %v393, 4
      %v462 = vpop.permute.xlu0 %461
      %463 = vrot.lane.b32.xlu0 %v396, 4
      %v464 = vpop.permute.xlu0 %463
      %465 = vrot.lane.b32.xlu0 %v398, 4
      %v466 = vpop.permute.xlu0 %465
      %467 = vrot.lane.b32.xlu0 %v401, 4
      %v468 = vpop.permute.xlu0 %467
      %469 = vrot.lane.b32.xlu0 %v403, 4
      %v470 = vpop.permute.xlu0 %469
      %471 = vrot.lane.b32.xlu0 %v406, 4
      %v472 = vpop.permute.xlu0 %471
      %473 = vrot.lane.b32.xlu0 %v408, 4
      %v474 = vpop.permute.xlu0 %473
      %475 = vrot.lane.b32.xlu0 %v411, 4
      %v476 = vpop.permute.xlu0 %475
      %477 = vrot.lane.b32.xlu0 %v413, 4
      %v478 = vpop.permute.xlu0 %477
      %479 = vrot.lane.b32.xlu0 %v416, 4
      %v480 = vpop.permute.xlu0 %479
      %481 = vrot.lane.b32.xlu0 %v418, 4
      %v482 = vpop.permute.xlu0 %481
      %vm515 = vcmask 1045504
      %v516 = vrot.slane %v236, 2
      %v517 = vrot.slane %v237, 2
      %v518 = vsel %vm515, %v516, %v517
      %v519 = vrot.slane %v238, 2
      %v520 = vsel %vm515, %v517, %v519
      %v521 = vrot.slane %v239, 2
      %v522 = vrot.slane %v240, 2
      %v523 = vsel %vm515, %v521, %v522
      %v524 = vrot.slane %v241, 2
      %v525 = vsel %vm515, %v522, %v524
      %v526 = vrot.slane %v242, 2
      %v527 = vrot.slane %v243, 2
      %v528 = vsel %vm515, %v526, %v527
      %v529 = vrot.slane %v244, 2
      %v530 = vsel %vm515, %v527, %v529
      %v531 = vrot.slane %v245, 2
      %v532 = vrot.slane %v246, 2
      %v533 = vsel %vm515, %v531, %v532
      %v534 = vrot.slane %v247, 2
      %v535 = vsel %vm515, %v532, %v534
      %v536 = vrot.slane %v248, 2
      %v537 = vrot.slane %v249, 2
      %v538 = vsel %vm515, %v536, %v537
      %v539 = vrot.slane %v250, 2
      %v540 = vsel %vm515, %v537, %v539
      %v541 = vrot.slane %v251, 2
      %v542 = vrot.slane %v252, 2
      %v543 = vsel %vm515, %v541, %v542
      %v544 = vrot.slane %v253, 2
      %v545 = vsel %vm515, %v542, %v544
      %v546 = vrot.slane %v254, 2
      %v547 = vrot.slane %v255, 2
      %v548 = vsel %vm515, %v546, %v547
      %v549 = vrot.slane %v256, 2
      %v550 = vsel %vm515, %v547, %v549
      %v551 = vrot.slane %v257, 2
      %v552 = vrot.slane %v258, 2
      %v553 = vsel %vm515, %v551, %v552
      %v554 = vrot.slane %v259, 2
      %v555 = vsel %vm515, %v552, %v554
      %v556 = vrot.slane %v260, 2
      %v557 = vrot.slane %v261, 2
      %v558 = vsel %vm515, %v556, %v557
      %v559 = vrot.slane %v262, 2
      %v560 = vsel %vm515, %v557, %v559
      %v561 = vrot.slane %v263, 2
      %v562 = vrot.slane %v264, 2
      %v563 = vsel %vm515, %v561, %v562
      %v564 = vrot.slane %v265, 2
      %v565 = vsel %vm515, %v562, %v564
      %v566 = vrot.slane %v266, 2
      %v567 = vrot.slane %v267, 2
      %v568 = vsel %vm515, %v566, %v567
      %v569 = vrot.slane %v268, 2
      %v570 = vsel %vm515, %v567, %v569
      %v571 = vrot.slane %v269, 2
      %v572 = vrot.slane %v270, 2
      %v573 = vsel %vm515, %v571, %v572
      %v574 = vrot.slane %v271, 2
      %v575 = vsel %vm515, %v572, %v574
      %v576 = vrot.slane %v272, 2
      %v577 = vrot.slane %v273, 2
      %v578 = vsel %vm515, %v576, %v577
      %v579 = vrot.slane %v274, 2
      %v580 = vsel %vm515, %v577, %v579
      %v581 = vrot.slane %v275, 2
      %v582 = vrot.slane %v276, 2
      %v583 = vsel %vm515, %v581, %v582
      %v584 = vrot.slane %v277, 2
      %v585 = vsel %vm515, %v582, %v584
      %v586 = vrot.slane %v278, 2
      %v587 = vrot.slane %v279, 2
      %v588 = vsel %vm515, %v586, %v587
      %v589 = vrot.slane %v280, 2
      %v590 = vsel %vm515, %v587, %v589
      %v591 = vrot.slane %v281, 2
      %v592 = vrot.slane %v282, 2
      %v593 = vsel %vm515, %v591, %v592
      %v594 = vrot.slane %v283, 2
      %v595 = vsel %vm515, %v592, %v594
      %596 = vrot.lane.b32.xlu0 %v518, 8
      %v597 = vpop.permute.xlu0 %596
      %598 = vrot.lane.b32.xlu0 %v520, 8
      %v599 = vpop.permute.xlu0 %598
      %600 = vrot.lane.b32.xlu0 %v523, 8
      %v601 = vpop.permute.xlu0 %600
      %602 = vrot.lane.b32.xlu0 %v525, 8
      %v603 = vpop.permute.xlu0 %602
      %604 = vrot.lane.b32.xlu0 %v528, 8
      %v605 = vpop.permute.xlu0 %604
      %606 = vrot.lane.b32.xlu0 %v530, 8
      %v607 = vpop.permute.xlu0 %606
      %608 = vrot.lane.b32.xlu0 %v533, 8
      %v609 = vpop.permute.xlu0 %608
      %610 = vrot.lane.b32.xlu0 %v535, 8
      %v611 = vpop.permute.xlu0 %610
      %612 = vrot.lane.b32.xlu0 %v538, 8
      %v613 = vpop.permute.xlu0 %612
      %614 = vrot.lane.b32.xlu0 %v540, 8
      %v615 = vpop.permute.xlu0 %614
      %616 = vrot.lane.b32.xlu0 %v543, 8
      %v617 = vpop.permute.xlu0 %616
      %618 = vrot.lane.b32.xlu0 %v545, 8
      %v619 = vpop.permute.xlu0 %618
      %620 = vrot.lane.b32.xlu0 %v548, 8
      %v621 = vpop.permute.xlu0 %620
      %622 = vrot.lane.b32.xlu0 %v550, 8
      %v623 = vpop.permute.xlu0 %622
      %624 = vrot.lane.b32.xlu0 %v553, 8
      %v625 = vpop.permute.xlu0 %624
      %626 = vrot.lane.b32.xlu0 %v555, 8
      %v627 = vpop.permute.xlu0 %626
      %628 = vrot.lane.b32.xlu0 %v558, 8
      %v629 = vpop.permute.xlu0 %628
      %630 = vrot.lane.b32.xlu0 %v560, 8
      %v631 = vpop.permute.xlu0 %630
      %632 = vrot.lane.b32.xlu0 %v563, 8
      %v633 = vpop.permute.xlu0 %632
      %634 = vrot.lane.b32.xlu0 %v565, 8
      %v635 = vpop.permute.xlu0 %634
      %636 = vrot.lane.b32.xlu0 %v568, 8
      %v637 = vpop.permute.xlu0 %636
      %638 = vrot.lane.b32.xlu0 %v570, 8
      %v639 = vpop.permute.xlu0 %638
      %640 = vrot.lane.b32.xlu0 %v573, 8
      %v641 = vpop.permute.xlu0 %640
      %642 = vrot.lane.b32.xlu0 %v575, 8
      %v643 = vpop.permute.xlu0 %642
      %644 = vrot.lane.b32.xlu0 %v578, 8
      %v645 = vpop.permute.xlu0 %644
      %646 = vrot.lane.b32.xlu0 %v580, 8
      %v647 = vpop.permute.xlu0 %646
      %648 = vrot.lane.b32.xlu0 %v583, 8
      %v649 = vpop.permute.xlu0 %648
      %650 = vrot.lane.b32.xlu0 %v585, 8
      %v651 = vpop.permute.xlu0 %650
      %652 = vrot.lane.b32.xlu0 %v588, 8
      %v653 = vpop.permute.xlu0 %652
      %654 = vrot.lane.b32.xlu0 %v590, 8
      %v655 = vpop.permute.xlu0 %654
      %656 = vrot.lane.b32.xlu0 %v593, 8
      %v657 = vpop.permute.xlu0 %656
      %658 = vrot.lane.b32.xlu0 %v595, 8
      %v659 = vpop.permute.xlu0 %658
      %694 = vrot.lane.b32.xlu0 %v239, 12
      %v695 = vpop.permute.xlu0 %694
      %696 = vrot.lane.b32.xlu0 %v240, 12
      %v697 = vpop.permute.xlu0 %696
      %698 = vrot.lane.b32.xlu0 %v242, 12
      %v699 = vpop.permute.xlu0 %698
      %700 = vrot.lane.b32.xlu0 %v243, 12
      %v701 = vpop.permute.xlu0 %700
      %702 = vrot.lane.b32.xlu0 %v245, 12
      %v703 = vpop.permute.xlu0 %702
      %704 = vrot.lane.b32.xlu0 %v246, 12
      %v705 = vpop.permute.xlu0 %704
      %706 = vrot.lane.b32.xlu0 %v248, 12
      %v707 = vpop.permute.xlu0 %706
      %708 = vrot.lane.b32.xlu0 %v249, 12
      %v709 = vpop.permute.xlu0 %708
      %710 = vrot.lane.b32.xlu0 %v251, 12
      %v711 = vpop.permute.xlu0 %710
      %712 = vrot.lane.b32.xlu0 %v252, 12
      %v713 = vpop.permute.xlu0 %712
      %714 = vrot.lane.b32.xlu0 %v254, 12
      %v715 = vpop.permute.xlu0 %714
      %716 = vrot.lane.b32.xlu0 %v255, 12
      %v717 = vpop.permute.xlu0 %716
      %718 = vrot.lane.b32.xlu0 %v257, 12
      %v719 = vpop.permute.xlu0 %718
      %720 = vrot.lane.b32.xlu0 %v258, 12
      %v721 = vpop.permute.xlu0 %720
      %722 = vrot.lane.b32.xlu0 %v260, 12
      %v723 = vpop.permute.xlu0 %722
      %724 = vrot.lane.b32.xlu0 %v261, 12
      %v725 = vpop.permute.xlu0 %724
      %726 = vrot.lane.b32.xlu0 %v263, 12
      %v727 = vpop.permute.xlu0 %726
      %728 = vrot.lane.b32.xlu0 %v264, 12
      %v729 = vpop.permute.xlu0 %728
      %730 = vrot.lane.b32.xlu0 %v266, 12
      %v731 = vpop.permute.xlu0 %730
      %732 = vrot.lane.b32.xlu0 %v267, 12
      %v733 = vpop.permute.xlu0 %732
      %734 = vrot.lane.b32.xlu0 %v269, 12
      %v735 = vpop.permute.xlu0 %734
      %736 = vrot.lane.b32.xlu0 %v270, 12
      %v737 = vpop.permute.xlu0 %736
      %738 = vrot.lane.b32.xlu0 %v272, 12
      %v739 = vpop.permute.xlu0 %738
      %740 = vrot.lane.b32.xlu0 %v273, 12
      %v741 = vpop.permute.xlu0 %740
      %742 = vrot.lane.b32.xlu0 %v275, 12
      %v743 = vpop.permute.xlu0 %742
      %744 = vrot.lane.b32.xlu0 %v276, 12
      %v745 = vpop.permute.xlu0 %744
      %746 = vrot.lane.b32.xlu0 %v278, 12
      %v747 = vpop.permute.xlu0 %746
      %748 = vrot.lane.b32.xlu0 %v279, 12
      %v749 = vpop.permute.xlu0 %748
      %750 = vrot.lane.b32.xlu0 %v281, 12
      %v751 = vpop.permute.xlu0 %750
      %752 = vrot.lane.b32.xlu0 %v282, 12
      %v753 = vpop.permute.xlu0 %752
      %754 = vrot.lane.b32.xlu0 %v284, 12
      %v755 = vpop.permute.xlu0 %754
      %756 = vrot.lane.b32.xlu0 %v285, 12
      %v757 = vpop.permute.xlu0 %756
      %v791 = vrot.slane %v284, 1
      %v792 = vrot.slane %v285, 1
      %v793 = vsel %vm338, %v791, %v792
      %v794 = vrot.slane %v286, 1
      %v795 = vsel %vm338, %v792, %v794
      %796 = vrot.lane.b32.xlu0 %v346, 16
      %v797 = vpop.permute.xlu0 %796
      %798 = vrot.lane.b32.xlu0 %v348, 16
      %v799 = vpop.permute.xlu0 %798
      %800 = vrot.lane.b32.xlu0 %v351, 16
      %v801 = vpop.permute.xlu0 %800
      %802 = vrot.lane.b32.xlu0 %v353, 16
      %v803 = vpop.permute.xlu0 %802
      %804 = vrot.lane.b32.xlu0 %v356, 16
      %v805 = vpop.permute.xlu0 %804
      %806 = vrot.lane.b32.xlu0 %v358, 16
      %v807 = vpop.permute.xlu0 %806
      %808 = vrot.lane.b32.xlu0 %v361, 16
      %v809 = vpop.permute.xlu0 %808
      %810 = vrot.lane.b32.xlu0 %v363, 16
      %v811 = vpop.permute.xlu0 %810
      %812 = vrot.lane.b32.xlu0 %v366, 16
      %v813 = vpop.permute.xlu0 %812
      %814 = vrot.lane.b32.xlu0 %v368, 16
      %v815 = vpop.permute.xlu0 %814
      %816 = vrot.lane.b32.xlu0 %v371, 16
      %v817 = vpop.permute.xlu0 %816
      %818 = vrot.lane.b32.xlu0 %v373, 16
      %v819 = vpop.permute.xlu0 %818
      %820 = vrot.lane.b32.xlu0 %v376, 16
      %v821 = vpop.permute.xlu0 %820
      %822 = vrot.lane.b32.xlu0 %v378, 16
      %v823 = vpop.permute.xlu0 %822
      %824 = vrot.lane.b32.xlu0 %v381, 16
      %v825 = vpop.permute.xlu0 %824
      %826 = vrot.lane.b32.xlu0 %v383, 16
      %v827 = vpop.permute.xlu0 %826
      %828 = vrot.lane.b32.xlu0 %v386, 16
      %v829 = vpop.permute.xlu0 %828
      %830 = vrot.lane.b32.xlu0 %v388, 16
      %v831 = vpop.permute.xlu0 %830
      %832 = vrot.lane.b32.xlu0 %v391, 16
      %v833 = vpop.permute.xlu0 %832
      %834 = vrot.lane.b32.xlu0 %v393, 16
      %v835 = vpop.permute.xlu0 %834
      %836 = vrot.lane.b32.xlu0 %v396, 16
      %v837 = vpop.permute.xlu0 %836
      %838 = vrot.lane.b32.xlu0 %v398, 16
      %v839 = vpop.permute.xlu0 %838
      %840 = vrot.lane.b32.xlu0 %v401, 16
      %v841 = vpop.permute.xlu0 %840
      %842 = vrot.lane.b32.xlu0 %v403, 16
      %v843 = vpop.permute.xlu0 %842
      %844 = vrot.lane.b32.xlu0 %v406, 16
      %v845 = vpop.permute.xlu0 %844
      %846 = vrot.lane.b32.xlu0 %v408, 16
      %v847 = vpop.permute.xlu0 %846
      %848 = vrot.lane.b32.xlu0 %v411, 16
      %v849 = vpop.permute.xlu0 %848
      %850 = vrot.lane.b32.xlu0 %v413, 16
      %v851 = vpop.permute.xlu0 %850
      %852 = vrot.lane.b32.xlu0 %v416, 16
      %v853 = vpop.permute.xlu0 %852
      %854 = vrot.lane.b32.xlu0 %v418, 16
      %v855 = vpop.permute.xlu0 %854
      %856 = vrot.lane.b32.xlu0 %v793, 16
      %v857 = vpop.permute.xlu0 %856
      %858 = vrot.lane.b32.xlu0 %v795, 16
      %v859 = vpop.permute.xlu0 %858
      %v892 = vrot.slane %v284, 2
      %v893 = vrot.slane %v285, 2
      %v894 = vsel %vm515, %v892, %v893
      %v895 = vrot.slane %v286, 2
      %v896 = vsel %vm515, %v893, %v895
      %897 = vrot.lane.b32.xlu0 %v523, 20
      %v898 = vpop.permute.xlu0 %897
      %899 = vrot.lane.b32.xlu0 %v525, 20
      %v900 = vpop.permute.xlu0 %899
      %901 = vrot.lane.b32.xlu0 %v528, 20
      %v902 = vpop.permute.xlu0 %901
      %903 = vrot.lane.b32.xlu0 %v530, 20
      %v904 = vpop.permute.xlu0 %903
      %905 = vrot.lane.b32.xlu0 %v533, 20
      %v906 = vpop.permute.xlu0 %905
      %907 = vrot.lane.b32.xlu0 %v535, 20
      %v908 = vpop.permute.xlu0 %907
      %909 = vrot.lane.b32.xlu0 %v538, 20
      %v910 = vpop.permute.xlu0 %909
      %911 = vrot.lane.b32.xlu0 %v540, 20
      %v912 = vpop.permute.xlu0 %911
      %913 = vrot.lane.b32.xlu0 %v543, 20
      %v914 = vpop.permute.xlu0 %913
      %915 = vrot.lane.b32.xlu0 %v545, 20
      %v916 = vpop.permute.xlu0 %915
      %917 = vrot.lane.b32.xlu0 %v548, 20
      %v918 = vpop.permute.xlu0 %917
      %919 = vrot.lane.b32.xlu0 %v550, 20
      %v920 = vpop.permute.xlu0 %919
      %921 = vrot.lane.b32.xlu0 %v553, 20
      %v922 = vpop.permute.xlu0 %921
      %923 = vrot.lane.b32.xlu0 %v555, 20
      %v924 = vpop.permute.xlu0 %923
      %925 = vrot.lane.b32.xlu0 %v558, 20
      %v926 = vpop.permute.xlu0 %925
      %927 = vrot.lane.b32.xlu0 %v560, 20
      %v928 = vpop.permute.xlu0 %927
      %929 = vrot.lane.b32.xlu0 %v563, 20
      %v930 = vpop.permute.xlu0 %929
      %931 = vrot.lane.b32.xlu0 %v565, 20
      %v932 = vpop.permute.xlu0 %931
      %933 = vrot.lane.b32.xlu0 %v568, 20
      %v934 = vpop.permute.xlu0 %933
      %935 = vrot.lane.b32.xlu0 %v570, 20
      %v936 = vpop.permute.xlu0 %935
      %937 = vrot.lane.b32.xlu0 %v573, 20
      %v938 = vpop.permute.xlu0 %937
      %939 = vrot.lane.b32.xlu0 %v575, 20
      %v940 = vpop.permute.xlu0 %939
      %941 = vrot.lane.b32.xlu0 %v578, 20
      %v942 = vpop.permute.xlu0 %941
      %943 = vrot.lane.b32.xlu0 %v580, 20
      %v944 = vpop.permute.xlu0 %943
      %945 = vrot.lane.b32.xlu0 %v583, 20
      %v946 = vpop.permute.xlu0 %945
      %947 = vrot.lane.b32.xlu0 %v585, 20
      %v948 = vpop.permute.xlu0 %947
      %949 = vrot.lane.b32.xlu0 %v588, 20
      %v950 = vpop.permute.xlu0 %949
      %951 = vrot.lane.b32.xlu0 %v590, 20
      %v952 = vpop.permute.xlu0 %951
      %953 = vrot.lane.b32.xlu0 %v593, 20
      %v954 = vpop.permute.xlu0 %953
      %955 = vrot.lane.b32.xlu0 %v595, 20
      %v956 = vpop.permute.xlu0 %955
      %957 = vrot.lane.b32.xlu0 %v894, 20
      %v958 = vpop.permute.xlu0 %957
      %959 = vrot.lane.b32.xlu0 %v896, 20
      %v960 = vpop.permute.xlu0 %959
      %995 = vrot.lane.b32.xlu0 %v242, 24
      %v996 = vpop.permute.xlu0 %995
      %997 = vrot.lane.b32.xlu0 %v243, 24
      %v998 = vpop.permute.xlu0 %997
      %999 = vrot.lane.b32.xlu0 %v245, 24
      %v1000 = vpop.permute.xlu0 %999
      %1001 = vrot.lane.b32.xlu0 %v246, 24
      %v1002 = vpop.permute.xlu0 %1001
      %1003 = vrot.lane.b32.xlu0 %v248, 24
      %v1004 = vpop.permute.xlu0 %1003
      %1005 = vrot.lane.b32.xlu0 %v249, 24
      %v1006 = vpop.permute.xlu0 %1005
      %1007 = vrot.lane.b32.xlu0 %v251, 24
      %v1008 = vpop.permute.xlu0 %1007
      %1009 = vrot.lane.b32.xlu0 %v252, 24
      %v1010 = vpop.permute.xlu0 %1009
      %1011 = vrot.lane.b32.xlu0 %v254, 24
      %v1012 = vpop.permute.xlu0 %1011
      %1013 = vrot.lane.b32.xlu0 %v255, 24
      %v1014 = vpop.permute.xlu0 %1013
      %1015 = vrot.lane.b32.xlu0 %v257, 24
      %v1016 = vpop.permute.xlu0 %1015
      %1017 = vrot.lane.b32.xlu0 %v258, 24
      %v1018 = vpop.permute.xlu0 %1017
      %1019 = vrot.lane.b32.xlu0 %v260, 24
      %v1020 = vpop.permute.xlu0 %1019
      %1021 = vrot.lane.b32.xlu0 %v261, 24
      %v1022 = vpop.permute.xlu0 %1021
      %1023 = vrot.lane.b32.xlu0 %v263, 24
      %v1024 = vpop.permute.xlu0 %1023
      %1025 = vrot.lane.b32.xlu0 %v264, 24
      %v1026 = vpop.permute.xlu0 %1025
      %1027 = vrot.lane.b32.xlu0 %v266, 24
      %v1028 = vpop.permute.xlu0 %1027
      %1029 = vrot.lane.b32.xlu0 %v267, 24
      %v1030 = vpop.permute.xlu0 %1029
      %1031 = vrot.lane.b32.xlu0 %v269, 24
      %v1032 = vpop.permute.xlu0 %1031
      %1033 = vrot.lane.b32.xlu0 %v270, 24
      %v1034 = vpop.permute.xlu0 %1033
      %1035 = vrot.lane.b32.xlu0 %v272, 24
      %v1036 = vpop.permute.xlu0 %1035
      %1037 = vrot.lane.b32.xlu0 %v273, 24
      %v1038 = vpop.permute.xlu0 %1037
      %1039 = vrot.lane.b32.xlu0 %v275, 24
      %v1040 = vpop.permute.xlu0 %1039
      %1041 = vrot.lane.b32.xlu0 %v276, 24
      %v1042 = vpop.permute.xlu0 %1041
      %1043 = vrot.lane.b32.xlu0 %v278, 24
      %v1044 = vpop.permute.xlu0 %1043
      %1045 = vrot.lane.b32.xlu0 %v279, 24
      %v1046 = vpop.permute.xlu0 %1045
      %1047 = vrot.lane.b32.xlu0 %v281, 24
      %v1048 = vpop.permute.xlu0 %1047
      %1049 = vrot.lane.b32.xlu0 %v282, 24
      %v1050 = vpop.permute.xlu0 %1049
      %1051 = vrot.lane.b32.xlu0 %v284, 24
      %v1052 = vpop.permute.xlu0 %1051
      %1053 = vrot.lane.b32.xlu0 %v285, 24
      %v1054 = vpop.permute.xlu0 %1053
      %1055 = vrot.lane.b32.xlu0 %v287, 24
      %v1056 = vpop.permute.xlu0 %1055
      %1057 = vrot.lane.b32.xlu0 %v288, 24
      %v1058 = vpop.permute.xlu0 %1057
      %v1092 = vrot.slane %v287, 1
      %v1093 = vrot.slane %v288, 1
      %v1094 = vsel %vm338, %v1092, %v1093
      %v1095 = vrot.slane %v289, 1
      %v1096 = vsel %vm338, %v1093, %v1095
      %1097 = vrot.lane.b32.xlu0 %v351, 28
      %v1098 = vpop.permute.xlu0 %1097
      %1099 = vrot.lane.b32.xlu0 %v353, 28
      %v1100 = vpop.permute.xlu0 %1099
      %1101 = vrot.lane.b32.xlu0 %v356, 28
      %v1102 = vpop.permute.xlu0 %1101
      %1103 = vrot.lane.b32.xlu0 %v358, 28
      %v1104 = vpop.permute.xlu0 %1103
      %1105 = vrot.lane.b32.xlu0 %v361, 28
      %v1106 = vpop.permute.xlu0 %1105
      %1107 = vrot.lane.b32.xlu0 %v363, 28
      %v1108 = vpop.permute.xlu0 %1107
      %1109 = vrot.lane.b32.xlu0 %v366, 28
      %v1110 = vpop.permute.xlu0 %1109
      %1111 = vrot.lane.b32.xlu0 %v368, 28
      %v1112 = vpop.permute.xlu0 %1111
      %1113 = vrot.lane.b32.xlu0 %v371, 28
      %v1114 = vpop.permute.xlu0 %1113
      %1115 = vrot.lane.b32.xlu0 %v373, 28
      %v1116 = vpop.permute.xlu0 %1115
      %1117 = vrot.lane.b32.xlu0 %v376, 28
      %v1118 = vpop.permute.xlu0 %1117
      %1119 = vrot.lane.b32.xlu0 %v378, 28
      %v1120 = vpop.permute.xlu0 %1119
      %1121 = vrot.lane.b32.xlu0 %v381, 28
      %v1122 = vpop.permute.xlu0 %1121
      %1123 = vrot.lane.b32.xlu0 %v383, 28
      %v1124 = vpop.permute.xlu0 %1123
      %1125 = vrot.lane.b32.xlu0 %v386, 28
      %v1126 = vpop.permute.xlu0 %1125
      %1127 = vrot.lane.b32.xlu0 %v388, 28
      %v1128 = vpop.permute.xlu0 %1127
      %1129 = vrot.lane.b32.xlu0 %v391, 28
      %v1130 = vpop.permute.xlu0 %1129
      %1131 = vrot.lane.b32.xlu0 %v393, 28
      %v1132 = vpop.permute.xlu0 %1131
      %1133 = vrot.lane.b32.xlu0 %v396, 28
      %v1134 = vpop.permute.xlu0 %1133
      %1135 = vrot.lane.b32.xlu0 %v398, 28
      %v1136 = vpop.permute.xlu0 %1135
      %1137 = vrot.lane.b32.xlu0 %v401, 28
      %v1138 = vpop.permute.xlu0 %1137
      %1139 = vrot.lane.b32.xlu0 %v403, 28
      %v1140 = vpop.permute.xlu0 %1139
      %1141 = vrot.lane.b32.xlu0 %v406, 28
      %v1142 = vpop.permute.xlu0 %1141
      %1143 = vrot.lane.b32.xlu0 %v408, 28
      %v1144 = vpop.permute.xlu0 %1143
      %1145 = vrot.lane.b32.xlu0 %v411, 28
      %v1146 = vpop.permute.xlu0 %1145
      %1147 = vrot.lane.b32.xlu0 %v413, 28
      %v1148 = vpop.permute.xlu0 %1147
      %1149 = vrot.lane.b32.xlu0 %v416, 28
      %v1150 = vpop.permute.xlu0 %1149
      %1151 = vrot.lane.b32.xlu0 %v418, 28
      %v1152 = vpop.permute.xlu0 %1151
      %1153 = vrot.lane.b32.xlu0 %v793, 28
      %v1154 = vpop.permute.xlu0 %1153
      %1155 = vrot.lane.b32.xlu0 %v795, 28
      %v1156 = vpop.permute.xlu0 %1155
      %1157 = vrot.lane.b32.xlu0 %v1094, 28
      %v1158 = vpop.permute.xlu0 %1157
      %1159 = vrot.lane.b32.xlu0 %v1096, 28
      %v1160 = vpop.permute.xlu0 %1159
      %v1193 = vrot.slane %v287, 2
      %v1194 = vrot.slane %v288, 2
      %v1195 = vsel %vm515, %v1193, %v1194
      %v1196 = vrot.slane %v289, 2
      %v1197 = vsel %vm515, %v1194, %v1196
      %1198 = vrot.lane.b32.xlu0 %v528, 32
      %v1199 = vpop.permute.xlu0 %1198
      %1200 = vrot.lane.b32.xlu0 %v530, 32
      %v1201 = vpop.permute.xlu0 %1200
      %1202 = vrot.lane.b32.xlu0 %v533, 32
      %v1203 = vpop.permute.xlu0 %1202
      %1204 = vrot.lane.b32.xlu0 %v535, 32
      %v1205 = vpop.permute.xlu0 %1204
      %1206 = vrot.lane.b32.xlu0 %v538, 32
      %v1207 = vpop.permute.xlu0 %1206
      %1208 = vrot.lane.b32.xlu0 %v540, 32
      %v1209 = vpop.permute.xlu0 %1208
      %1210 = vrot.lane.b32.xlu0 %v543, 32
      %v1211 = vpop.permute.xlu0 %1210
      %1212 = vrot.lane.b32.xlu0 %v545, 32
      %v1213 = vpop.permute.xlu0 %1212
      %1214 = vrot.lane.b32.xlu0 %v548, 32
      %v1215 = vpop.permute.xlu0 %1214
      %1216 = vrot.lane.b32.xlu0 %v550, 32
      %v1217 = vpop.permute.xlu0 %1216
      %1218 = vrot.lane.b32.xlu0 %v553, 32
      %v1219 = vpop.permute.xlu0 %1218
      %1220 = vrot.lane.b32.xlu0 %v555, 32
      %v1221 = vpop.permute.xlu0 %1220
      %1222 = vrot.lane.b32.xlu0 %v558, 32
      %v1223 = vpop.permute.xlu0 %1222
      %1224 = vrot.lane.b32.xlu0 %v560, 32
      %v1225 = vpop.permute.xlu0 %1224
      %1226 = vrot.lane.b32.xlu0 %v563, 32
      %v1227 = vpop.permute.xlu0 %1226
      %1228 = vrot.lane.b32.xlu0 %v565, 32
      %v1229 = vpop.permute.xlu0 %1228
      %1230 = vrot.lane.b32.xlu0 %v568, 32
      %v1231 = vpop.permute.xlu0 %1230
      %1232 = vrot.lane.b32.xlu0 %v570, 32
      %v1233 = vpop.permute.xlu0 %1232
      %1234 = vrot.lane.b32.xlu0 %v573, 32
      %v1235 = vpop.permute.xlu0 %1234
      %1236 = vrot.lane.b32.xlu0 %v575, 32
      %v1237 = vpop.permute.xlu0 %1236
      %1238 = vrot.lane.b32.xlu0 %v578, 32
      %v1239 = vpop.permute.xlu0 %1238
      %1240 = vrot.lane.b32.xlu0 %v580, 32
      %v1241 = vpop.permute.xlu0 %1240
      %1242 = vrot.lane.b32.xlu0 %v583, 32
      %v1243 = vpop.permute.xlu0 %1242
      %1244 = vrot.lane.b32.xlu0 %v585, 32
      %v1245 = vpop.permute.xlu0 %1244
      %1246 = vrot.lane.b32.xlu0 %v588, 32
      %v1247 = vpop.permute.xlu0 %1246
      %1248 = vrot.lane.b32.xlu0 %v590, 32
      %v1249 = vpop.permute.xlu0 %1248
      %1250 = vrot.lane.b32.xlu0 %v593, 32
      %v1251 = vpop.permute.xlu0 %1250
      %1252 = vrot.lane.b32.xlu0 %v595, 32
      %v1253 = vpop.permute.xlu0 %1252
      %1254 = vrot.lane.b32.xlu0 %v894, 32
      %v1255 = vpop.permute.xlu0 %1254
      %1256 = vrot.lane.b32.xlu0 %v896, 32
      %v1257 = vpop.permute.xlu0 %1256
      %1258 = vrot.lane.b32.xlu0 %v1195, 32
      %v1259 = vpop.permute.xlu0 %1258
      %1260 = vrot.lane.b32.xlu0 %v1197, 32
      %v1261 = vpop.permute.xlu0 %1260
      %vm1294 = vcmask 31744
      %v1295 = vsel %vm1294, %v236, %v420
      %v1296 = vsel %vm1294, %v237, %v422
      %v1297 = vsel %vm1294, %v239, %v424
      %v1298 = vsel %vm1294, %v240, %v426
      %v1299 = vsel %vm1294, %v242, %v428
      %v1300 = vsel %vm1294, %v243, %v430
      %v1301 = vsel %vm1294, %v245, %v432
      %v1302 = vsel %vm1294, %v246, %v434
      %v1303 = vsel %vm1294, %v248, %v436
      %v1304 = vsel %vm1294, %v249, %v438
      %v1305 = vsel %vm1294, %v251, %v440
      %v1306 = vsel %vm1294, %v252, %v442
      %v1307 = vsel %vm1294, %v254, %v444
      %v1308 = vsel %vm1294, %v255, %v446
      %v1309 = vsel %vm1294, %v257, %v448
      %v1310 = vsel %vm1294, %v258, %v450
      %v1311 = vsel %vm1294, %v260, %v452
      %v1312 = vsel %vm1294, %v261, %v454
      %v1313 = vsel %vm1294, %v263, %v456
      %v1314 = vsel %vm1294, %v264, %v458
      %v1315 = vsel %vm1294, %v266, %v460
      %v1316 = vsel %vm1294, %v267, %v462
      %v1317 = vsel %vm1294, %v269, %v464
      %v1318 = vsel %vm1294, %v270, %v466
      %v1319 = vsel %vm1294, %v272, %v468
      %v1320 = vsel %vm1294, %v273, %v470
      %v1321 = vsel %vm1294, %v275, %v472
      %v1322 = vsel %vm1294, %v276, %v474
      %v1323 = vsel %vm1294, %v278, %v476
      %v1324 = vsel %vm1294, %v279, %v478
      %v1325 = vsel %vm1294, %v281, %v480
      %v1326 = vsel %vm1294, %v282, %v482
      %vm1327 = vcmask 64512
      %v1328 = vsel %vm1327, %v1295, %v597
      %v1329 = vsel %vm1327, %v1296, %v599
      %v1330 = vsel %vm1327, %v1297, %v601
      %v1331 = vsel %vm1327, %v1298, %v603
      %v1332 = vsel %vm1327, %v1299, %v605
      %v1333 = vsel %vm1327, %v1300, %v607
      %v1334 = vsel %vm1327, %v1301, %v609
      %v1335 = vsel %vm1327, %v1302, %v611
      %v1336 = vsel %vm1327, %v1303, %v613
      %v1337 = vsel %vm1327, %v1304, %v615
      %v1338 = vsel %vm1327, %v1305, %v617
      %v1339 = vsel %vm1327, %v1306, %v619
      %v1340 = vsel %vm1327, %v1307, %v621
      %v1341 = vsel %vm1327, %v1308, %v623
      %v1342 = vsel %vm1327, %v1309, %v625
      %v1343 = vsel %vm1327, %v1310, %v627
      %v1344 = vsel %vm1327, %v1311, %v629
      %v1345 = vsel %vm1327, %v1312, %v631
      %v1346 = vsel %vm1327, %v1313, %v633
      %v1347 = vsel %vm1327, %v1314, %v635
      %v1348 = vsel %vm1327, %v1315, %v637
      %v1349 = vsel %vm1327, %v1316, %v639
      %v1350 = vsel %vm1327, %v1317, %v641
      %v1351 = vsel %vm1327, %v1318, %v643
      %v1352 = vsel %vm1327, %v1319, %v645
      %v1353 = vsel %vm1327, %v1320, %v647
      %v1354 = vsel %vm1327, %v1321, %v649
      %v1355 = vsel %vm1327, %v1322, %v651
      %v1356 = vsel %vm1327, %v1323, %v653
      %v1357 = vsel %vm1327, %v1324, %v655
      %v1358 = vsel %vm1327, %v1325, %v657
      %v1359 = vsel %vm1327, %v1326, %v659
      %vm1360 = vcmask 97280
      %v1361 = vsel %vm1360, %v1328, %v695
      %v1362 = vsel %vm1360, %v1329, %v697
      %v1363 = vsel %vm1360, %v1330, %v699
      %v1364 = vsel %vm1360, %v1331, %v701
      %v1365 = vsel %vm1360, %v1332, %v703
      %v1366 = vsel %vm1360, %v1333, %v705
      %v1367 = vsel %vm1360, %v1334, %v707
      %v1368 = vsel %vm1360, %v1335, %v709
      %v1369 = vsel %vm1360, %v1336, %v711
      %v1370 = vsel %vm1360, %v1337, %v713
      %v1371 = vsel %vm1360, %v1338, %v715
      %v1372 = vsel %vm1360, %v1339, %v717
      %v1373 = vsel %vm1360, %v1340, %v719
      %v1374 = vsel %vm1360, %v1341, %v721
      %v1375 = vsel %vm1360, %v1342, %v723
      %v1376 = vsel %vm1360, %v1343, %v725
      %v1377 = vsel %vm1360, %v1344, %v727
      %v1378 = vsel %vm1360, %v1345, %v729
      %v1379 = vsel %vm1360, %v1346, %v731
      %v1380 = vsel %vm1360, %v1347, %v733
      %v1381 = vsel %vm1360, %v1348, %v735
      %v1382 = vsel %vm1360, %v1349, %v737
      %v1383 = vsel %vm1360, %v1350, %v739
      %v1384 = vsel %vm1360, %v1351, %v741
      %v1385 = vsel %vm1360, %v1352, %v743
      %v1386 = vsel %vm1360, %v1353, %v745
      %v1387 = vsel %vm1360, %v1354, %v747
      %v1388 = vsel %vm1360, %v1355, %v749
      %v1389 = vsel %vm1360, %v1356, %v751
      %v1390 = vsel %vm1360, %v1357, %v753
      %v1391 = vsel %vm1360, %v1358, %v755
      %v1392 = vsel %vm1360, %v1359, %v757
      %vm1393 = vcmask 130048
      %v1394 = vsel %vm1393, %v1361, %v797
      %v1395 = vsel %vm1393, %v1362, %v799
      %v1396 = vsel %vm1393, %v1363, %v801
      %v1397 = vsel %vm1393, %v1364, %v803
      %v1398 = vsel %vm1393, %v1365, %v805
      %v1399 = vsel %vm1393, %v1366, %v807
      %v1400 = vsel %vm1393, %v1367, %v809
      %v1401 = vsel %vm1393, %v1368, %v811
      %v1402 = vsel %vm1393, %v1369, %v813
      %v1403 = vsel %vm1393, %v1370, %v815
      %v1404 = vsel %vm1393, %v1371, %v817
      %v1405 = vsel %vm1393, %v1372, %v819
      %v1406 = vsel %vm1393, %v1373, %v821
      %v1407 = vsel %vm1393, %v1374, %v823
      %v1408 = vsel %vm1393, %v1375, %v825
      %v1409 = vsel %vm1393, %v1376, %v827
      %v1410 = vsel %vm1393, %v1377, %v829
      %v1411 = vsel %vm1393, %v1378, %v831
      %v1412 = vsel %vm1393, %v1379, %v833
      %v1413 = vsel %vm1393, %v1380, %v835
      %v1414 = vsel %vm1393, %v1381, %v837
      %v1415 = vsel %vm1393, %v1382, %v839
      %v1416 = vsel %vm1393, %v1383, %v841
      %v1417 = vsel %vm1393, %v1384, %v843
      %v1418 = vsel %vm1393, %v1385, %v845
      %v1419 = vsel %vm1393, %v1386, %v847
      %v1420 = vsel %vm1393, %v1387, %v849
      %v1421 = vsel %vm1393, %v1388, %v851
      %v1422 = vsel %vm1393, %v1389, %v853
      %v1423 = vsel %vm1393, %v1390, %v855
      %v1424 = vsel %vm1393, %v1391, %v857
      %v1425 = vsel %vm1393, %v1392, %v859
      %vm1426 = vcmask 162816
      %v1427 = vsel %vm1426, %v1394, %v898
      %v1428 = vsel %vm1426, %v1395, %v900
      %v1429 = vsel %vm1426, %v1396, %v902
      %v1430 = vsel %vm1426, %v1397, %v904
      %v1431 = vsel %vm1426, %v1398, %v906
      %v1432 = vsel %vm1426, %v1399, %v908
      %v1433 = vsel %vm1426, %v1400, %v910
      %v1434 = vsel %vm1426, %v1401, %v912
      %v1435 = vsel %vm1426, %v1402, %v914
      %v1436 = vsel %vm1426, %v1403, %v916
      %v1437 = vsel %vm1426, %v1404, %v918
      %v1438 = vsel %vm1426, %v1405, %v920
      %v1439 = vsel %vm1426, %v1406, %v922
      %v1440 = vsel %vm1426, %v1407, %v924
      %v1441 = vsel %vm1426, %v1408, %v926
      %v1442 = vsel %vm1426, %v1409, %v928
      %v1443 = vsel %vm1426, %v1410, %v930
      %v1444 = vsel %vm1426, %v1411, %v932
      %v1445 = vsel %vm1426, %v1412, %v934
      %v1446 = vsel %vm1426, %v1413, %v936
      %v1447 = vsel %vm1426, %v1414, %v938
      %v1448 = vsel %vm1426, %v1415, %v940
      %v1449 = vsel %vm1426, %v1416, %v942
      %v1450 = vsel %vm1426, %v1417, %v944
      %v1451 = vsel %vm1426, %v1418, %v946
      %v1452 = vsel %vm1426, %v1419, %v948
      %v1453 = vsel %vm1426, %v1420, %v950
      %v1454 = vsel %vm1426, %v1421, %v952
      %v1455 = vsel %vm1426, %v1422, %v954
      %v1456 = vsel %vm1426, %v1423, %v956
      %v1457 = vsel %vm1426, %v1424, %v958
      %v1458 = vsel %vm1426, %v1425, %v960
      %vm1459 = vcmask 195584
      %v1460 = vsel %vm1459, %v1427, %v996
      %v1461 = vsel %vm1459, %v1428, %v998
      %v1462 = vsel %vm1459, %v1429, %v1000
      %v1463 = vsel %vm1459, %v1430, %v1002
      %v1464 = vsel %vm1459, %v1431, %v1004
      %v1465 = vsel %vm1459, %v1432, %v1006
      %v1466 = vsel %vm1459, %v1433, %v1008
      %v1467 = vsel %vm1459, %v1434, %v1010
      %v1468 = vsel %vm1459, %v1435, %v1012
      %v1469 = vsel %vm1459, %v1436, %v1014
      %v1470 = vsel %vm1459, %v1437, %v1016
      %v1471 = vsel %vm1459, %v1438, %v1018
      %v1472 = vsel %vm1459, %v1439, %v1020
      %v1473 = vsel %vm1459, %v1440, %v1022
      %v1474 = vsel %vm1459, %v1441, %v1024
      %v1475 = vsel %vm1459, %v1442, %v1026
      %v1476 = vsel %vm1459, %v1443, %v1028
      %v1477 = vsel %vm1459, %v1444, %v1030
      %v1478 = vsel %vm1459, %v1445, %v1032
      %v1479 = vsel %vm1459, %v1446, %v1034
      %v1480 = vsel %vm1459, %v1447, %v1036
      %v1481 = vsel %vm1459, %v1448, %v1038
      %v1482 = vsel %vm1459, %v1449, %v1040
      %v1483 = vsel %vm1459, %v1450, %v1042
      %v1484 = vsel %vm1459, %v1451, %v1044
      %v1485 = vsel %vm1459, %v1452, %v1046
      %v1486 = vsel %vm1459, %v1453, %v1048
      %v1487 = vsel %vm1459, %v1454, %v1050
      %v1488 = vsel %vm1459, %v1455, %v1052
      %v1489 = vsel %vm1459, %v1456, %v1054
      %v1490 = vsel %vm1459, %v1457, %v1056
      %v1491 = vsel %vm1459, %v1458, %v1058
      %vm1492 = vcmask 228352
      %v1493 = vsel %vm1492, %v1460, %v1098
      %v1494 = vsel %vm1492, %v1461, %v1100
      %v1495 = vsel %vm1492, %v1462, %v1102
      %v1496 = vsel %vm1492, %v1463, %v1104
      %v1497 = vsel %vm1492, %v1464, %v1106
      %v1498 = vsel %vm1492, %v1465, %v1108
      %v1499 = vsel %vm1492, %v1466, %v1110
      %v1500 = vsel %vm1492, %v1467, %v1112
      %v1501 = vsel %vm1492, %v1468, %v1114
      %v1502 = vsel %vm1492, %v1469, %v1116
      %v1503 = vsel %vm1492, %v1470, %v1118
      %v1504 = vsel %vm1492, %v1471, %v1120
      %v1505 = vsel %vm1492, %v1472, %v1122
      %v1506 = vsel %vm1492, %v1473, %v1124
      %v1507 = vsel %vm1492, %v1474, %v1126
      %v1508 = vsel %vm1492, %v1475, %v1128
      %v1509 = vsel %vm1492, %v1476, %v1130
      %v1510 = vsel %vm1492, %v1477, %v1132
      %v1511 = vsel %vm1492, %v1478, %v1134
      %v1512 = vsel %vm1492, %v1479, %v1136
      %v1513 = vsel %vm1492, %v1480, %v1138
      %v1514 = vsel %vm1492, %v1481, %v1140
      %v1515 = vsel %vm1492, %v1482, %v1142
      %v1516 = vsel %vm1492, %v1483, %v1144
      %v1517 = vsel %vm1492, %v1484, %v1146
      %v1518 = vsel %vm1492, %v1485, %v1148
      %v1519 = vsel %vm1492, %v1486, %v1150
      %v1520 = vsel %vm1492, %v1487, %v1152
      %v1521 = vsel %vm1492, %v1488, %v1154
      %v1522 = vsel %vm1492, %v1489, %v1156
      %v1523 = vsel %vm1492, %v1490, %v1158
      %v1524 = vsel %vm1492, %v1491, %v1160
      %vm1525 = vcmask 261120
      %v1526 = vsel %vm1525, %v1493, %v1199
      %v1527 = vsel %vm1525, %v1494, %v1201
      %v1528 = vsel %vm1525, %v1495, %v1203
      %v1529 = vsel %vm1525, %v1496, %v1205
      %v1530 = vsel %vm1525, %v1497, %v1207
      %v1531 = vsel %vm1525, %v1498, %v1209
      %v1532 = vsel %vm1525, %v1499, %v1211
      %v1533 = vsel %vm1525, %v1500, %v1213
      %v1534 = vsel %vm1525, %v1501, %v1215
      %v1535 = vsel %vm1525, %v1502, %v1217
      %v1536 = vsel %vm1525, %v1503, %v1219
      %v1537 = vsel %vm1525, %v1504, %v1221
      %v1538 = vsel %vm1525, %v1505, %v1223
      %v1539 = vsel %vm1525, %v1506, %v1225
      %v1540 = vsel %vm1525, %v1507, %v1227
      %v1541 = vsel %vm1525, %v1508, %v1229
      %v1542 = vsel %vm1525, %v1509, %v1231
      %v1543 = vsel %vm1525, %v1510, %v1233
      %v1544 = vsel %vm1525, %v1511, %v1235
      %v1545 = vsel %vm1525, %v1512, %v1237
      %v1546 = vsel %vm1525, %v1513, %v1239
      %v1547 = vsel %vm1525, %v1514, %v1241
      %v1548 = vsel %vm1525, %v1515, %v1243
      %v1549 = vsel %vm1525, %v1516, %v1245
      %v1550 = vsel %vm1525, %v1517, %v1247
      %v1551 = vsel %vm1525, %v1518, %v1249
      %v1552 = vsel %vm1525, %v1519, %v1251
      %v1553 = vsel %vm1525, %v1520, %v1253
      %v1554 = vsel %vm1525, %v1521, %v1255
      %v1555 = vsel %vm1525, %v1522, %v1257
      %v1556 = vsel %vm1525, %v1523, %v1259
      %v1557 = vsel %vm1525, %v1524, %v1261
      %v1558 = vld [vmem:[%s3] sm:$0xff]
      %v1559 = vld [vmem:[%s3 + $0x8] sm:$0xff]
      %v1560 = vld [vmem:[%s3 + $0x10] sm:$0xff]
      %v1561 = vld [vmem:[%s3 + $0x18] sm:$0xff]
      %v1562 = vld [vmem:[%s3 + $0x20] sm:$0xf]
      %vm1563 = vcmask 293888
      %v1565 = vsel %vm1563, %v1526, 0
      %v1568 = vsel %vm1563, %v1527, 0
      %v1571 = vsel %vm1563, %v1528, 0
      %v1574 = vsel %vm1563, %v1529, 0
      %v1577 = vsel %vm1563, %v1530, 0
      %v1580 = vsel %vm1563, %v1531, 0
      %v1583 = vsel %vm1563, %v1532, 0
      %v1586 = vsel %vm1563, %v1533, 0
      %v1589 = vsel %vm1563, %v1534, 0
      %v1592 = vsel %vm1563, %v1535, 0
      %v1595 = vsel %vm1563, %v1536, 0
      %v1598 = vsel %vm1563, %v1537, 0
      %v1601 = vsel %vm1563, %v1538, 0
      %v1604 = vsel %vm1563, %v1539, 0
      %v1607 = vsel %vm1563, %v1540, 0
      %v1610 = vsel %vm1563, %v1541, 0
      %v1613 = vsel %vm1563, %v1542, 0
      %v1616 = vsel %vm1563, %v1543, 0
      %v1619 = vsel %vm1563, %v1544, 0
      %v1622 = vsel %vm1563, %v1545, 0
      %v1625 = vsel %vm1563, %v1546, 0
      %v1628 = vsel %vm1563, %v1547, 0
      %v1631 = vsel %vm1563, %v1548, 0
      %v1634 = vsel %vm1563, %v1549, 0
      %v1637 = vsel %vm1563, %v1550, 0
      %v1640 = vsel %vm1563, %v1551, 0
      %v1643 = vsel %vm1563, %v1552, 0
      %v1646 = vsel %vm1563, %v1553, 0
      %v1649 = vsel %vm1563, %v1554, 0
      %v1652 = vsel %vm1563, %v1555, 0
      %v1655 = vsel %vm1563, %v1556, 0
      %v1658 = vsel %vm1563, %v1557, 0
      %vm1660 = vcmask 1043456
      %v1662 = vsel %vm1660, %v1562, 0
      %1664 = vmatpush.msra.mxu0 0.0
      %1665 = vmatpush.msra.mxu0 0.0
      %1666 = vmatpush.msra.mxu0 0.0
      %1667 = vmatpush.msra.mxu0 0.0
      %1668 = vmatpush.msra.mxu0 0.0
      %1669 = vmatpush.msra.mxu0 0.0
      %1670 = vmatpush.msra.mxu0 0.0
      %1671 = vmatpush.msra.mxu0 0.0
      %1672 = vmatpush.msra.mxu0 0.0
      %1673 = vmatpush.msra.mxu0 0.0
      %1674 = vmatpush.msra.mxu0 0.0
      %1675 = vmatpush.msra.mxu0 %v1662
      %1676 = vmatpush.msra.mxu0 %v1561
      %1677 = vmatpush.msra.mxu0 %v1560
      %1678 = vmatpush.msra.mxu0 %v1559
      %1679 = vmatpush.msra.mxu0 %v1558
      %1680 = vmatmul.f32.gmra.mxu0 %v1565
      %v1681 = vpop.f32.mrf.mxu0
      %v1682 = vadd.f32 0.0, %v1681
      %1683 = vmatmul.f32.gmra.mxu0 %v1568
      %v1684 = vpop.f32.mrf.mxu0
      %v1685 = vadd.f32 0.0, %v1684
      %1686 = vmatmul.f32.gmra.mxu0 %v1571
      %v1687 = vpop.f32.mrf.mxu0
      %v1688 = vadd.f32 0.0, %v1687
      %1689 = vmatmul.f32.gmra.mxu0 %v1574
      %v1690 = vpop.f32.mrf.mxu0
      %v1691 = vadd.f32 0.0, %v1690
      %1692 = vmatmul.f32.gmra.mxu0 %v1577
      %v1693 = vpop.f32.mrf.mxu0
      %v1694 = vadd.f32 0.0, %v1693
      %1695 = vmatmul.f32.gmra.mxu0 %v1580
      %v1696 = vpop.f32.mrf.mxu0
      %v1697 = vadd.f32 0.0, %v1696
      %1698 = vmatmul.f32.gmra.mxu0 %v1583
      %v1699 = vpop.f32.mrf.mxu0
      %v1700 = vadd.f32 0.0, %v1699
      %1701 = vmatmul.f32.gmra.mxu0 %v1586
      %v1702 = vpop.f32.mrf.mxu0
      %v1703 = vadd.f32 0.0, %v1702
      %1704 = vmatmul.f32.gmra.mxu0 %v1589
      %v1705 = vpop.f32.mrf.mxu0
      %v1706 = vadd.f32 0.0, %v1705
      %1707 = vmatmul.f32.gmra.mxu0 %v1592
      %v1708 = vpop.f32.mrf.mxu0
      %v1709 = vadd.f32 0.0, %v1708
      %1710 = vmatmul.f32.gmra.mxu0 %v1595
      %v1711 = vpop.f32.mrf.mxu0
      %v1712 = vadd.f32 0.0, %v1711
      %1713 = vmatmul.f32.gmra.mxu0 %v1598
      %v1714 = vpop.f32.mrf.mxu0
      %v1715 = vadd.f32 0.0, %v1714
      %1716 = vmatmul.f32.gmra.mxu0 %v1601
      %v1717 = vpop.f32.mrf.mxu0
      %v1718 = vadd.f32 0.0, %v1717
      %1719 = vmatmul.f32.gmra.mxu0 %v1604
      %v1720 = vpop.f32.mrf.mxu0
      %v1721 = vadd.f32 0.0, %v1720
      %1722 = vmatmul.f32.gmra.mxu0 %v1607
      %v1723 = vpop.f32.mrf.mxu0
      %v1724 = vadd.f32 0.0, %v1723
      %1725 = vmatmul.f32.gmra.mxu0 %v1610
      %v1726 = vpop.f32.mrf.mxu0
      %v1727 = vadd.f32 0.0, %v1726
      %1728 = vmatmul.f32.gmra.mxu0 %v1613
      %v1729 = vpop.f32.mrf.mxu0
      %v1730 = vadd.f32 0.0, %v1729
      %1731 = vmatmul.f32.gmra.mxu0 %v1616
      %v1732 = vpop.f32.mrf.mxu0
      %v1733 = vadd.f32 0.0, %v1732
      %1734 = vmatmul.f32.gmra.mxu0 %v1619
      %v1735 = vpop.f32.mrf.mxu0
      %v1736 = vadd.f32 0.0, %v1735
      %1737 = vmatmul.f32.gmra.mxu0 %v1622
      %v1738 = vpop.f32.mrf.mxu0
      %v1739 = vadd.f32 0.0, %v1738
      %1740 = vmatmul.f32.gmra.mxu0 %v1625
      %v1741 = vpop.f32.mrf.mxu0
      %v1742 = vadd.f32 0.0, %v1741
      %1743 = vmatmul.f32.gmra.mxu0 %v1628
      %v1744 = vpop.f32.mrf.mxu0
      %v1745 = vadd.f32 0.0, %v1744
      %1746 = vmatmul.f32.gmra.mxu0 %v1631
      %v1747 = vpop.f32.mrf.mxu0
      %v1748 = vadd.f32 0.0, %v1747
      %1749 = vmatmul.f32.gmra.mxu0 %v1634
      %v1750 = vpop.f32.mrf.mxu0
      %v1751 = vadd.f32 0.0, %v1750
      %1752 = vmatmul.f32.gmra.mxu0 %v1637
      %v1753 = vpop.f32.mrf.mxu0
      %v1754 = vadd.f32 0.0, %v1753
      %1755 = vmatmul.f32.gmra.mxu0 %v1640
      %v1756 = vpop.f32.mrf.mxu0
      %v1757 = vadd.f32 0.0, %v1756
      %1758 = vmatmul.f32.gmra.mxu0 %v1643
      %v1759 = vpop.f32.mrf.mxu0
      %v1760 = vadd.f32 0.0, %v1759
      %1761 = vmatmul.f32.gmra.mxu0 %v1646
      %v1762 = vpop.f32.mrf.mxu0
      %v1763 = vadd.f32 0.0, %v1762
      %1764 = vmatmul.f32.gmra.mxu0 %v1649
      %v1765 = vpop.f32.mrf.mxu0
      %v1766 = vadd.f32 0.0, %v1765
      %1767 = vmatmul.f32.gmra.mxu0 %v1652
      %v1768 = vpop.f32.mrf.mxu0
      %v1769 = vadd.f32 0.0, %v1768
      %1770 = vmatmul.f32.gmra.mxu0 %v1655
      %v1771 = vpop.f32.mrf.mxu0
      %v1772 = vadd.f32 0.0, %v1771
      %1773 = vmatmul.f32.gmra.mxu0 %v1658
      %v1774 = vpop.f32.mrf.mxu0
      %v1775 = vadd.f32 0.0, %v1774
      %1776 = vdwg.mxu0
      %1777 = vst.msk [vmem:[%s231] sm:$0xff] %vm1327, %v1682
      %1778 = vst.msk [vmem:[%s231 + $0x8] sm:$0xff] %vm1327, %v1685
      %1779 = vst.msk [vmem:[%s231 + $0x10] sm:$0xff] %vm1327, %v1688
      %1780 = vst.msk [vmem:[%s231 + $0x18] sm:$0xff] %vm1327, %v1691
      %1781 = vst.msk [vmem:[%s231 + $0x20] sm:$0xff] %vm1327, %v1694
      %1782 = vst.msk [vmem:[%s231 + $0x28] sm:$0xff] %vm1327, %v1697
      %1783 = vst.msk [vmem:[%s231 + $0x30] sm:$0xff] %vm1327, %v1700
      %1784 = vst.msk [vmem:[%s231 + $0x38] sm:$0xff] %vm1327, %v1703
      %1785 = vst.msk [vmem:[%s231 + $0x40] sm:$0xff] %vm1327, %v1706
      %1786 = vst.msk [vmem:[%s231 + $0x48] sm:$0xff] %vm1327, %v1709
      %1787 = vst.msk [vmem:[%s231 + $0x50] sm:$0xff] %vm1327, %v1712
      %1788 = vst.msk [vmem:[%s231 + $0x58] sm:$0xff] %vm1327, %v1715
      %1789 = vst.msk [vmem:[%s231 + $0x60] sm:$0xff] %vm1327, %v1718
      %1790 = vst.msk [vmem:[%s231 + $0x68] sm:$0xff] %vm1327, %v1721
      %1791 = vst.msk [vmem:[%s231 + $0x70] sm:$0xff] %vm1327, %v1724
      %1792 = vst.msk [vmem:[%s231 + $0x78] sm:$0xff] %vm1327, %v1727
      %1793 = vst.msk [vmem:[%s231 + $0x80] sm:$0xff] %vm1327, %v1730
      %1794 = vst.msk [vmem:[%s231 + $0x88] sm:$0xff] %vm1327, %v1733
      %1795 = vst.msk [vmem:[%s231 + $0x90] sm:$0xff] %vm1327, %v1736
      %1796 = vst.msk [vmem:[%s231 + $0x98] sm:$0xff] %vm1327, %v1739
      %1797 = vst.msk [vmem:[%s231 + $0xa0] sm:$0xff] %vm1327, %v1742
      %1798 = vst.msk [vmem:[%s231 + $0xa8] sm:$0xff] %vm1327, %v1745
      %1799 = vst.msk [vmem:[%s231 + $0xb0] sm:$0xff] %vm1327, %v1748
      %1800 = vst.msk [vmem:[%s231 + $0xb8] sm:$0xff] %vm1327, %v1751
      %1801 = vst.msk [vmem:[%s231 + $0xc0] sm:$0xff] %vm1327, %v1754
      %1802 = vst.msk [vmem:[%s231 + $0xc8] sm:$0xff] %vm1327, %v1757
      %1803 = vst.msk [vmem:[%s231 + $0xd0] sm:$0xff] %vm1327, %v1760
      %1804 = vst.msk [vmem:[%s231 + $0xd8] sm:$0xff] %vm1327, %v1763
      %1805 = vst.msk [vmem:[%s231 + $0xe0] sm:$0xff] %vm1327, %v1766
      %1806 = vst.msk [vmem:[%s231 + $0xe8] sm:$0xff] %vm1327, %v1769
      %1807 = vst.msk [vmem:[%s231 + $0xf0] sm:$0xff] %vm1327, %v1772
      %1808 = vst.msk [vmem:[%s231 + $0xf8] sm:$0xff] %vm1327, %v1775
      %v1809 = vsel %vm1327, %v1682, 0.0
      %v1810 = vsel %vm1327, %v1685, 0.0
      %v1811 = vadd.f32 %v1809, %v1810
      %v1812 = vsel %vm1327, %v1688, 0.0
      %v1813 = vadd.f32 %v1811, %v1812
      %v1814 = vsel %vm1327, %v1691, 0.0
      %v1815 = vadd.f32 %v1813, %v1814
      %v1816 = vsel %vm1327, %v1694, 0.0
      %v1817 = vadd.f32 %v1815, %v1816
      %v1818 = vsel %vm1327, %v1697, 0.0
      %v1819 = vadd.f32 %v1817, %v1818
      %v1820 = vsel %vm1327, %v1700, 0.0
      %v1821 = vadd.f32 %v1819, %v1820
      %v1822 = vsel %vm1327, %v1703, 0.0
      %v1823 = vadd.f32 %v1821, %v1822
      %v1824 = vsel %vm1327, %v1706, 0.0
      %v1825 = vadd.f32 %v1823, %v1824
      %v1826 = vsel %vm1327, %v1709, 0.0
      %v1827 = vadd.f32 %v1825, %v1826
      %v1828 = vsel %vm1327, %v1712, 0.0
      %v1829 = vadd.f32 %v1827, %v1828
      %v1830 = vsel %vm1327, %v1715, 0.0
      %v1831 = vadd.f32 %v1829, %v1830
      %v1832 = vsel %vm1327, %v1718, 0.0
      %v1833 = vadd.f32 %v1831, %v1832
      %v1834 = vsel %vm1327, %v1721, 0.0
      %v1835 = vadd.f32 %v1833, %v1834
      %v1836 = vsel %vm1327, %v1724, 0.0
      %v1837 = vadd.f32 %v1835, %v1836
      %v1838 = vsel %vm1327, %v1727, 0.0
      %v1839 = vadd.f32 %v1837, %v1838
      %v1840 = vsel %vm1327, %v1730, 0.0
      %v1841 = vadd.f32 %v1839, %v1840
      %v1842 = vsel %vm1327, %v1733, 0.0
      %v1843 = vadd.f32 %v1841, %v1842
      %v1844 = vsel %vm1327, %v1736, 0.0
      %v1845 = vadd.f32 %v1843, %v1844
      %v1846 = vsel %vm1327, %v1739, 0.0
      %v1847 = vadd.f32 %v1845, %v1846
      %v1848 = vsel %vm1327, %v1742, 0.0
      %v1849 = vadd.f32 %v1847, %v1848
      %v1850 = vsel %vm1327, %v1745, 0.0
      %v1851 = vadd.f32 %v1849, %v1850
      %v1852 = vsel %vm1327, %v1748, 0.0
      %v1853 = vadd.f32 %v1851, %v1852
      %v1854 = vsel %vm1327, %v1751, 0.0
      %v1855 = vadd.f32 %v1853, %v1854
      %v1856 = vsel %vm1327, %v1754, 0.0
      %v1857 = vadd.f32 %v1855, %v1856
      %v1858 = vsel %vm1327, %v1757, 0.0
      %v1859 = vadd.f32 %v1857, %v1858
      %v1860 = vsel %vm1327, %v1760, 0.0
      %v1861 = vadd.f32 %v1859, %v1860
      %v1862 = vsel %vm1327, %v1763, 0.0
      %v1863 = vadd.f32 %v1861, %v1862
      %v1864 = vsel %vm1327, %v1766, 0.0
      %v1865 = vadd.f32 %v1863, %v1864
      %v1866 = vsel %vm1327, %v1769, 0.0
      %v1867 = vadd.f32 %v1865, %v1866
      %v1868 = vsel %vm1327, %v1772, 0.0
      %v1869 = vadd.f32 %v1867, %v1868
      %v1870 = vsel %vm1327, %v1775, 0.0
      %v1871 = vadd.f32 %v1869, %v1870
      %v1872 = vrot.slane %v1871, 4
      %v1873 = vadd.f32 %v1871, %v1872
      %v1874 = vrot.slane %v1873, 2
      %v1875 = vadd.f32 %v1873, %v1874
      %v1876 = vrot.slane %v1875, 1
      %v1877 = vadd.f32 %v1875, %v1876
      %v1878 = vmul.f32 %v1682, %v1682
      %v1879 = vmul.f32 %v1685, %v1685
      %v1880 = vmul.f32 %v1688, %v1688
      %v1881 = vmul.f32 %v1691, %v1691
      %v1882 = vmul.f32 %v1694, %v1694
      %v1883 = vmul.f32 %v1697, %v1697
      %v1884 = vmul.f32 %v1700, %v1700
      %v1885 = vmul.f32 %v1703, %v1703
      %v1886 = vmul.f32 %v1706, %v1706
      %v1887 = vmul.f32 %v1709, %v1709
      %v1888 = vmul.f32 %v1712, %v1712
      %v1889 = vmul.f32 %v1715, %v1715
      %v1890 = vmul.f32 %v1718, %v1718
      %v1891 = vmul.f32 %v1721, %v1721
      %v1892 = vmul.f32 %v1724, %v1724
      %v1893 = vmul.f32 %v1727, %v1727
      %v1894 = vmul.f32 %v1730, %v1730
      %v1895 = vmul.f32 %v1733, %v1733
      %v1896 = vmul.f32 %v1736, %v1736
      %v1897 = vmul.f32 %v1739, %v1739
      %v1898 = vmul.f32 %v1742, %v1742
      %v1899 = vmul.f32 %v1745, %v1745
      %v1900 = vmul.f32 %v1748, %v1748
      %v1901 = vmul.f32 %v1751, %v1751
      %v1902 = vmul.f32 %v1754, %v1754
      %v1903 = vmul.f32 %v1757, %v1757
      %v1904 = vmul.f32 %v1760, %v1760
      %v1905 = vmul.f32 %v1763, %v1763
      %v1906 = vmul.f32 %v1766, %v1766
      %v1907 = vmul.f32 %v1769, %v1769
      %v1908 = vmul.f32 %v1772, %v1772
      %v1909 = vmul.f32 %v1775, %v1775
      %v1910 = vsel %vm1327, %v1878, 0.0
      %v1911 = vsel %vm1327, %v1879, 0.0
      %v1912 = vadd.f32 %v1910, %v1911
      %v1913 = vsel %vm1327, %v1880, 0.0
      %v1914 = vadd.f32 %v1912, %v1913
      %v1915 = vsel %vm1327, %v1881, 0.0
      %v1916 = vadd.f32 %v1914, %v1915
      %v1917 = vsel %vm1327, %v1882, 0.0
      %v1918 = vadd.f32 %v1916, %v1917
      %v1919 = vsel %vm1327, %v1883, 0.0
      %v1920 = vadd.f32 %v1918, %v1919
      %v1921 = vsel %vm1327, %v1884, 0.0
      %v1922 = vadd.f32 %v1920, %v1921
      %v1923 = vsel %vm1327, %v1885, 0.0
      %v1924 = vadd.f32 %v1922, %v1923
      %v1925 = vsel %vm1327, %v1886, 0.0
      %v1926 = vadd.f32 %v1924, %v1925
      %v1927 = vsel %vm1327, %v1887, 0.0
      %v1928 = vadd.f32 %v1926, %v1927
      %v1929 = vsel %vm1327, %v1888, 0.0
      %v1930 = vadd.f32 %v1928, %v1929
      %v1931 = vsel %vm1327, %v1889, 0.0
      %v1932 = vadd.f32 %v1930, %v1931
      %v1933 = vsel %vm1327, %v1890, 0.0
      %v1934 = vadd.f32 %v1932, %v1933
      %v1935 = vsel %vm1327, %v1891, 0.0
      %v1936 = vadd.f32 %v1934, %v1935
      %v1937 = vsel %vm1327, %v1892, 0.0
      %v1938 = vadd.f32 %v1936, %v1937
      %v1939 = vsel %vm1327, %v1893, 0.0
      %v1940 = vadd.f32 %v1938, %v1939
      %v1941 = vsel %vm1327, %v1894, 0.0
      %v1942 = vadd.f32 %v1940, %v1941
      %v1943 = vsel %vm1327, %v1895, 0.0
      %v1944 = vadd.f32 %v1942, %v1943
      %v1945 = vsel %vm1327, %v1896, 0.0
      %v1946 = vadd.f32 %v1944, %v1945
      %v1947 = vsel %vm1327, %v1897, 0.0
      %v1948 = vadd.f32 %v1946, %v1947
      %v1949 = vsel %vm1327, %v1898, 0.0
      %v1950 = vadd.f32 %v1948, %v1949
      %v1951 = vsel %vm1327, %v1899, 0.0
      %v1952 = vadd.f32 %v1950, %v1951
      %v1953 = vsel %vm1327, %v1900, 0.0
      %v1954 = vadd.f32 %v1952, %v1953
      %v1955 = vsel %vm1327, %v1901, 0.0
      %v1956 = vadd.f32 %v1954, %v1955
      %v1957 = vsel %vm1327, %v1902, 0.0
      %v1958 = vadd.f32 %v1956, %v1957
      %v1959 = vsel %vm1327, %v1903, 0.0
      %v1960 = vadd.f32 %v1958, %v1959
      %v1961 = vsel %vm1327, %v1904, 0.0
      %v1962 = vadd.f32 %v1960, %v1961
      %v1963 = vsel %vm1327, %v1905, 0.0
      %v1964 = vadd.f32 %v1962, %v1963
      %v1965 = vsel %vm1327, %v1906, 0.0
      %v1966 = vadd.f32 %v1964, %v1965
      %v1967 = vsel %vm1327, %v1907, 0.0
      %v1968 = vadd.f32 %v1966, %v1967
      %v1969 = vsel %vm1327, %v1908, 0.0
      %v1970 = vadd.f32 %v1968, %v1969
      %v1971 = vsel %vm1327, %v1909, 0.0
      %v1972 = vadd.f32 %v1970, %v1971
      %v1973 = vrot.slane %v1972, 4
      %v1974 = vadd.f32 %v1972, %v1973
      %v1975 = vrot.slane %v1974, 2
      %v1976 = vadd.f32 %v1974, %v1975
      %v1977 = vrot.slane %v1976, 1
      %v1978 = vadd.f32 %v1976, %v1977
      %vm1979 = vcmask 1040384
      %v1980 = vsel %vm1979, %v1877, %v1978
      %vm1981 = vcmask 58368
      %1982 = vst.msk [vmem:[%s235] sm:$0x3] %vm1981, %v1980
      %p1983 = scmp.lt.s32.totalorder %s17, 1
      %s1984 = scalar_select %p1983, %s17, 1
      %s1985 = smul.addr %s1984, 32
      %s1986 = smul.addr %s1985, 8
      %s1987 = scalar_lea.vmem %s4, %s1986
      %p1988 = scmp.lt.s32.totalorder %s17, 1
      %s1989 = scalar_select %p1988, %s17, 1
      %s1990 = smul.addr %s1989, 2
      %s1991 = scalar_lea.vmem %s5, %s1990
      // Predicated region
      $region37: #{double_conv.3} parent=35 // pred_check
        %p1992 = pneg %p124
      $region38: #{double_conv.3} parent=35 // pred_check_branch
        %1994 = sbr.rel (%p1992) target = $region40
      $region39: #{double_conv.3} parent=35 // pred_region
        _
      $region40: #{double_conv.3} parent=35 // pred_fallthru
        _
      // Predicated region
      $region41: #{double_conv.3} parent=35 // pred_check
        %p1995 = pneg %p150
      $region42: #{double_conv.3} parent=35 // pred_check_branch
        %1997 = sbr.rel (%p1995) target = $region44
      $region43: #{double_conv.3} parent=35 // pred_region
        _
      $region44: #{double_conv.3} parent=35 // pred_fallthru
        _
    $region36: #{double_conv.3} parent=5 // pred_fallthru
      _
    %p1998 = scmp.le.s32.totalorder 2, %s12
    // Predicated region
    $region45: #{double_conv.3} parent=5 // pred_check
      %p1999 = pneg %p1998
    $region46: #{double_conv.3} parent=5 // pred_check_branch
      %2001 = sbr.rel (%p1999) target = $region48
    $region47: #{double_conv.3} parent=5 // pred_region
      %s2002 = ssub.s32 %s12, 2
      // Predicated region
      $region49: #{double_conv.3} parent=47 // pred_check
        %p2003 = pneg %p130
      $region50: #{double_conv.3} parent=47 // pred_check_branch
        %2005 = sbr.rel (%p2003) target = $region52
      $region51: #{double_conv.3} parent=47 // pred_region
        %p2006 = scmp.lt.s32.totalorder %s18, 1
        %s2007 = scalar_select %p2006, %s18, 1
        %s2008 = smul.addr %s2007, 32
        %s2009 = smul.addr %s2008, 8
        %s2010 = scalar_lea.vmem %s4, %s2009
      $region52: #{double_conv.3} parent=47 // pred_fallthru
        _
      // Predicated region
      $region53: #{double_conv.3} parent=47 // pred_check
        %p2011 = pneg %p156
      $region54: #{double_conv.3} parent=47 // pred_check_branch
        %2013 = sbr.rel (%p2011) target = $region56
      $region55: #{double_conv.3} parent=47 // pred_region
        %p2014 = scmp.lt.s32.totalorder %s18, 1
        %s2015 = scalar_select %p2014, %s18, 1
        %s2016 = smul.addr %s2015, 2
        %s2017 = scalar_lea.vmem %s5, %s2016
      $region56: #{double_conv.3} parent=47 // pred_fallthru
        _
    $region48: #{double_conv.3} parent=5 // pred_fallthru
      _
  $region6: #{double_conv.3} parent=0 // loop_footer
    %s16 = sadd.s32 1, %s12
  $region7: #{double_conv.3} parent=0 // loop_footer_branch
    %11 = sbr.rel target = $region3
  $region8: #{double_conv.3} parent=0 // loop_exit
    _

// kernel: double_conv.4
$region0: #{double_conv.4}
  #allocation0 [shape = 'u32[]', space=smem, size = 0x4, offset = 0x4, fixed_abs, tag = 'smem constant byte address 0x4 - core index']
  #allocation1 [shape = 'u32[72,128]{1,0:T(1,128)}', space=vmem, size = 0x9000, scoped, tag = 'internal scratch']
  %s0 = inlined_call_operand.vmem [shape: f32[2,18,18,8], index: 0, kind: input, shape index: {}]
  %s1 = inlined_call_operand.vmem [shape: f32[1,8], index: 1, kind: input, shape index: {}]
  %s2 = inlined_call_operand.vmem [shape: f32[1,8], index: 2, kind: input, shape index: {}]
  %s3 = inlined_call_operand.vmem [shape: f32[72,8], index: 3, kind: input, shape index: {}]
  %s4 = inlined_call_operand.vmem [shape: f32[2,16,16,8], index: 4, kind: output, shape index: {0}]
  %s5 = inlined_call_operand.vmem [shape: f32[2,2,8], index: 5, kind: output, shape index: {1}]
  %6 = xla_tuple %s4, %s5
  %s7 = sld [smem:[#allocation0]]
  $region57: #{double_conv.4} parent=0
    _
  %s9 = ssub.s32 1, %s7
  %s10 = scalar_select 0, %s9, %s7
  loop: start=0, step=1, limit=4
  $region2: #{double_conv.4} parent=0 // loop_pre_header
    _
  $region3: #{double_conv.4} parent=0 // loop_header
    %s12 = sphi 0, %s16
    %p13 = scmp.ge.s32.totalorder %s12, 4
    %s22 = sphi 0, %s24
    %s25 = sphi 0, %s22
    %s26 = sphi 0, %s25
    %s42 = sphi 0, %s26
    %s46 = sphi 0, %s46
    %s48 = sphi 0, %s46
    %s49 = sphi 0, %s48
    %s63 = sphi 0, %s49
    %s67 = sphi 0, %s67
    %s69 = sphi 0, %s67
    %s70 = sphi 0, %s69
    %s84 = sphi 0, %s70
    %s88 = sphi 0, %s88
    %s90 = sphi 0, %s88
    %s91 = sphi 0, %s90
    %s105 = sphi 0, %s91
    %s111 = sphi 0, %s113
    %s114 = sphi 0, %s111
    %s115 = sphi 0, %s114
    %s131 = sphi 0, %s115
    %s137 = sphi 0, %s139
    %s140 = sphi 0, %s137
    %s141 = sphi 0, %s140
    %s157 = sphi 0, %s141
  $region4: #{double_conv.4} parent=0 // loop_header_branch
    %15 = sbr.rel (%p13) target = $region8
  $region5: #{double_conv.4} parent=0 // loop_body
    %s17 = ssub.s32 %s12, 1
    %s18 = ssub.s32 %s12, 2
    %s19 = sadd.s32 %s12, 1
    %s20 = ssub.s32 %s12, %s19
    %p21 = scmp.eq.s32.totalorder %s20, 0
    %s23 = sadd.s32 %s22, 1
    %s24 = scalar_select %p21, %s22, %s23
    %p27 = pneg %p21
    %p28 = scmp.eq.s32.totalorder %s12, 1
    %p29 = por %p27, %p28
    %p30 = scmp.ne.s32.totalorder %s22, %s25
    %p31 = scmp.eq.s32.totalorder %s12, 0
    %p32 = por %p30, %p31
    %p33 = scmp.ne.s32.totalorder %s22, %s25
    %p34 = scmp.eq.s32.totalorder %s17, 1
    %p35 = por %p33, %p34
    %p36 = scmp.ne.s32.totalorder %s25, %s26
    %p37 = scmp.eq.s32.totalorder %s17, 0
    %p38 = por %p36, %p37
    %p39 = scmp.ne.s32.totalorder %s25, %s26
    %p40 = scmp.eq.s32.totalorder %s18, 1
    %p41 = por %p39, %p40
    %p43 = scmp.ne.s32.totalorder %s26, %s42
    %p44 = scmp.eq.s32.totalorder %s18, 0
    %p45 = por %p43, %p44
    %s47 = sadd.s32 %s46, 1
    %p50 = scmp.eq.s32.totalorder %s12, 1
    %p51 = scmp.ne.s32.totalorder %s46, %s48
    %p52 = scmp.eq.s32.totalorder %s12, 0
    %p53 = por %p51, %p52
    %p54 = scmp.ne.s32.totalorder %s46, %s48
    %p55 = scmp.eq.s32.totalorder %s17, 1
    %p56 = por %p54, %p55
    %p57 = scmp.ne.s32.totalorder %s48, %s49
    %p58 = scmp.eq.s32.totalorder %s17, 0
    %p59 = por %p57, %p58
    %p60 = scmp.ne.s32.totalorder %s48, %s49
    %p61 = scmp.eq.s32.totalorder %s18, 1
    %p62 = por %p60, %p61
    %p64 = scmp.ne.s32.totalorder %s49, %s63
    %p65 = scmp.eq.s32.totalorder %s18, 0
    %p66 = por %p64, %p65
    %s68 = sadd.s32 %s67, 1
    %p71 = scmp.eq.s32.totalorder %s12, 1
    %p72 = scmp.ne.s32.totalorder %s67, %s69
    %p73 = scmp.eq.s32.totalorder %s12, 0
    %p74 = por %p72, %p73
    %p75 = scmp.ne.s32.totalorder %s67, %s69
    %p76 = scmp.eq.s32.totalorder %s17, 1
    %p77 = por %p75, %p76
    %p78 = scmp.ne.s32.totalorder %s69, %s70
    %p79 = scmp.eq.s32.totalorder %s17, 0
    %p80 = por %p78, %p79
    %p81 = scmp.ne.s32.totalorder %s69, %s70
    %p82 = scmp.eq.s32.totalorder %s18, 1
    %p83 = por %p81, %p82
    %p85 = scmp.ne.s32.totalorder %s70, %s84
    %p86 = scmp.eq.s32.totalorder %s18, 0
    %p87 = por %p85, %p86
    %s89 = sadd.s32 %s88, 1
    %p92 = scmp.eq.s32.totalorder %s12, 1
    %p93 = scmp.ne.s32.totalorder %s88, %s90
    %p94 = scmp.eq.s32.totalorder %s12, 0
    %p95 = por %p93, %p94
    %p96 = scmp.ne.s32.totalorder %s88, %s90
    %p97 = scmp.eq.s32.totalorder %s17, 1
    %p98 = por %p96, %p97
    %p99 = scmp.ne.s32.totalorder %s90, %s91
    %p100 = scmp.eq.s32.totalorder %s17, 0
    %p101 = por %p99, %p100
    %p102 = scmp.ne.s32.totalorder %s90, %s91
    %p103 = scmp.eq.s32.totalorder %s18, 1
    %p104 = por %p102, %p103
    %p106 = scmp.ne.s32.totalorder %s91, %s105
    %p107 = scmp.eq.s32.totalorder %s18, 0
    %p108 = por %p106, %p107
    %s109 = ssub.s32 %s12, %s19
    %p110 = scmp.eq.s32.totalorder %s109, 0
    %s112 = sadd.s32 %s111, 1
    %s113 = scalar_select %p110, %s111, %s112
    %p116 = pneg %p110
    %p117 = scmp.eq.s32.totalorder %s12, 1
    %p118 = por %p116, %p117
    %p119 = scmp.ne.s32.totalorder %s111, %s114
    %p120 = scmp.eq.s32.totalorder %s12, 0
    %p121 = por %p119, %p120
    %p122 = scmp.ne.s32.totalorder %s111, %s114
    %p123 = scmp.eq.s32.totalorder %s17, 1
    %p124 = por %p122, %p123
    %p125 = scmp.ne.s32.totalorder %s114, %s115
    %p126 = scmp.eq.s32.totalorder %s17, 0
    %p127 = por %p125, %p126
    %p128 = scmp.ne.s32.totalorder %s114, %s115
    %p129 = scmp.eq.s32.totalorder %s18, 1
    %p130 = por %p128, %p129
    %p132 = scmp.ne.s32.totalorder %s115, %s131
    %p133 = scmp.eq.s32.totalorder %s18, 0
    %p134 = por %p132, %p133
    %s135 = ssub.s32 %s12, %s19
    %p136 = scmp.eq.s32.totalorder %s135, 0
    %s138 = sadd.s32 %s137, 1
    %s139 = scalar_select %p136, %s137, %s138
    %p142 = pneg %p136
    %p143 = scmp.eq.s32.totalorder %s12, 1
    %p144 = por %p142, %p143
    %p145 = scmp.ne.s32.totalorder %s137, %s140
    %p146 = scmp.eq.s32.totalorder %s12, 0
    %p147 = por %p145, %p146
    %p148 = scmp.ne.s32.totalorder %s137, %s140
    %p149 = scmp.eq.s32.totalorder %s17, 1
    %p150 = por %p148, %p149
    %p151 = scmp.ne.s32.totalorder %s140, %s141
    %p152 = scmp.eq.s32.totalorder %s17, 0
    %p153 = por %p151, %p152
    %p154 = scmp.ne.s32.totalorder %s140, %s141
    %p155 = scmp.eq.s32.totalorder %s18, 1
    %p156 = por %p154, %p155
    %p158 = scmp.ne.s32.totalorder %s141, %s157
    %p159 = scmp.eq.s32.totalorder %s18, 0
    %p160 = por %p158, %p159
    %p161 = scmp.le.s32.totalorder 1, %s12
    %p162 = scmp.lt.s32.totalorder %s12, 3
    %p163 = pnand %p161, %p162
    %p164 = pneg %p163
    // Predicated region
    $region9: #{double_conv.4} parent=5 // pred_check
      _
    $region10: #{double_conv.4} parent=5 // pred_check_branch
      %166 = sbr.rel (%p163) target = $region12
    $region11: #{double_conv.4} parent=5 // pred_region
      %s167 = ssub.s32 %s12, 1
      // Predicated region
      $region13: #{double_conv.4} parent=11 // pred_check
        %p168 = pneg %p59
      $region14: #{double_conv.4} parent=11 // pred_check_branch
        %170 = sbr.rel (%p168) target = $region16
      $region15: #{double_conv.4} parent=11 // pred_region
        _
      $region16: #{double_conv.4} parent=11 // pred_fallthru
        _
      // Predicated region
      $region17: #{double_conv.4} parent=11 // pred_check
        %p171 = pneg %p80
      $region18: #{double_conv.4} parent=11 // pred_check_branch
        %173 = sbr.rel (%p171) target = $region20
      $region19: #{double_conv.4} parent=11 // pred_region
        _
      $region20: #{double_conv.4} parent=11 // pred_fallthru
        _
      // Predicated region
      $region21: #{double_conv.4} parent=11 // pred_check
        %p174 = pneg %p101
      $region22: #{double_conv.4} parent=11 // pred_check_branch
        %176 = sbr.rel (%p174) target = $region24
      $region23: #{double_conv.4} parent=11 // pred_region
        _
      $region24: #{double_conv.4} parent=11 // pred_fallthru
        _
    $region12: #{double_conv.4} parent=5 // pred_fallthru
      _
    %p177 = scmp.lt.s32.totalorder %s12, 2
    // Predicated region
    $region25: #{double_conv.4} parent=5 // pred_check
      %p178 = pneg %p177
    $region26: #{double_conv.4} parent=5 // pred_check_branch
      %180 = sbr.rel (%p178) target = $region28
    $region27: #{double_conv.4} parent=5 // pred_region
      // Predicated region
      $region29: #{double_conv.4} parent=27 // pred_check
        %p181 = pneg %p32
      $region30: #{double_conv.4} parent=27 // pred_check_branch
        %183 = sbr.rel (%p181) target = $region32
      $region31: #{double_conv.4} parent=27 // pred_region
        %p184 = scmp.lt.s32.totalorder %s12, 1
        %s185 = scalar_select %p184, %s12, 1
        %s186 = smul.addr %s185, 54
        %s187 = smul.addr %s186, 8
        %s188 = scalar_lea.vmem %s0, %s187
      $region32: #{double_conv.4} parent=27 // pred_fallthru
        _
    $region28: #{double_conv.4} parent=5 // pred_fallthru
      _
    %p189 = scmp.le.s32.totalorder 1, %s12
    %p190 = scmp.lt.s32.totalorder %s12, 3
    %p191 = pnand %p189, %p190
    %p192 = pneg %p191
    // Predicated region
    $region33: #{double_conv.4} parent=5 // pred_check
      _
    $region34: #{double_conv.4} parent=5 // pred_check_branch
      %194 = sbr.rel (%p191) target = $region36
    $region35: #{double_conv.4} parent=5 // pred_region
      %s195 = ssub.s32 %s12, 1
      %p196 = scmp.lt.s32.totalorder %s17, 1
      %s197 = scalar_select %p196, %s17, 1
      %s198 = smul.addr %s197, 54
      %s199 = smul.addr %s198, 8
      %s200 = scalar_lea.vmem %s0, %s199
      %p201 = pneg %p38
      %p202 = pneg %p35
      %p203 = pneg %p59
      %p204 = pneg %p56
      %p205 = pneg %p80
      %p206 = pneg %p77
      %p207 = pneg %p101
      %p208 = pneg %p98
      %p209 = pneg %p127
      %p210 = pneg %p124
      %p211 = scmp.lt.s32.totalorder %s17, 1
      %s212 = scalar_select %p211, %s17, 1
      %s213 = smul.addr %s212, 32
      %s214 = smul.addr %s213, 8
      %s215 = scalar_lea.vmem %s4, %s214
      %p216 = pneg %p153
      %p217 = pneg %p150
      %p218 = scmp.lt.s32.totalorder %s17, 1
      %s219 = scalar_select %p218, %s17, 1
      %s220 = smul.addr %s219, 2
      %s221 = scalar_lea.vmem %s5, %s220
      %p222 = scmp.lt.s32.totalorder %s17, 1
      %s223 = scalar_select %p222, %s17, 1
      %s224 = smul.addr %s223, 54
      %s225 = smul.addr %s224, 8
      %s226 = scalar_lea.vmem %s0, %s225
      %p227 = scmp.lt.s32.totalorder %s17, 1
      %s228 = scalar_select %p227, %s17, 1
      %s229 = smul.addr %s228, 32
      %s230 = smul.addr %s229, 8
      %s231 = scalar_lea.vmem %s4, %s230
      %p232 = scmp.lt.s32.totalorder %s17, 1
      %s233 = scalar_select %p232, %s17, 1
      %s234 = smul.addr %s233, 2
      %s235 = scalar_lea.vmem %s5, %s234
      %v236 = vld [vmem:[%s226] sm:$0xff]
      %v237 = vld [vmem:[%s226 + $0x8] sm:$0xff]
      %v238 = vld [vmem:[%s226 + $0x10] sm:$0x3]
      %v239 = vld [vmem:[%s226 + $0x18] sm:$0xff]
      %v240 = vld [vmem:[%s226 + $0x20] sm:$0xff]
      %v241 = vld [vmem:[%s226 + $0x28] sm:$0x3]
      %v242 = vld [vmem:[%s226 + $0x30] sm:$0xff]
      %v243 = vld [vmem:[%s226 + $0x38] sm:$0xff]
      %v244 = vld [vmem:[%s226 + $0x40] sm:$0x3]
      %v245 = vld [vmem:[%s226 + $0x48] sm:$0xff]
      %v246 = vld [vmem:[%s226 + $0x50] sm:$0xff]
      %v247 = vld [vmem:[%s226 + $0x58] sm:$0x3]
      %v248 = vld [vmem:[%s226 + $0x60] sm:$0xff]
      %v249 = vld [vmem:[%s226 + $0x68] sm:$0xff]
      %v250 = vld [vmem:[%s226 + $0x70] sm:$0x3]
      %v251 = vld [vmem:[%s226 + $0x78] sm:$0xff]
      %v252 = vld [vmem:[%s226 + $0x80] sm:$0xff]
      %v253 = vld [vmem:[%s226 + $0x88] sm:$0x3]
      %v254 = vld [vmem:[%s226 + $0x90] sm:$0xff]
      %v255 = vld [vmem:[%s226 + $0x98] sm:$0xff]
      %v256 = vld [vmem:[%s226 + $0xa0] sm:$0x3]
      %v257 = vld [vmem:[%s226 + $0xa8] sm:$0xff]
      %v258 = vld [vmem:[%s226 + $0xb0] sm:$0xff]
      %v259 = vld [vmem:[%s226 + $0xb8] sm:$0x3]
      %v260 = vld [vmem:[%s226 + $0xc0] sm:$0xff]
      %v261 = vld [vmem:[%s226 + $0xc8] sm:$0xff]
      %v262 = vld [vmem:[%s226 + $0xd0] sm:$0x3]
      %v263 = vld [vmem:[%s226 + $0xd8] sm:$0xff]
      %v264 = vld [vmem:[%s226 + $0xe0] sm:$0xff]
      %v265 = vld [vmem:[%s226 + $0xe8] sm:$0x3]
      %v266 = vld [vmem:[%s226 + $0xf0] sm:$0xff]
      %v267 = vld [vmem:[%s226 + $0xf8] sm:$0xff]
      %v268 = vld [vmem:[%s226 + $0x100] sm:$0x3]
      %v269 = vld [vmem:[%s226 + $0x108] sm:$0xff]
      %v270 = vld [vmem:[%s226 + $0x110] sm:$0xff]
      %v271 = vld [vmem:[%s226 + $0x118] sm:$0x3]
      %v272 = vld [vmem:[%s226 + $0x120] sm:$0xff]
      %v273 = vld [vmem:[%s226 + $0x128] sm:$0xff]
      %v274 = vld [vmem:[%s226 + $0x130] sm:$0x3]
      %v275 = vld [vmem:[%s226 + $0x138] sm:$0xff]
      %v276 = vld [vmem:[%s226 + $0x140] sm:$0xff]
      %v277 = vld [vmem:[%s226 + $0x148] sm:$0x3]
      %v278 = vld [vmem:[%s226 + $0x150] sm:$0xff]
      %v279 = vld [vmem:[%s226 + $0x158] sm:$0xff]
      %v280 = vld [vmem:[%s226 + $0x160] sm:$0x3]
      %v281 = vld [vmem:[%s226 + $0x168] sm:$0xff]
      %v282 = vld [vmem:[%s226 + $0x170] sm:$0xff]
      %v283 = vld [vmem:[%s226 + $0x178] sm:$0x3]
      %v284 = vld [vmem:[%s226 + $0x180] sm:$0xff]
      %v285 = vld [vmem:[%s226 + $0x188] sm:$0xff]
      %v286 = vld [vmem:[%s226 + $0x190] sm:$0x3]
      %v287 = vld [vmem:[%s226 + $0x198] sm:$0xff]
      %v288 = vld [vmem:[%s226 + $0x1a0] sm:$0xff]
      %v289 = vld [vmem:[%s226 + $0x1a8] sm:$0x3]
      %v290 = vld [vmem:[%s1] sm:$0x1]
      %v292 = vperm.slane %v290, 0
      %v294 = vmul.f32 %v236, %v292
      %v295 = vmul.f32 %v237, %v292
      %v296 = vmul.f32 %v238, %v292
      %v297 = vmul.f32 %v239, %v292
      %v298 = vmul.f32 %v240, %v292
      %v299 = vmul.f32 %v241, %v292
      %v300 = vmul.f32 %v242, %v292
      %v301 = vmul.f32 %v243, %v292
      %v302 = vmul.f32 %v244, %v292
      %v303 = vmul.f32 %v245, %v292
      %v304 = vmul.f32 %v246, %v292
      %v305 = vmul.f32 %v247, %v292
      %v306 = vmul.f32 %v248, %v292
      %v307 = vmul.f32 %v249, %v292
      %v308 = vmul.f32 %v250, %v292
      %v309 = vmul.f32 %v251, %v292
      %v310 = vmul.f32 %v252, %v292
      %v311 = vmul.f32 %v253, %v292
      %v312 = vmul.f32 %v254, %v292
      %v313 = vmul.f32 %v255, %v292
      %v314 = vmul.f32 %v256, %v292
      %v315 = vmul.f32 %v257, %v292
      %v316 = vmul.f32 %v258, %v292
      %v317 = vmul.f32 %v259, %v292
      %v318 = vmul.f32 %v260, %v292
      %v319 = vmul.f32 %v261, %v292
      %v320 = vmul.f32 %v262, %v292
      %v321 = vmul.f32 %v263, %v292
      %v322 = vmul.f32 %v264, %v292
      %v323 = vmul.f32 %v265, %v292
      %v324 = vmul.f32 %v266, %v292
      %v325 = vmul.f32 %v267, %v292
      %v326 = vmul.f32 %v268, %v292
      %v327 = vmul.f32 %v269, %v292
      %v328 = vmul.f32 %v270, %v292
      %v329 = vmul.f32 %v271, %v292
      %v330 = vmul.f32 %v272, %v292
      %v331 = vmul.f32 %v273, %v292
      %v332 = vmul.f32 %v274, %v292
      %v333 = vmul.f32 %v275, %v292
      %v334 = vmul.f32 %v276, %v292
      %v335 = vmul.f32 %v277, %v292
      %v336 = vmul.f32 %v278, %v292
      %v337 = vmul.f32 %v279, %v292
      %v338 = vmul.f32 %v280, %v292
      %v339 = vmul.f32 %v281, %v292
      %v340 = vmul.f32 %v282, %v292
      %v341 = vmul.f32 %v283, %v292
      %v342 = vmul.f32 %v284, %v292
      %v343 = vmul.f32 %v285, %v292
      %v344 = vmul.f32 %v286, %v292
      %v345 = vmul.f32 %v287, %v292
      %v346 = vmul.f32 %v288, %v292
      %v347 = vmul.f32 %v289, %v292
      %v348 = vld [vmem:[%s2] sm:$0x1]
      %v350 = vperm.slane %v348, 0
      %v352 = vadd.f32 %v294, %v350
      %v353 = vadd.f32 %v295, %v350
      %v354 = vadd.f32 %v296, %v350
      %v355 = vadd.f32 %v297, %v350
      %v356 = vadd.f32 %v298, %v350
      %v357 = vadd.f32 %v299, %v350
      %v358 = vadd.f32 %v300, %v350
      %v359 = vadd.f32 %v301, %v350
      %v360 = vadd.f32 %v302, %v350
      %v361 = vadd.f32 %v303, %v350
      %v362 = vadd.f32 %v304, %v350
      %v363 = vadd.f32 %v305, %v350
      %v364 = vadd.f32 %v306, %v350
      %v365 = vadd.f32 %v307, %v350
      %v366 = vadd.f32 %v308, %v350
      %v367 = vadd.f32 %v309, %v350
      %v368 = vadd.f32 %v310, %v350
      %v369 = vadd.f32 %v311, %v350
      %v370 = vadd.f32 %v312, %v350
      %v371 = vadd.f32 %v313, %v350
      %v372 = vadd.f32 %v314, %v350
      %v373 = vadd.f32 %v315, %v350
      %v374 = vadd.f32 %v316, %v350
      %v375 = vadd.f32 %v317, %v350
      %v376 = vadd.f32 %v318, %v350
      %v377 = vadd.f32 %v319, %v350
      %v378 = vadd.f32 %v320, %v350
      %v379 = vadd.f32 %v321, %v350
      %v380 = vadd.f32 %v322, %v350
      %v381 = vadd.f32 %v323, %v350
      %v382 = vadd.f32 %v324, %v350
      %v383 = vadd.f32 %v325, %v350
      %v384 = vadd.f32 %v326, %v350
      %v385 = vadd.f32 %v327, %v350
      %v386 = vadd.f32 %v328, %v350
      %v387 = vadd.f32 %v329, %v350
      %v388 = vadd.f32 %v330, %v350
      %v389 = vadd.f32 %v331, %v350
      %v390 = vadd.f32 %v332, %v350
      %v391 = vadd.f32 %v333, %v350
      %v392 = vadd.f32 %v334, %v350
      %v393 = vadd.f32 %v335, %v350
      %v394 = vadd.f32 %v336, %v350
      %v395 = vadd.f32 %v337, %v350
      %v396 = vadd.f32 %v338, %v350
      %v397 = vadd.f32 %v339, %v350
      %v398 = vadd.f32 %v340, %v350
      %v399 = vadd.f32 %v341, %v350
      %v400 = vadd.f32 %v342, %v350
      %v401 = vadd.f32 %v343, %v350
      %v402 = vadd.f32 %v344, %v350
      %v403 = vadd.f32 %v345, %v350
      %v404 = vadd.f32 %v346, %v350
      %v405 = vadd.f32 %v347, %v350
      %v406 = vsub.f32 0.0, %v352
      %v407 = vsub.f32 0.0, %v353
      %v408 = vsub.f32 0.0, %v354
      %v409 = vsub.f32 0.0, %v355
      %v410 = vsub.f32 0.0, %v356
      %v411 = vsub.f32 0.0, %v357
      %v412 = vsub.f32 0.0, %v358
      %v413 = vsub.f32 0.0, %v359
      %v414 = vsub.f32 0.0, %v360
      %v415 = vsub.f32 0.0, %v361
      %v416 = vsub.f32 0.0, %v362
      %v417 = vsub.f32 0.0, %v363
      %v418 = vsub.f32 0.0, %v364
      %v419 = vsub.f32 0.0, %v365
      %v420 = vsub.f32 0.0, %v366
      %v421 = vsub.f32 0.0, %v367
      %v422 = vsub.f32 0.0, %v368
      %v423 = vsub.f32 0.0, %v369
      %v424 = vsub.f32 0.0, %v370
      %v425 = vsub.f32 0.0, %v371
      %v426 = vsub.f32 0.0, %v372
      %v427 = vsub.f32 0.0, %v373
      %v428 = vsub.f32 0.0, %v374
      %v429 = vsub.f32 0.0, %v375
      %v430 = vsub.f32 0.0, %v376
      %v431 = vsub.f32 0.0, %v377
      %v432 = vsub.f32 0.0, %v378
      %v433 = vsub.f32 0.0, %v379
      %v434 = vsub.f32 0.0, %v380
      %v435 = vsub.f32 0.0, %v381
      %v436 = vsub.f32 0.0, %v382
      %v437 = vsub.f32 0.0, %v383
      %v438 = vsub.f32 0.0, %v384
      %v439 = vsub.f32 0.0, %v385
      %v440 = vsub.f32 0.0, %v386
      %v441 = vsub.f32 0.0, %v387
      %v442 = vsub.f32 0.0, %v388
      %v443 = vsub.f32 0.0, %v389
      %v444 = vsub.f32 0.0, %v390
      %v445 = vsub.f32 0.0, %v391
      %v446 = vsub.f32 0.0, %v392
      %v447 = vsub.f32 0.0, %v393
      %v448 = vsub.f32 0.0, %v394
      %v449 = vsub.f32 0.0, %v395
      %v450 = vsub.f32 0.0, %v396
      %v451 = vsub.f32 0.0, %v397
      %v452 = vsub.f32 0.0, %v398
      %v453 = vsub.f32 0.0, %v399
      %v454 = vsub.f32 0.0, %v400
      %v455 = vsub.f32 0.0, %v401
      %v456 = vsub.f32 0.0, %v402
      %v457 = vsub.f32 0.0, %v403
      %v458 = vsub.f32 0.0, %v404
      %v459 = vsub.f32 0.0, %v405
      %v460 = vmul.f32 %v406, 1.442695
      %v461 = vpow.pop %v460
      %v462 = vmul.f32 %v407, 1.442695
      %v463 = vpow.pop %v462
      %v464 = vmul.f32 %v408, 1.442695
      %v465 = vpow.pop %v464
      %v466 = vmul.f32 %v409, 1.442695
      %v467 = vpow.pop %v466
      %v468 = vmul.f32 %v410, 1.442695
      %v469 = vpow.pop %v468
      %v470 = vmul.f32 %v411, 1.442695
      %v471 = vpow.pop %v470
      %v472 = vmul.f32 %v412, 1.442695
      %v473 = vpow.pop %v472
      %v474 = vmul.f32 %v413, 1.442695
      %v475 = vpow.pop %v474
      %v476 = vmul.f32 %v414, 1.442695
      %v477 = vpow.pop %v476
      %v478 = vmul.f32 %v415, 1.442695
      %v479 = vpow.pop %v478
      %v480 = vmul.f32 %v416, 1.442695
      %v481 = vpow.pop %v480
      %v482 = vmul.f32 %v417, 1.442695
      %v483 = vpow.pop %v482
      %v484 = vmul.f32 %v418, 1.442695
      %v485 = vpow.pop %v484
      %v486 = vmul.f32 %v419, 1.442695
      %v487 = vpow.pop %v486
      %v488 = vmul.f32 %v420, 1.442695
      %v489 = vpow.pop %v488
      %v490 = vmul.f32 %v421, 1.442695
      %v491 = vpow.pop %v490
      %v492 = vmul.f32 %v422, 1.442695
      %v493 = vpow.pop %v492
      %v494 = vmul.f32 %v423, 1.442695
      %v495 = vpow.pop %v494
      %v496 = vmul.f32 %v424, 1.442695
      %v497 = vpow.pop %v496
      %v498 = vmul.f32 %v425, 1.442695
      %v499 = vpow.pop %v498
      %v500 = vmul.f32 %v426, 1.442695
      %v501 = vpow.pop %v500
      %v502 = vmul.f32 %v427, 1.442695
      %v503 = vpow.pop %v502
      %v504 = vmul.f32 %v428, 1.442695
      %v505 = vpow.pop %v504
      %v506 = vmul.f32 %v429, 1.442695
      %v507 = vpow.pop %v506
      %v508 = vmul.f32 %v430, 1.442695
      %v509 = vpow.pop %v508
      %v510 = vmul.f32 %v431, 1.442695
      %v511 = vpow.pop %v510
      %v512 = vmul.f32 %v432, 1.442695
      %v513 = vpow.pop %v512
      %v514 = vmul.f32 %v433, 1.442695
      %v515 = vpow.pop %v514
      %v516 = vmul.f32 %v434, 1.442695
      %v517 = vpow.pop %v516
      %v518 = vmul.f32 %v435, 1.442695
      %v519 = vpow.pop %v518
      %v520 = vmul.f32 %v436, 1.442695
      %v521 = vpow.pop %v520
      %v522 = vmul.f32 %v437, 1.442695
      %v523 = vpow.pop %v522
      %v524 = vmul.f32 %v438, 1.442695
      %v525 = vpow.pop %v524
      %v526 = vmul.f32 %v439, 1.442695
      %v527 = vpow.pop %v526
      %v528 = vmul.f32 %v440, 1.442695
      %v529 = vpow.pop %v528
      %v530 = vmul.f32 %v441, 1.442695
      %v531 = vpow.pop %v530
      %v532 = vmul.f32 %v442, 1.442695
      %v533 = vpow.pop %v532
      %v534 = vmul.f32 %v443, 1.442695
      %v535 = vpow.pop %v534
      %v536 = vmul.f32 %v444, 1.442695
      %v537 = vpow.pop %v536
      %v538 = vmul.f32 %v445, 1.442695
      %v539 = vpow.pop %v538
      %v540 = vmul.f32 %v446, 1.442695
      %v541 = vpow.pop %v540
      %v542 = vmul.f32 %v447, 1.442695
      %v543 = vpow.pop %v542
      %v544 = vmul.f32 %v448, 1.442695
      %v545 = vpow.pop %v544
      %v546 = vmul.f32 %v449, 1.442695
      %v547 = vpow.pop %v546
      %v548 = vmul.f32 %v450, 1.442695
      %v549 = vpow.pop %v548
      %v550 = vmul.f32 %v451, 1.442695
      %v551 = vpow.pop %v550
      %v552 = vmul.f32 %v452, 1.442695
      %v553 = vpow.pop %v552
      %v554 = vmul.f32 %v453, 1.442695
      %v555 = vpow.pop %v554
      %v556 = vmul.f32 %v454, 1.442695
      %v557 = vpow.pop %v556
      %v558 = vmul.f32 %v455, 1.442695
      %v559 = vpow.pop %v558
      %v560 = vmul.f32 %v456, 1.442695
      %v561 = vpow.pop %v560
      %v562 = vmul.f32 %v457, 1.442695
      %v563 = vpow.pop %v562
      %v564 = vmul.f32 %v458, 1.442695
      %v565 = vpow.pop %v564
      %v566 = vmul.f32 %v459, 1.442695
      %v567 = vpow.pop %v566
      %v568 = vadd.f32 %v461, 1.0
      %v569 = vadd.f32 %v463, 1.0
      %v570 = vadd.f32 %v465, 1.0
      %v571 = vadd.f32 %v467, 1.0
      %v572 = vadd.f32 %v469, 1.0
      %v573 = vadd.f32 %v471, 1.0
      %v574 = vadd.f32 %v473, 1.0
      %v575 = vadd.f32 %v475, 1.0
      %v576 = vadd.f32 %v477, 1.0
      %v577 = vadd.f32 %v479, 1.0
      %v578 = vadd.f32 %v481, 1.0
      %v579 = vadd.f32 %v483, 1.0
      %v580 = vadd.f32 %v485, 1.0
      %v581 = vadd.f32 %v487, 1.0
      %v582 = vadd.f32 %v489, 1.0
      %v583 = vadd.f32 %v491, 1.0
      %v584 = vadd.f32 %v493, 1.0
      %v585 = vadd.f32 %v495, 1.0
      %v586 = vadd.f32 %v497, 1.0
      %v587 = vadd.f32 %v499, 1.0
      %v588 = vadd.f32 %v501, 1.0
      %v589 = vadd.f32 %v503, 1.0
      %v590 = vadd.f32 %v505, 1.0
      %v591 = vadd.f32 %v507, 1.0
      %v592 = vadd.f32 %v509, 1.0
      %v593 = vadd.f32 %v511, 1.0
      %v594 = vadd.f32 %v513, 1.0
      %v595 = vadd.f32 %v515, 1.0
      %v596 = vadd.f32 %v517, 1.0
      %v597 = vadd.f32 %v519, 1.0
      %v598 = vadd.f32 %v521, 1.0
      %v599 = vadd.f32 %v523, 1.0
      %v600 = vadd.f32 %v525, 1.0
      %v601 = vadd.f32 %v527, 1.0
      %v602 = vadd.f32 %v529, 1.0
      %v603 = vadd.f32 %v531, 1.0
      %v604 = vadd.f32 %v533, 1.0
      %v605 = vadd.f32 %v535, 1.0
      %v606 = vadd.f32 %v537, 1.0
      %v607 = vadd.f32 %v539, 1.0
      %v608 = vadd.f32 %v541, 1.0
      %v609 = vadd.f32 %v543, 1.0
      %v610 = vadd.f32 %v545, 1.0
      %v611 = vadd.f32 %v547, 1.0
      %v612 = vadd.f32 %v549, 1.0
      %v613 = vadd.f32 %v551, 1.0
      %v614 = vadd.f32 %v553, 1.0
      %v615 = vadd.f32 %v555, 1.0
      %v616 = vadd.f32 %v557, 1.0
      %v617 = vadd.f32 %v559, 1.0
      %v618 = vadd.f32 %v561, 1.0
      %v619 = vadd.f32 %v563, 1.0
      %v620 = vadd.f32 %v565, 1.0
      %v621 = vadd.f32 %v567, 1.0
      %v622 = vrcp.pop %v568
      %v623 = vmul.f32 %v568, %v622
      %v624 = vsub.f32 1.0, %v623
      %v625 = vmul.f32 %v622, %v624
      %v626 = vadd.f32 %v622, %v625
      %vm627 = vweird.f32 %v568
      %vm628 = vweird.f32 %v622
      %vm629 = vmor %vm627, %vm628
      %v630 = vsel %vm629, %v622, %v626
      %v631 = vand.u32 2147483647, %v568
      %vm632 = vcmp.eq.f32.partialorder %v631, 8.507059e+37
      %v633 = vand.u32 %v568, 2147483648
      %v634 = vor.u32 1.1754944e-38, %v633
      %v635 = vsel %vm632, %v634, %v630
      %v636 = vrcp.pop %v569
      %v637 = vmul.f32 %v569, %v636
      %v638 = vsub.f32 1.0, %v637
      %v639 = vmul.f32 %v636, %v638
      %v640 = vadd.f32 %v636, %v639
      %vm641 = vweird.f32 %v569
      %vm642 = vweird.f32 %v636
      %vm643 = vmor %vm641, %vm642
      %v644 = vsel %vm643, %v636, %v640
      %v645 = vand.u32 2147483647, %v569
      %vm646 = vcmp.eq.f32.partialorder %v645, 8.507059e+37
      %v647 = vand.u32 %v569, 2147483648
      %v648 = vor.u32 1.1754944e-38, %v647
      %v649 = vsel %vm646, %v648, %v644
      %v650 = vrcp.pop %v570
      %v651 = vmul.f32 %v570, %v650
      %v652 = vsub.f32 1.0, %v651
      %v653 = vmul.f32 %v650, %v652
      %v654 = vadd.f32 %v650, %v653
      %vm655 = vweird.f32 %v570
      %vm656 = vweird.f32 %v650
      %vm657 = vmor %vm655, %vm656
      %v658 = vsel %vm657, %v650, %v654
      %v659 = vand.u32 2147483647, %v570
      %vm660 = vcmp.eq.f32.partialorder %v659, 8.507059e+37
      %v661 = vand.u32 %v570, 2147483648
      %v662 = vor.u32 1.1754944e-38, %v661
      %v663 = vsel %vm660, %v662, %v658
      %v664 = vrcp.pop %v571
      %v665 = vmul.f32 %v571, %v664
      %v666 = vsub.f32 1.0, %v665
      %v667 = vmul.f32 %v664, %v666
      %v668 = vadd.f32 %v664, %v667
      %vm669 = vweird.f32 %v571
      %vm670 = vweird.f32 %v664
      %vm671 = vmor %vm669, %vm670
      %v672 = vsel %vm671, %v664, %v668
      %v673 = vand.u32 2147483647, %v571
      %vm674 = vcmp.eq.f32.partialorder %v673, 8.507059e+37
      %v675 = vand.u32 %v571, 2147483648
      %v676 = vor.u32 1.1754944e-38, %v675
      %v677 = vsel %vm674, %v676, %v672
      %v678 = vrcp.pop %v572
      %v679 = vmul.f32 %v572, %v678
      %v680 = vsub.f32 1.0, %v679
      %v681 = vmul.f32 %v678, %v680
      %v682 = vadd.f32 %v678, %v681
      %vm683 = vweird.f32 %v572
      %vm684 = vweird.f32 %v678
      %vm685 = vmor %vm683, %vm684
      %v686 = vsel %vm685, %v678, %v682
      %v687 = vand.u32 2147483647, %v572
      %vm688 = vcmp.eq.f32.partialorder %v687, 8.507059e+37
      %v689 = vand.u32 %v572, 2147483648
      %v690 = vor.u32 1.1754944e-38, %v689
      %v691 = vsel %vm688, %v690, %v686
      %v692 = vrcp.pop %v573
      %v693 = vmul.f32 %v573, %v692
      %v694 = vsub.f32 1.0, %v693
      %v695 = vmul.f32 %v692, %v694
      %v696 = vadd.f32 %v692, %v695
      %vm697 = vweird.f32 %v573
      %vm698 = vweird.f32 %v692
      %vm699 = vmor %vm697, %vm698
      %v700 = vsel %vm699, %v692, %v696
      %v701 = vand.u32 2147483647, %v573
      %vm702 = vcmp.eq.f32.partialorder %v701, 8.507059e+37
      %v703 = vand.u32 %v573, 2147483648
      %v704 = vor.u32 1.1754944e-38, %v703
      %v705 = vsel %vm702, %v704, %v700
      %v706 = vrcp.pop %v574
      %v707 = vmul.f32 %v574, %v706
      %v708 = vsub.f32 1.0, %v707
      %v709 = vmul.f32 %v706, %v708
      %v710 = vadd.f32 %v706, %v709
      %vm711 = vweird.f32 %v574
      %vm712 = vweird.f32 %v706
      %vm713 = vmor %vm711, %vm712
      %v714 = vsel %vm713, %v706, %v710
      %v715 = vand.u32 2147483647, %v574
      %vm716 = vcmp.eq.f32.partialorder %v715, 8.507059e+37
      %v717 = vand.u32 %v574, 2147483648
      %v718 = vor.u32 1.1754944e-38, %v717
      %v719 = vsel %vm716, %v718, %v714
      %v720 = vrcp.pop %v575
      %v721 = vmul.f32 %v575, %v720
      %v722 = vsub.f32 1.0, %v721
      %v723 = vmul.f32 %v720, %v722
      %v724 = vadd.f32 %v720, %v723
      %vm725 = vweird.f32 %v575
      %vm726 = vweird.f32 %v720
      %vm727 = vmor %vm725, %vm726
      %v728 = vsel %vm727, %v720, %v724
      %v729 = vand.u32 2147483647, %v575
      %vm730 = vcmp.eq.f32.partialorder %v729, 8.507059e+37
      %v731 = vand.u32 %v575, 2147483648
      %v732 = vor.u32 1.1754944e-38, %v731
      %v733 = vsel %vm730, %v732, %v728
      %v734 = vrcp.pop %v576
      %v735 = vmul.f32 %v576, %v734
      %v736 = vsub.f32 1.0, %v735
      %v737 = vmul.f32 %v734, %v736
      %v738 = vadd.f32 %v734, %v737
      %vm739 = vweird.f32 %v576
      %vm740 = vweird.f32 %v734
      %vm741 = vmor %vm739, %vm740
      %v742 = vsel %vm741, %v734, %v738
      %v743 = vand.u32 2147483647, %v576
      %vm744 = vcmp.eq.f32.partialorder %v743, 8.507059e+37
      %v745 = vand.u32 %v576, 2147483648
      %v746 = vor.u32 1.1754944e-38, %v745
      %v747 = vsel %vm744, %v746, %v742
      %v748 = vrcp.pop %v577
      %v749 = vmul.f32 %v577, %v748
      %v750 = vsub.f32 1.0, %v749
      %v751 = vmul.f32 %v748, %v750
      %v752 = vadd.f32 %v748, %v751
      %vm753 = vweird.f32 %v577
      %vm754 = vweird.f32 %v748
      %vm755 = vmor %vm753, %vm754
      %v756 = vsel %vm755, %v748, %v752
      %v757 = vand.u32 2147483647, %v577
      %vm758 = vcmp.eq.f32.partialorder %v757, 8.507059e+37
      %v759 = vand.u32 %v577, 2147483648
      %v760 = vor.u32 1.1754944e-38, %v759
      %v761 = vsel %vm758, %v760, %v756
      %v762 = vrcp.pop %v578
      %v763 = vmul.f32 %v578, %v762
      %v764 = vsub.f32 1.0, %v763
      %v765 = vmul.f32 %v762, %v764
      %v766 = vadd.f32 %v762, %v765
      %vm767 = vweird.f32 %v578
      %vm768 = vweird.f32 %v762
      %vm769 = vmor %vm767, %vm768
      %v770 = vsel %vm769, %v762, %v766
      %v771 = vand.u32 2147483647, %v578
      %vm772 = vcmp.eq.f32.partialorder %v771, 8.507059e+37
      %v773 = vand.u32 %v578, 2147483648
      %v774 = vor.u32 1.1754944e-38, %v773
      %v775 = vsel %vm772, %v774, %v770
      %v776 = vrcp.pop %v579
      %v777 = vmul.f32 %v579, %v776
      %v778 = vsub.f32 1.0, %v777
      %v779 = vmul.f32 %v776, %v778
      %v780 = vadd.f32 %v776, %v779
      %vm781 = vweird.f32 %v579
      %vm782 = vweird.f32 %v776
      %vm783 = vmor %vm781, %vm782
      %v784 = vsel %vm783, %v776, %v780
      %v785 = vand.u32 2147483647, %v579
      %vm786 = vcmp.eq.f32.partialorder %v785, 8.507059e+37
      %v787 = vand.u32 %v579, 2147483648
      %v788 = vor.u32 1.1754944e-38, %v787
      %v789 = vsel %vm786, %v788, %v784
      %v790 = vrcp.pop %v580
      %v791 = vmul.f32 %v580, %v790
      %v792 = vsub.f32 1.0, %v791
      %v793 = vmul.f32 %v790, %v792
      %v794 = vadd.f32 %v790, %v793
      %vm795 = vweird.f32 %v580
      %vm796 = vweird.f32 %v790
      %vm797 = vmor %vm795, %vm796
      %v798 = vsel %vm797, %v790, %v794
      %v799 = vand.u32 2147483647, %v580
      %vm800 = vcmp.eq.f32.partialorder %v799, 8.507059e+37
      %v801 = vand.u32 %v580, 2147483648
      %v802 = vor.u32 1.1754944e-38, %v801
      %v803 = vsel %vm800, %v802, %v798
      %v804 = vrcp.pop %v581
      %v805 = vmul.f32 %v581, %v804
      %v806 = vsub.f32 1.0, %v805
      %v807 = vmul.f32 %v804, %v806
      %v808 = vadd.f32 %v804, %v807
      %vm809 = vweird.f32 %v581
      %vm810 = vweird.f32 %v804
      %vm811 = vmor %vm809, %vm810
      %v812 = vsel %vm811, %v804, %v808
      %v813 = vand.u32 2147483647, %v581
      %vm814 = vcmp.eq.f32.partialorder %v813, 8.507059e+37
      %v815 = vand.u32 %v581, 2147483648
      %v816 = vor.u32 1.1754944e-38, %v815
      %v817 = vsel %vm814, %v816, %v812
      %v818 = vrcp.pop %v582
      %v819 = vmul.f32 %v582, %v818
      %v820 = vsub.f32 1.0, %v819
      %v821 = vmul.f32 %v818, %v820
      %v822 = vadd.f32 %v818, %v821
      %vm823 = vweird.f32 %v582
      %vm824 = vweird.f32 %v818
      %vm825 = vmor %vm823, %vm824
      %v826 = vsel %vm825, %v818, %v822
      %v827 = vand.u32 2147483647, %v582
      %vm828 = vcmp.eq.f32.partialorder %v827, 8.507059e+37
      %v829 = vand.u32 %v582, 2147483648
      %v830 = vor.u32 1.1754944e-38, %v829
      %v831 = vsel %vm828, %v830, %v826
      %v832 = vrcp.pop %v583
      %v833 = vmul.f32 %v583, %v832
      %v834 = vsub.f32 1.0, %v833
      %v835 = vmul.f32 %v832, %v834
      %v836 = vadd.f32 %v832, %v835
      %vm837 = vweird.f32 %v583
      %vm838 = vweird.f32 %v832
      %vm839 = vmor %vm837, %vm838
      %v840 = vsel %vm839, %v832, %v836
      %v841 = vand.u32 2147483647, %v583
      %vm842 = vcmp.eq.f32.partialorder %v841, 8.507059e+37
      %v843 = vand.u32 %v583, 2147483648
      %v844 = vor.u32 1.1754944e-38, %v843
      %v845 = vsel %vm842, %v844, %v840
      %v846 = vrcp.pop %v584
      %v847 = vmul.f32 %v584, %v846
      %v848 = vsub.f32 1.0, %v847
      %v849 = vmul.f32 %v846, %v848
      %v850 = vadd.f32 %v846, %v849
      %vm851 = vweird.f32 %v584
      %vm852 = vweird.f32 %v846
      %vm853 = vmor %vm851, %vm852
      %v854 = vsel %vm853, %v846, %v850
      %v855 = vand.u32 2147483647, %v584
      %vm856 = vcmp.eq.f32.partialorder %v855, 8.507059e+37
      %v857 = vand.u32 %v584, 2147483648
      %v858 = vor.u32 1.1754944e-38, %v857
      %v859 = vsel %vm856, %v858, %v854
      %v860 = vrcp.pop %v585
      %v861 = vmul.f32 %v585, %v860
      %v862 = vsub.f32 1.0, %v861
      %v863 = vmul.f32 %v860, %v862
      %v864 = vadd.f32 %v860, %v863
      %vm865 = vweird.f32 %v585
      %vm866 = vweird.f32 %v860
      %vm867 = vmor %vm865, %vm866
      %v868 = vsel %vm867, %v860, %v864
      %v869 = vand.u32 2147483647, %v585
      %vm870 = vcmp.eq.f32.partialorder %v869, 8.507059e+37
      %v871 = vand.u32 %v585, 2147483648
      %v872 = vor.u32 1.1754944e-38, %v871
      %v873 = vsel %vm870, %v872, %v868
      %v874 = vrcp.pop %v586
      %v875 = vmul.f32 %v586, %v874
      %v876 = vsub.f32 1.0, %v875
      %v877 = vmul.f32 %v874, %v876
      %v878 = vadd.f32 %v874, %v877
      %vm879 = vweird.f32 %v586
      %vm880 = vweird.f32 %v874
      %vm881 = vmor %vm879, %vm880
      %v882 = vsel %vm881, %v874, %v878
      %v883 = vand.u32 2147483647, %v586
      %vm884 = vcmp.eq.f32.partialorder %v883, 8.507059e+37
      %v885 = vand.u32 %v586, 2147483648
      %v886 = vor.u32 1.1754944e-38, %v885
      %v887 = vsel %vm884, %v886, %v882
      %v888 = vrcp.pop %v587
      %v889 = vmul.f32 %v587, %v888
      %v890 = vsub.f32 1.0, %v889
      %v891 = vmul.f32 %v888, %v890
      %v892 = vadd.f32 %v888, %v891
      %vm893 = vweird.f32 %v587
      %vm894 = vweird.f32 %v888
      %vm895 = vmor %vm893, %vm894
      %v896 = vsel %vm895, %v888, %v892
      %v897 = vand.u32 2147483647, %v587
      %vm898 = vcmp.eq.f32.partialorder %v897, 8.507059e+37
      %v899 = vand.u32 %v587, 2147483648
      %v900 = vor.u32 1.1754944e-38, %v899
      %v901 = vsel %vm898, %v900, %v896
      %v902 = vrcp.pop %v588
      %v903 = vmul.f32 %v588, %v902
      %v904 = vsub.f32 1.0, %v903
      %v905 = vmul.f32 %v902, %v904
      %v906 = vadd.f32 %v902, %v905
      %vm907 = vweird.f32 %v588
      %vm908 = vweird.f32 %v902
      %vm909 = vmor %vm907, %vm908
      %v910 = vsel %vm909, %v902, %v906
      %v911 = vand.u32 2147483647, %v588
      %vm912 = vcmp.eq.f32.partialorder %v911, 8.507059e+37
      %v913 = vand.u32 %v588, 2147483648
      %v914 = vor.u32 1.1754944e-38, %v913
      %v915 = vsel %vm912, %v914, %v910
      %v916 = vrcp.pop %v589
      %v917 = vmul.f32 %v589, %v916
      %v918 = vsub.f32 1.0, %v917
      %v919 = vmul.f32 %v916, %v918
      %v920 = vadd.f32 %v916, %v919
      %vm921 = vweird.f32 %v589
      %vm922 = vweird.f32 %v916
      %vm923 = vmor %vm921, %vm922
      %v924 = vsel %vm923, %v916, %v920
      %v925 = vand.u32 2147483647, %v589
      %vm926 = vcmp.eq.f32.partialorder %v925, 8.507059e+37
      %v927 = vand.u32 %v589, 2147483648
      %v928 = vor.u32 1.1754944e-38, %v927
      %v929 = vsel %vm926, %v928, %v924
      %v930 = vrcp.pop %v590
      %v931 = vmul.f32 %v590, %v930
      %v932 = vsub.f32 1.0, %v931
      %v933 = vmul.f32 %v930, %v932
      %v934 = vadd.f32 %v930, %v933
      %vm935 = vweird.f32 %v590
      %vm936 = vweird.f32 %v930
      %vm937 = vmor %vm935, %vm936
      %v938 = vsel %vm937, %v930, %v934
      %v939 = vand.u32 2147483647, %v590
      %vm940 = vcmp.eq.f32.partialorder %v939, 8.507059e+37
      %v941 = vand.u32 %v590, 2147483648
      %v942 = vor.u32 1.1754944e-38, %v941
      %v943 = vsel %vm940, %v942, %v938
      %v944 = vrcp.pop %v591
      %v945 = vmul.f32 %v591, %v944
      %v946 = vsub.f32 1.0, %v945
      %v947 = vmul.f32 %v944, %v946
      %v948 = vadd.f32 %v944, %v947
      %vm949 = vweird.f32 %v591
      %vm950 = vweird.f32 %v944
      %vm951 = vmor %vm949, %vm950
      %v952 = vsel %vm951, %v944, %v948
      %v953 = vand.u32 2147483647, %v591
      %vm954 = vcmp.eq.f32.partialorder %v953, 8.507059e+37
      %v955 = vand.u32 %v591, 2147483648
      %v956 = vor.u32 1.1754944e-38, %v955
      %v957 = vsel %vm954, %v956, %v952
      %v958 = vrcp.pop %v592
      %v959 = vmul.f32 %v592, %v958
      %v960 = vsub.f32 1.0, %v959
      %v961 = vmul.f32 %v958, %v960
      %v962 = vadd.f32 %v958, %v961
      %vm963 = vweird.f32 %v592
      %vm964 = vweird.f32 %v958
      %vm965 = vmor %vm963, %vm964
      %v966 = vsel %vm965, %v958, %v962
      %v967 = vand.u32 2147483647, %v592
      %vm968 = vcmp.eq.f32.partialorder %v967, 8.507059e+37
      %v969 = vand.u32 %v592, 2147483648
      %v970 = vor.u32 1.1754944e-38, %v969
      %v971 = vsel %vm968, %v970, %v966
      %v972 = vrcp.pop %v593
      %v973 = vmul.f32 %v593, %v972
      %v974 = vsub.f32 1.0, %v973
      %v975 = vmul.f32 %v972, %v974
      %v976 = vadd.f32 %v972, %v975
      %vm977 = vweird.f32 %v593
      %vm978 = vweird.f32 %v972
      %vm979 = vmor %vm977, %vm978
      %v980 = vsel %vm979, %v972, %v976
      %v981 = vand.u32 2147483647, %v593
      %vm982 = vcmp.eq.f32.partialorder %v981, 8.507059e+37
      %v983 = vand.u32 %v593, 2147483648
      %v984 = vor.u32 1.1754944e-38, %v983
      %v985 = vsel %vm982, %v984, %v980
      %v986 = vrcp.pop %v594
      %v987 = vmul.f32 %v594, %v986
      %v988 = vsub.f32 1.0, %v987
      %v989 = vmul.f32 %v986, %v988
      %v990 = vadd.f32 %v986, %v989
      %vm991 = vweird.f32 %v594
      %vm992 = vweird.f32 %v986
      %vm993 = vmor %vm991, %vm992
      %v994 = vsel %vm993, %v986, %v990
      %v995 = vand.u32 2147483647, %v594
      %vm996 = vcmp.eq.f32.partialorder %v995, 8.507059e+37
      %v997 = vand.u32 %v594, 2147483648
      %v998 = vor.u32 1.1754944e-38, %v997
      %v999 = vsel %vm996, %v998, %v994
      %v1000 = vrcp.pop %v595
      %v1001 = vmul.f32 %v595, %v1000
      %v1002 = vsub.f32 1.0, %v1001
      %v1003 = vmul.f32 %v1000, %v1002
      %v1004 = vadd.f32 %v1000, %v1003
      %vm1005 = vweird.f32 %v595
      %vm1006 = vweird.f32 %v1000
      %vm1007 = vmor %vm1005, %vm1006
      %v1008 = vsel %vm1007, %v1000, %v1004
      %v1009 = vand.u32 2147483647, %v595
      %vm1010 = vcmp.eq.f32.partialorder %v1009, 8.507059e+37
      %v1011 = vand.u32 %v595, 2147483648
      %v1012 = vor.u32 1.1754944e-38, %v1011
      %v1013 = vsel %vm1010, %v1012, %v1008
      %v1014 = vrcp.pop %v596
      %v1015 = vmul.f32 %v596, %v1014
      %v1016 = vsub.f32 1.0, %v1015
      %v1017 = vmul.f32 %v1014, %v1016
      %v1018 = vadd.f32 %v1014, %v1017
      %vm1019 = vweird.f32 %v596
      %vm1020 = vweird.f32 %v1014
      %vm1021 = vmor %vm1019, %vm1020
      %v1022 = vsel %vm1021, %v1014, %v1018
      %v1023 = vand.u32 2147483647, %v596
      %vm1024 = vcmp.eq.f32.partialorder %v1023, 8.507059e+37
      %v1025 = vand.u32 %v596, 2147483648
      %v1026 = vor.u32 1.1754944e-38, %v1025
      %v1027 = vsel %vm1024, %v1026, %v1022
      %v1028 = vrcp.pop %v597
      %v1029 = vmul.f32 %v597, %v1028
      %v1030 = vsub.f32 1.0, %v1029
      %v1031 = vmul.f32 %v1028, %v1030
      %v1032 = vadd.f32 %v1028, %v1031
      %vm1033 = vweird.f32 %v597
      %vm1034 = vweird.f32 %v1028
      %vm1035 = vmor %vm1033, %vm1034
      %v1036 = vsel %vm1035, %v1028, %v1032
      %v1037 = vand.u32 2147483647, %v597
      %vm1038 = vcmp.eq.f32.partialorder %v1037, 8.507059e+37
      %v1039 = vand.u32 %v597, 2147483648
      %v1040 = vor.u32 1.1754944e-38, %v1039
      %v1041 = vsel %vm1038, %v1040, %v1036
      %v1042 = vrcp.pop %v598
      %v1043 = vmul.f32 %v598, %v1042
      %v1044 = vsub.f32 1.0, %v1043
      %v1045 = vmul.f32 %v1042, %v1044
      %v1046 = vadd.f32 %v1042, %v1045
      %vm1047 = vweird.f32 %v598
      %vm1048 = vweird.f32 %v1042
      %vm1049 = vmor %vm1047, %vm1048
      %v1050 = vsel %vm1049, %v1042, %v1046
      %v1051 = vand.u32 2147483647, %v598
      %vm1052 = vcmp.eq.f32.partialorder %v1051, 8.507059e+37
      %v1053 = vand.u32 %v598, 2147483648
      %v1054 = vor.u32 1.1754944e-38, %v1053
      %v1055 = vsel %vm1052, %v1054, %v1050
      %v1056 = vrcp.pop %v599
      %v1057 = vmul.f32 %v599, %v1056
      %v1058 = vsub.f32 1.0, %v1057
      %v1059 = vmul.f32 %v1056, %v1058
      %v1060 = vadd.f32 %v1056, %v1059
      %vm1061 = vweird.f32 %v599
      %vm1062 = vweird.f32 %v1056
      %vm1063 = vmor %vm1061, %vm1062
      %v1064 = vsel %vm1063, %v1056, %v1060
      %v1065 = vand.u32 2147483647, %v599
      %vm1066 = vcmp.eq.f32.partialorder %v1065, 8.507059e+37
      %v1067 = vand.u32 %v599, 2147483648
      %v1068 = vor.u32 1.1754944e-38, %v1067
      %v1069 = vsel %vm1066, %v1068, %v1064
      %v1070 = vrcp.pop %v600
      %v1071 = vmul.f32 %v600, %v1070
      %v1072 = vsub.f32 1.0, %v1071
      %v1073 = vmul.f32 %v1070, %v1072
      %v1074 = vadd.f32 %v1070, %v1073
      %vm1075 = vweird.f32 %v600
      %vm1076 = vweird.f32 %v1070
      %vm1077 = vmor %vm1075, %vm1076
      %v1078 = vsel %vm1077, %v1070, %v1074
      %v1079 = vand.u32 2147483647, %v600
      %vm1080 = vcmp.eq.f32.partialorder %v1079, 8.507059e+37
      %v1081 = vand.u32 %v600, 2147483648
      %v1082 = vor.u32 1.1754944e-38, %v1081
      %v1083 = vsel %vm1080, %v1082, %v1078
      %v1084 = vrcp.pop %v601
      %v1085 = vmul.f32 %v601, %v1084
      %v1086 = vsub.f32 1.0, %v1085
      %v1087 = vmul.f32 %v1084, %v1086
      %v1088 = vadd.f32 %v1084, %v1087
      %vm1089 = vweird.f32 %v601
      %vm1090 = vweird.f32 %v1084
      %vm1091 = vmor %vm1089, %vm1090
      %v1092 = vsel %vm1091, %v1084, %v1088
      %v1093 = vand.u32 2147483647, %v601
      %vm1094 = vcmp.eq.f32.partialorder %v1093, 8.507059e+37
      %v1095 = vand.u32 %v601, 2147483648
      %v1096 = vor.u32 1.1754944e-38, %v1095
      %v1097 = vsel %vm1094, %v1096, %v1092
      %v1098 = vrcp.pop %v602
      %v1099 = vmul.f32 %v602, %v1098
      %v1100 = vsub.f32 1.0, %v1099
      %v1101 = vmul.f32 %v1098, %v1100
      %v1102 = vadd.f32 %v1098, %v1101
      %vm1103 = vweird.f32 %v602
      %vm1104 = vweird.f32 %v1098
      %vm1105 = vmor %vm1103, %vm1104
      %v1106 = vsel %vm1105, %v1098, %v1102
      %v1107 = vand.u32 2147483647, %v602
      %vm1108 = vcmp.eq.f32.partialorder %v1107, 8.507059e+37
      %v1109 = vand.u32 %v602, 2147483648
      %v1110 = vor.u32 1.1754944e-38, %v1109
      %v1111 = vsel %vm1108, %v1110, %v1106
      %v1112 = vrcp.pop %v603
      %v1113 = vmul.f32 %v603, %v1112
      %v1114 = vsub.f32 1.0, %v1113
      %v1115 = vmul.f32 %v1112, %v1114
      %v1116 = vadd.f32 %v1112, %v1115
      %vm1117 = vweird.f32 %v603
      %vm1118 = vweird.f32 %v1112
      %vm1119 = vmor %vm1117, %vm1118
      %v1120 = vsel %vm1119, %v1112, %v1116
      %v1121 = vand.u32 2147483647, %v603
      %vm1122 = vcmp.eq.f32.partialorder %v1121, 8.507059e+37
      %v1123 = vand.u32 %v603, 2147483648
      %v1124 = vor.u32 1.1754944e-38, %v1123
      %v1125 = vsel %vm1122, %v1124, %v1120
      %v1126 = vrcp.pop %v604
      %v1127 = vmul.f32 %v604, %v1126
      %v1128 = vsub.f32 1.0, %v1127
      %v1129 = vmul.f32 %v1126, %v1128
      %v1130 = vadd.f32 %v1126, %v1129
      %vm1131 = vweird.f32 %v604
      %vm1132 = vweird.f32 %v1126
      %vm1133 = vmor %vm1131, %vm1132
      %v1134 = vsel %vm1133, %v1126, %v1130
      %v1135 = vand.u32 2147483647, %v604
      %vm1136 = vcmp.eq.f32.partialorder %v1135, 8.507059e+37
      %v1137 = vand.u32 %v604, 2147483648
      %v1138 = vor.u32 1.1754944e-38, %v1137
      %v1139 = vsel %vm1136, %v1138, %v1134
      %v1140 = vrcp.pop %v605
      %v1141 = vmul.f32 %v605, %v1140
      %v1142 = vsub.f32 1.0, %v1141
      %v1143 = vmul.f32 %v1140, %v1142
      %v1144 = vadd.f32 %v1140, %v1143
      %vm1145 = vweird.f32 %v605
      %vm1146 = vweird.f32 %v1140
      %vm1147 = vmor %vm1145, %vm1146
      %v1148 = vsel %vm1147, %v1140, %v1144
      %v1149 = vand.u32 2147483647, %v605
      %vm1150 = vcmp.eq.f32.partialorder %v1149, 8.507059e+37
      %v1151 = vand.u32 %v605, 2147483648
      %v1152 = vor.u32 1.1754944e-38, %v1151
      %v1153 = vsel %vm1150, %v1152, %v1148
      %v1154 = vrcp.pop %v606
      %v1155 = vmul.f32 %v606, %v1154
      %v1156 = vsub.f32 1.0, %v1155
      %v1157 = vmul.f32 %v1154, %v1156
      %v1158 = vadd.f32 %v1154, %v1157
      %vm1159 = vweird.f32 %v606
      %vm1160 = vweird.f32 %v1154
      %vm1161 = vmor %vm1159, %vm1160
      %v1162 = vsel %vm1161, %v1154, %v1158
      %v1163 = vand.u32 2147483647, %v606
      %vm1164 = vcmp.eq.f32.partialorder %v1163, 8.507059e+37
      %v1165 = vand.u32 %v606, 2147483648
      %v1166 = vor.u32 1.1754944e-38, %v1165
      %v1167 = vsel %vm1164, %v1166, %v1162
      %v1168 = vrcp.pop %v607
      %v1169 = vmul.f32 %v607, %v1168
      %v1170 = vsub.f32 1.0, %v1169
      %v1171 = vmul.f32 %v1168, %v1170
      %v1172 = vadd.f32 %v1168, %v1171
      %vm1173 = vweird.f32 %v607
      %vm1174 = vweird.f32 %v1168
      %vm1175 = vmor %vm1173, %vm1174
      %v1176 = vsel %vm1175, %v1168, %v1172
      %v1177 = vand.u32 2147483647, %v607
      %vm1178 = vcmp.eq.f32.partialorder %v1177, 8.507059e+37
      %v1179 = vand.u32 %v607, 2147483648
      %v1180 = vor.u32 1.1754944e-38, %v1179
      %v1181 = vsel %vm1178, %v1180, %v1176
      %v1182 = vrcp.pop %v608
      %v1183 = vmul.f32 %v608, %v1182
      %v1184 = vsub.f32 1.0, %v1183
      %v1185 = vmul.f32 %v1182, %v1184
      %v1186 = vadd.f32 %v1182, %v1185
      %vm1187 = vweird.f32 %v608
      %vm1188 = vweird.f32 %v1182
      %vm1189 = vmor %vm1187, %vm1188
      %v1190 = vsel %vm1189, %v1182, %v1186
      %v1191 = vand.u32 2147483647, %v608
      %vm1192 = vcmp.eq.f32.partialorder %v1191, 8.507059e+37
      %v1193 = vand.u32 %v608, 2147483648
      %v1194 = vor.u32 1.1754944e-38, %v1193
      %v1195 = vsel %vm1192, %v1194, %v1190
      %v1196 = vrcp.pop %v609
      %v1197 = vmul.f32 %v609, %v1196
      %v1198 = vsub.f32 1.0, %v1197
      %v1199 = vmul.f32 %v1196, %v1198
      %v1200 = vadd.f32 %v1196, %v1199
      %vm1201 = vweird.f32 %v609
      %vm1202 = vweird.f32 %v1196
      %vm1203 = vmor %vm1201, %vm1202
      %v1204 = vsel %vm1203, %v1196, %v1200
      %v1205 = vand.u32 2147483647, %v609
      %vm1206 = vcmp.eq.f32.partialorder %v1205, 8.507059e+37
      %v1207 = vand.u32 %v609, 2147483648
      %v1208 = vor.u32 1.1754944e-38, %v1207
      %v1209 = vsel %vm1206, %v1208, %v1204
      %v1210 = vrcp.pop %v610
      %v1211 = vmul.f32 %v610, %v1210
      %v1212 = vsub.f32 1.0, %v1211
      %v1213 = vmul.f32 %v1210, %v1212
      %v1214 = vadd.f32 %v1210, %v1213
      %vm1215 = vweird.f32 %v610
      %vm1216 = vweird.f32 %v1210
      %vm1217 = vmor %vm1215, %vm1216
      %v1218 = vsel %vm1217, %v1210, %v1214
      %v1219 = vand.u32 2147483647, %v610
      %vm1220 = vcmp.eq.f32.partialorder %v1219, 8.507059e+37
      %v1221 = vand.u32 %v610, 2147483648
      %v1222 = vor.u32 1.1754944e-38, %v1221
      %v1223 = vsel %vm1220, %v1222, %v1218
      %v1224 = vrcp.pop %v611
      %v1225 = vmul.f32 %v611, %v1224
      %v1226 = vsub.f32 1.0, %v1225
      %v1227 = vmul.f32 %v1224, %v1226
      %v1228 = vadd.f32 %v1224, %v1227
      %vm1229 = vweird.f32 %v611
      %vm1230 = vweird.f32 %v1224
      %vm1231 = vmor %vm1229, %vm1230
      %v1232 = vsel %vm1231, %v1224, %v1228
      %v1233 = vand.u32 2147483647, %v611
      %vm1234 = vcmp.eq.f32.partialorder %v1233, 8.507059e+37
      %v1235 = vand.u32 %v611, 2147483648
      %v1236 = vor.u32 1.1754944e-38, %v1235
      %v1237 = vsel %vm1234, %v1236, %v1232
      %v1238 = vrcp.pop %v612
      %v1239 = vmul.f32 %v612, %v1238
      %v1240 = vsub.f32 1.0, %v1239
      %v1241 = vmul.f32 %v1238, %v1240
      %v1242 = vadd.f32 %v1238, %v1241
      %vm1243 = vweird.f32 %v612
      %vm1244 = vweird.f32 %v1238
      %vm1245 = vmor %vm1243, %vm1244
      %v1246 = vsel %vm1245, %v1238, %v1242
      %v1247 = vand.u32 2147483647, %v612
      %vm1248 = vcmp.eq.f32.partialorder %v1247, 8.507059e+37
      %v1249 = vand.u32 %v612, 2147483648
      %v1250 = vor.u32 1.1754944e-38, %v1249
      %v1251 = vsel %vm1248, %v1250, %v1246
      %v1252 = vrcp.pop %v613
      %v1253 = vmul.f32 %v613, %v1252
      %v1254 = vsub.f32 1.0, %v1253
      %v1255 = vmul.f32 %v1252, %v1254
      %v1256 = vadd.f32 %v1252, %v1255
      %vm1257 = vweird.f32 %v613
      %vm1258 = vweird.f32 %v1252
      %vm1259 = vmor %vm1257, %vm1258
      %v1260 = vsel %vm1259, %v1252, %v1256
      %v1261 = vand.u32 2147483647, %v613
      %vm1262 = vcmp.eq.f32.partialorder %v1261, 8.507059e+37
      %v1263 = vand.u32 %v613, 2147483648
      %v1264 = vor.u32 1.1754944e-38, %v1263
      %v1265 = vsel %vm1262, %v1264, %v1260
      %v1266 = vrcp.pop %v614
      %v1267 = vmul.f32 %v614, %v1266
      %v1268 = vsub.f32 1.0, %v1267
      %v1269 = vmul.f32 %v1266, %v1268
      %v1270 = vadd.f32 %v1266, %v1269
      %vm1271 = vweird.f32 %v614
      %vm1272 = vweird.f32 %v1266
      %vm1273 = vmor %vm1271, %vm1272
      %v1274 = vsel %vm1273, %v1266, %v1270
      %v1275 = vand.u32 2147483647, %v614
      %vm1276 = vcmp.eq.f32.partialorder %v1275, 8.507059e+37
      %v1277 = vand.u32 %v614, 2147483648
      %v1278 = vor.u32 1.1754944e-38, %v1277
      %v1279 = vsel %vm1276, %v1278, %v1274
      %v1280 = vrcp.pop %v615
      %v1281 = vmul.f32 %v615, %v1280
      %v1282 = vsub.f32 1.0, %v1281
      %v1283 = vmul.f32 %v1280, %v1282
      %v1284 = vadd.f32 %v1280, %v1283
      %vm1285 = vweird.f32 %v615
      %vm1286 = vweird.f32 %v1280
      %vm1287 = vmor %vm1285, %vm1286
      %v1288 = vsel %vm1287, %v1280, %v1284
      %v1289 = vand.u32 2147483647, %v615
      %vm1290 = vcmp.eq.f32.partialorder %v1289, 8.507059e+37
      %v1291 = vand.u32 %v615, 2147483648
      %v1292 = vor.u32 1.1754944e-38, %v1291
      %v1293 = vsel %vm1290, %v1292, %v1288
      %v1294 = vrcp.pop %v616
      %v1295 = vmul.f32 %v616, %v1294
      %v1296 = vsub.f32 1.0, %v1295
      %v1297 = vmul.f32 %v1294, %v1296
      %v1298 = vadd.f32 %v1294, %v1297
      %vm1299 = vweird.f32 %v616
      %vm1300 = vweird.f32 %v1294
      %vm1301 = vmor %vm1299, %vm1300
      %v1302 = vsel %vm1301, %v1294, %v1298
      %v1303 = vand.u32 2147483647, %v616
      %vm1304 = vcmp.eq.f32.partialorder %v1303, 8.507059e+37
      %v1305 = vand.u32 %v616, 2147483648
      %v1306 = vor.u32 1.1754944e-38, %v1305
      %v1307 = vsel %vm1304, %v1306, %v1302
      %v1308 = vrcp.pop %v617
      %v1309 = vmul.f32 %v617, %v1308
      %v1310 = vsub.f32 1.0, %v1309
      %v1311 = vmul.f32 %v1308, %v1310
      %v1312 = vadd.f32 %v1308, %v1311
      %vm1313 = vweird.f32 %v617
      %vm1314 = vweird.f32 %v1308
      %vm1315 = vmor %vm1313, %vm1314
      %v1316 = vsel %vm1315, %v1308, %v1312
      %v1317 = vand.u32 2147483647, %v617
      %vm1318 = vcmp.eq.f32.partialorder %v1317, 8.507059e+37
      %v1319 = vand.u32 %v617, 2147483648
      %v1320 = vor.u32 1.1754944e-38, %v1319
      %v1321 = vsel %vm1318, %v1320, %v1316
      %v1322 = vrcp.pop %v618
      %v1323 = vmul.f32 %v618, %v1322
      %v1324 = vsub.f32 1.0, %v1323
      %v1325 = vmul.f32 %v1322, %v1324
      %v1326 = vadd.f32 %v1322, %v1325
      %vm1327 = vweird.f32 %v618
      %vm1328 = vweird.f32 %v1322
      %vm1329 = vmor %vm1327, %vm1328
      %v1330 = vsel %vm1329, %v1322, %v1326
      %v1331 = vand.u32 2147483647, %v618
      %vm1332 = vcmp.eq.f32.partialorder %v1331, 8.507059e+37
      %v1333 = vand.u32 %v618, 2147483648
      %v1334 = vor.u32 1.1754944e-38, %v1333
      %v1335 = vsel %vm1332, %v1334, %v1330
      %v1336 = vrcp.pop %v619
      %v1337 = vmul.f32 %v619, %v1336
      %v1338 = vsub.f32 1.0, %v1337
      %v1339 = vmul.f32 %v1336, %v1338
      %v1340 = vadd.f32 %v1336, %v1339
      %vm1341 = vweird.f32 %v619
      %vm1342 = vweird.f32 %v1336
      %vm1343 = vmor %vm1341, %vm1342
      %v1344 = vsel %vm1343, %v1336, %v1340
      %v1345 = vand.u32 2147483647, %v619
      %vm1346 = vcmp.eq.f32.partialorder %v1345, 8.507059e+37
      %v1347 = vand.u32 %v619, 2147483648
      %v1348 = vor.u32 1.1754944e-38, %v1347
      %v1349 = vsel %vm1346, %v1348, %v1344
      %v1350 = vrcp.pop %v620
      %v1351 = vmul.f32 %v620, %v1350
      %v1352 = vsub.f32 1.0, %v1351
      %v1353 = vmul.f32 %v1350, %v1352
      %v1354 = vadd.f32 %v1350, %v1353
      %vm1355 = vweird.f32 %v620
      %vm1356 = vweird.f32 %v1350
      %vm1357 = vmor %vm1355, %vm1356
      %v1358 = vsel %vm1357, %v1350, %v1354
      %v1359 = vand.u32 2147483647, %v620
      %vm1360 = vcmp.eq.f32.partialorder %v1359, 8.507059e+37
      %v1361 = vand.u32 %v620, 2147483648
      %v1362 = vor.u32 1.1754944e-38, %v1361
      %v1363 = vsel %vm1360, %v1362, %v1358
      %v1364 = vrcp.pop %v621
      %v1365 = vmul.f32 %v621, %v1364
      %v1366 = vsub.f32 1.0, %v1365
      %v1367 = vmul.f32 %v1364, %v1366
      %v1368 = vadd.f32 %v1364, %v1367
      %vm1369 = vweird.f32 %v621
      %vm1370 = vweird.f32 %v1364
      %vm1371 = vmor %vm1369, %vm1370
      %v1372 = vsel %vm1371, %v1364, %v1368
      %v1373 = vand.u32 2147483647, %v621
      %vm1374 = vcmp.eq.f32.partialorder %v1373, 8.507059e+37
      %v1375 = vand.u32 %v621, 2147483648
      %v1376 = vor.u32 1.1754944e-38, %v1375
      %v1377 = vsel %vm1374, %v1376, %v1372
      %v1378 = vlaneseq
      %v1379 = vshrl.u32 %v1378, 7
      %v1380 = vadd.s32 %v1379, 8
      %v1381 = vadd.s32 %v1379, 16
      %vm1382 = vcmp.ge.s32.totalorder %v1379, 1
      %vm1383 = vcmp.ge.s32.totalorder %v1380, 1
      %vm1384 = vcmp.ge.s32.totalorder %v1381, 1
      %vm1385 = vmand 0, %vm1382
      %vm1386 = vmand 0, %vm1383
      %vm1387 = vmand 0, %vm1384
      %vm1388 = vmand 1, %vm1382
      %vm1389 = vmand 1, %vm1383
      %vm1390 = vmand 1, %vm1384
      %vm1391 = vcmp.le.s32.totalorder %v1379, 16
      %vm1392 = vcmp.le.s32.totalorder %v1380, 16
      %vm1393 = vcmp.le.s32.totalorder %v1381, 16
      %vm1394 = vmand %vm1385, %vm1391
      %vm1395 = vmand %vm1386, %vm1392
      %vm1396 = vmand %vm1387, %vm1393
      %vm1397 = vmand %vm1388, %vm1391
      %vm1398 = vmand %vm1389, %vm1392
      %vm1399 = vmand %vm1390, %vm1393
      %v1400 = vsel %vm1394, %v635, 0.0
      %v1401 = vsel %vm1395, %v649, 0.0
      %v1402 = vsel %vm1396, %v663, 0.0
      %v1403 = vsel %vm1397, %v677, 0.0
      %v1404 = vsel %vm1398, %v691, 0.0
      %v1405 = vsel %vm1399, %v705, 0.0
      %v1406 = vsel %vm1397, %v719, 0.0
      %v1407 = vsel %vm1398, %v733, 0.0
      %v1408 = vsel %vm1399, %v747, 0.0
      %v1409 = vsel %vm1397, %v761, 0.0
      %v1410 = vsel %vm1398, %v775, 0.0
      %v1411 = vsel %vm1399, %v789, 0.0
      %v1412 = vsel %vm1397, %v803, 0.0
      %v1413 = vsel %vm1398, %v817, 0.0
      %v1414 = vsel %vm1399, %v831, 0.0
      %v1415 = vsel %vm1397, %v845, 0.0
      %v1416 = vsel %vm1398, %v859, 0.0
      %v1417 = vsel %vm1399, %v873, 0.0
      %v1418 = vsel %vm1397, %v887, 0.0
      %v1419 = vsel %vm1398, %v901, 0.0
      %v1420 = vsel %vm1399, %v915, 0.0
      %v1421 = vsel %vm1397, %v929, 0.0
      %v1422 = vsel %vm1398, %v943, 0.0
      %v1423 = vsel %vm1399, %v957, 0.0
      %v1424 = vsel %vm1397, %v971, 0.0
      %v1425 = vsel %vm1398, %v985, 0.0
      %v1426 = vsel %vm1399, %v999, 0.0
      %v1427 = vsel %vm1397, %v1013, 0.0
      %v1428 = vsel %vm1398, %v1027, 0.0
      %v1429 = vsel %vm1399, %v1041, 0.0
      %v1430 = vsel %vm1397, %v1055, 0.0
      %v1431 = vsel %vm1398, %v1069, 0.0
      %v1432 = vsel %vm1399, %v1083, 0.0
      %v1433 = vsel %vm1397, %v1097, 0.0
      %v1434 = vsel %vm1398, %v1111, 0.0
      %v1435 = vsel %vm1399, %v1125, 0.0
      %v1436 = vsel %vm1397, %v1139, 0.0
      %v1437 = vsel %vm1398, %v1153, 0.0
      %v1438 = vsel %vm1399, %v1167, 0.0
      %v1439 = vsel %vm1397, %v1181, 0.0
      %v1440 = vsel %vm1398, %v1195, 0.0
      %v1441 = vsel %vm1399, %v1209, 0.0
      %v1442 = vsel %vm1397, %v1223, 0.0
      %v1443 = vsel %vm1398, %v1237, 0.0
      %v1444 = vsel %vm1399, %v1251, 0.0
      %v1445 = vsel %vm1397, %v1265, 0.0
      %v1446 = vsel %vm1398, %v1279, 0.0
      %v1447 = vsel %vm1399, %v1293, 0.0
      %v1448 = vsel %vm1397, %v1307, 0.0
      %v1449 = vsel %vm1398, %v1321, 0.0
      %v1450 = vsel %vm1399, %v1335, 0.0
      %v1451 = vsel %vm1394, %v1349, 0.0
      %v1452 = vsel %vm1395, %v1363, 0.0
      %v1453 = vsel %vm1396, %v1377, 0.0
      %vm1502 = vcmask 1046528
      %v1503 = vrot.slane %v1400, 1
      %v1504 = vrot.slane %v1401, 1
      %v1505 = vsel %vm1502, %v1503, %v1504
      %v1506 = vrot.slane %v1402, 1
      %v1507 = vsel %vm1502, %v1504, %v1506
      %v1508 = vrot.slane %v1403, 1
      %v1509 = vrot.slane %v1404, 1
      %v1510 = vsel %vm1502, %v1508, %v1509
      %v1511 = vrot.slane %v1405, 1
      %v1512 = vsel %vm1502, %v1509, %v1511
      %v1513 = vrot.slane %v1406, 1
      %v1514 = vrot.slane %v1407, 1
      %v1515 = vsel %vm1502, %v1513, %v1514
      %v1516 = vrot.slane %v1408, 1
      %v1517 = vsel %vm1502, %v1514, %v1516
      %v1518 = vrot.slane %v1409, 1
      %v1519 = vrot.slane %v1410, 1
      %v1520 = vsel %vm1502, %v1518, %v1519
      %v1521 = vrot.slane %v1411, 1
      %v1522 = vsel %vm1502, %v1519, %v1521
      %v1523 = vrot.slane %v1412, 1
      %v1524 = vrot.slane %v1413, 1
      %v1525 = vsel %vm1502, %v1523, %v1524
      %v1526 = vrot.slane %v1414, 1
      %v1527 = vsel %vm1502, %v1524, %v1526
      %v1528 = vrot.slane %v1415, 1
      %v1529 = vrot.slane %v1416, 1
      %v1530 = vsel %vm1502, %v1528, %v1529
      %v1531 = vrot.slane %v1417, 1
      %v1532 = vsel %vm1502, %v1529, %v1531
      %v1533 = vrot.slane %v1418, 1
      %v1534 = vrot.slane %v1419, 1
      %v1535 = vsel %vm1502, %v1533, %v1534
      %v1536 = vrot.slane %v1420, 1
      %v1537 = vsel %vm1502, %v1534, %v1536
      %v1538 = vrot.slane %v1421, 1
      %v1539 = vrot.slane %v1422, 1
      %v1540 = vsel %vm1502, %v1538, %v1539
      %v1541 = vrot.slane %v1423, 1
      %v1542 = vsel %vm1502, %v1539, %v1541
      %v1543 = vrot.slane %v1424, 1
      %v1544 = vrot.slane %v1425, 1
      %v1545 = vsel %vm1502, %v1543, %v1544
      %v1546 = vrot.slane %v1426, 1
      %v1547 = vsel %vm1502, %v1544, %v1546
      %v1548 = vrot.slane %v1427, 1
      %v1549 = vrot.slane %v1428, 1
      %v1550 = vsel %vm1502, %v1548, %v1549
      %v1551 = vrot.slane %v1429, 1
      %v1552 = vsel %vm1502, %v1549, %v1551
      %v1553 = vrot.slane %v1430, 1
      %v1554 = vrot.slane %v1431, 1
      %v1555 = vsel %vm1502, %v1553, %v1554
      %v1556 = vrot.slane %v1432, 1
      %v1557 = vsel %vm1502, %v1554, %v1556
      %v1558 = vrot.slane %v1433, 1
      %v1559 = vrot.slane %v1434, 1
      %v1560 = vsel %vm1502, %v1558, %v1559
      %v1561 = vrot.slane %v1435, 1
      %v1562 = vsel %vm1502, %v1559, %v1561
      %v1563 = vrot.slane %v1436, 1
      %v1564 = vrot.slane %v1437, 1
      %v1565 = vsel %vm1502, %v1563, %v1564
      %v1566 = vrot.slane %v1438, 1
      %v1567 = vsel %vm1502, %v1564, %v1566
      %v1568 = vrot.slane %v1439, 1
      %v1569 = vrot.slane %v1440, 1
      %v1570 = vsel %vm1502, %v1568, %v1569
      %v1571 = vrot.slane %v1441, 1
      %v1572 = vsel %vm1502, %v1569, %v1571
      %v1573 = vrot.slane %v1442, 1
      %v1574 = vrot.slane %v1443, 1
      %v1575 = vsel %vm1502, %v1573, %v1574
      %v1576 = vrot.slane %v1444, 1
      %v1577 = vsel %vm1502, %v1574, %v1576
      %v1578 = vrot.slane %v1445, 1
      %v1579 = vrot.slane %v1446, 1
      %v1580 = vsel %vm1502, %v1578, %v1579
      %v1581 = vrot.slane %v1447, 1
      %v1582 = vsel %vm1502, %v1579, %v1581
      %1583 = vrot.lane.b32.xlu0 %v1505, 8
      %v1584 = vpop.permute.xlu0 %1583
      %1585 = vrot.lane.b32.xlu0 %v1507, 8
      %v1586 = vpop.permute.xlu0 %1585
      %1587 = vrot.lane.b32.xlu0 %v1510, 8
      %v1588 = vpop.permute.xlu0 %1587
      %1589 = vrot.lane.b32.xlu0 %v1512, 8
      %v1590 = vpop.permute.xlu0 %1589
      %1591 = vrot.lane.b32.xlu0 %v1515, 8
      %v1592 = vpop.permute.xlu0 %1591
      %1593 = vrot.lane.b32.xlu0 %v1517, 8
      %v1594 = vpop.permute.xlu0 %1593
      %1595 = vrot.lane.b32.xlu0 %v1520, 8
      %v1596 = vpop.permute.xlu0 %1595
      %1597 = vrot.lane.b32.xlu0 %v1522, 8
      %v1598 = vpop.permute.xlu0 %1597
      %1599 = vrot.lane.b32.xlu0 %v1525, 8
      %v1600 = vpop.permute.xlu0 %1599
      %1601 = vrot.lane.b32.xlu0 %v1527, 8
      %v1602 = vpop.permute.xlu0 %1601
      %1603 = vrot.lane.b32.xlu0 %v1530, 8
      %v1604 = vpop.permute.xlu0 %1603
      %1605 = vrot.lane.b32.xlu0 %v1532, 8
      %v1606 = vpop.permute.xlu0 %1605
      %1607 = vrot.lane.b32.xlu0 %v1535, 8
      %v1608 = vpop.permute.xlu0 %1607
      %1609 = vrot.lane.b32.xlu0 %v1537, 8
      %v1610 = vpop.permute.xlu0 %1609
      %1611 = vrot.lane.b32.xlu0 %v1540, 8
      %v1612 = vpop.permute.xlu0 %1611
      %1613 = vrot.lane.b32.xlu0 %v1542, 8
      %v1614 = vpop.permute.xlu0 %1613
      %1615 = vrot.lane.b32.xlu0 %v1545, 8
      %v1616 = vpop.permute.xlu0 %1615
      %1617 = vrot.lane.b32.xlu0 %v1547, 8
      %v1618 = vpop.permute.xlu0 %1617
      %1619 = vrot.lane.b32.xlu0 %v1550, 8
      %v1620 = vpop.permute.xlu0 %1619
      %1621 = vrot.lane.b32.xlu0 %v1552, 8
      %v1622 = vpop.permute.xlu0 %1621
      %1623 = vrot.lane.b32.xlu0 %v1555, 8
      %v1624 = vpop.permute.xlu0 %1623
      %1625 = vrot.lane.b32.xlu0 %v1557, 8
      %v1626 = vpop.permute.xlu0 %1625
      %1627 = vrot.lane.b32.xlu0 %v1560, 8
      %v1628 = vpop.permute.xlu0 %1627
      %1629 = vrot.lane.b32.xlu0 %v1562, 8
      %v1630 = vpop.permute.xlu0 %1629
      %1631 = vrot.lane.b32.xlu0 %v1565, 8
      %v1632 = vpop.permute.xlu0 %1631
      %1633 = vrot.lane.b32.xlu0 %v1567, 8
      %v1634 = vpop.permute.xlu0 %1633
      %1635 = vrot.lane.b32.xlu0 %v1570, 8
      %v1636 = vpop.permute.xlu0 %1635
      %1637 = vrot.lane.b32.xlu0 %v1572, 8
      %v1638 = vpop.permute.xlu0 %1637
      %1639 = vrot.lane.b32.xlu0 %v1575, 8
      %v1640 = vpop.permute.xlu0 %1639
      %1641 = vrot.lane.b32.xlu0 %v1577, 8
      %v1642 = vpop.permute.xlu0 %1641
      %1643 = vrot.lane.b32.xlu0 %v1580, 8
      %v1644 = vpop.permute.xlu0 %1643
      %1645 = vrot.lane.b32.xlu0 %v1582, 8
      %v1646 = vpop.permute.xlu0 %1645
      %vm1679 = vcmask 1045504
      %v1680 = vrot.slane %v1400, 2
      %v1681 = vrot.slane %v1401, 2
      %v1682 = vsel %vm1679, %v1680, %v1681
      %v1683 = vrot.slane %v1402, 2
      %v1684 = vsel %vm1679, %v1681, %v1683
      %v1685 = vrot.slane %v1403, 2
      %v1686 = vrot.slane %v1404, 2
      %v1687 = vsel %vm1679, %v1685, %v1686
      %v1688 = vrot.slane %v1405, 2
      %v1689 = vsel %vm1679, %v1686, %v1688
      %v1690 = vrot.slane %v1406, 2
      %v1691 = vrot.slane %v1407, 2
      %v1692 = vsel %vm1679, %v1690, %v1691
      %v1693 = vrot.slane %v1408, 2
      %v1694 = vsel %vm1679, %v1691, %v1693
      %v1695 = vrot.slane %v1409, 2
      %v1696 = vrot.slane %v1410, 2
      %v1697 = vsel %vm1679, %v1695, %v1696
      %v1698 = vrot.slane %v1411, 2
      %v1699 = vsel %vm1679, %v1696, %v1698
      %v1700 = vrot.slane %v1412, 2
      %v1701 = vrot.slane %v1413, 2
      %v1702 = vsel %vm1679, %v1700, %v1701
      %v1703 = vrot.slane %v1414, 2
      %v1704 = vsel %vm1679, %v1701, %v1703
      %v1705 = vrot.slane %v1415, 2
      %v1706 = vrot.slane %v1416, 2
      %v1707 = vsel %vm1679, %v1705, %v1706
      %v1708 = vrot.slane %v1417, 2
      %v1709 = vsel %vm1679, %v1706, %v1708
      %v1710 = vrot.slane %v1418, 2
      %v1711 = vrot.slane %v1419, 2
      %v1712 = vsel %vm1679, %v1710, %v1711
      %v1713 = vrot.slane %v1420, 2
      %v1714 = vsel %vm1679, %v1711, %v1713
      %v1715 = vrot.slane %v1421, 2
      %v1716 = vrot.slane %v1422, 2
      %v1717 = vsel %vm1679, %v1715, %v1716
      %v1718 = vrot.slane %v1423, 2
      %v1719 = vsel %vm1679, %v1716, %v1718
      %v1720 = vrot.slane %v1424, 2
      %v1721 = vrot.slane %v1425, 2
      %v1722 = vsel %vm1679, %v1720, %v1721
      %v1723 = vrot.slane %v1426, 2
      %v1724 = vsel %vm1679, %v1721, %v1723
      %v1725 = vrot.slane %v1427, 2
      %v1726 = vrot.slane %v1428, 2
      %v1727 = vsel %vm1679, %v1725, %v1726
      %v1728 = vrot.slane %v1429, 2
      %v1729 = vsel %vm1679, %v1726, %v1728
      %v1730 = vrot.slane %v1430, 2
      %v1731 = vrot.slane %v1431, 2
      %v1732 = vsel %vm1679, %v1730, %v1731
      %v1733 = vrot.slane %v1432, 2
      %v1734 = vsel %vm1679, %v1731, %v1733
      %v1735 = vrot.slane %v1433, 2
      %v1736 = vrot.slane %v1434, 2
      %v1737 = vsel %vm1679, %v1735, %v1736
      %v1738 = vrot.slane %v1435, 2
      %v1739 = vsel %vm1679, %v1736, %v1738
      %v1740 = vrot.slane %v1436, 2
      %v1741 = vrot.slane %v1437, 2
      %v1742 = vsel %vm1679, %v1740, %v1741
      %v1743 = vrot.slane %v1438, 2
      %v1744 = vsel %vm1679, %v1741, %v1743
      %v1745 = vrot.slane %v1439, 2
      %v1746 = vrot.slane %v1440, 2
      %v1747 = vsel %vm1679, %v1745, %v1746
      %v1748 = vrot.slane %v1441, 2
      %v1749 = vsel %vm1679, %v1746, %v1748
      %v1750 = vrot.slane %v1442, 2
      %v1751 = vrot.slane %v1443, 2
      %v1752 = vsel %vm1679, %v1750, %v1751
      %v1753 = vrot.slane %v1444, 2
      %v1754 = vsel %vm1679, %v1751, %v1753
      %v1755 = vrot.slane %v1445, 2
      %v1756 = vrot.slane %v1446, 2
      %v1757 = vsel %vm1679, %v1755, %v1756
      %v1758 = vrot.slane %v1447, 2
      %v1759 = vsel %vm1679, %v1756, %v1758
      %1760 = vrot.lane.b32.xlu0 %v1682, 16
      %v1761 = vpop.permute.xlu0 %1760
      %1762 = vrot.lane.b32.xlu0 %v1684, 16
      %v1763 = vpop.permute.xlu0 %1762
      %1764 = vrot.lane.b32.xlu0 %v1687, 16
      %v1765 = vpop.permute.xlu0 %1764
      %1766 = vrot.lane.b32.xlu0 %v1689, 16
      %v1767 = vpop.permute.xlu0 %1766
      %1768 = vrot.lane.b32.xlu0 %v1692, 16
      %v1769 = vpop.permute.xlu0 %1768
      %1770 = vrot.lane.b32.xlu0 %v1694, 16
      %v1771 = vpop.permute.xlu0 %1770
      %1772 = vrot.lane.b32.xlu0 %v1697, 16
      %v1773 = vpop.permute.xlu0 %1772
      %1774 = vrot.lane.b32.xlu0 %v1699, 16
      %v1775 = vpop.permute.xlu0 %1774
      %1776 = vrot.lane.b32.xlu0 %v1702, 16
      %v1777 = vpop.permute.xlu0 %1776
      %1778 = vrot.lane.b32.xlu0 %v1704, 16
      %v1779 = vpop.permute.xlu0 %1778
      %1780 = vrot.lane.b32.xlu0 %v1707, 16
      %v1781 = vpop.permute.xlu0 %1780
      %1782 = vrot.lane.b32.xlu0 %v1709, 16
      %v1783 = vpop.permute.xlu0 %1782
      %1784 = vrot.lane.b32.xlu0 %v1712, 16
      %v1785 = vpop.permute.xlu0 %1784
      %1786 = vrot.lane.b32.xlu0 %v1714, 16
      %v1787 = vpop.permute.xlu0 %1786
      %1788 = vrot.lane.b32.xlu0 %v1717, 16
      %v1789 = vpop.permute.xlu0 %1788
      %1790 = vrot.lane.b32.xlu0 %v1719, 16
      %v1791 = vpop.permute.xlu0 %1790
      %1792 = vrot.lane.b32.xlu0 %v1722, 16
      %v1793 = vpop.permute.xlu0 %1792
      %1794 = vrot.lane.b32.xlu0 %v1724, 16
      %v1795 = vpop.permute.xlu0 %1794
      %1796 = vrot.lane.b32.xlu0 %v1727, 16
      %v1797 = vpop.permute.xlu0 %1796
      %1798 = vrot.lane.b32.xlu0 %v1729, 16
      %v1799 = vpop.permute.xlu0 %1798
      %1800 = vrot.lane.b32.xlu0 %v1732, 16
      %v1801 = vpop.permute.xlu0 %1800
      %1802 = vrot.lane.b32.xlu0 %v1734, 16
      %v1803 = vpop.permute.xlu0 %1802
      %1804 = vrot.lane.b32.xlu0 %v1737, 16
      %v1805 = vpop.permute.xlu0 %1804
      %1806 = vrot.lane.b32.xlu0 %v1739, 16
      %v1807 = vpop.permute.xlu0 %1806
      %1808 = vrot.lane.b32.xlu0 %v1742, 16
      %v1809 = vpop.permute.xlu0 %1808
      %1810 = vrot.lane.b32.xlu0 %v1744, 16
      %v1811 = vpop.permute.xlu0 %1810
      %1812 = vrot.lane.b32.xlu0 %v1747, 16
      %v1813 = vpop.permute.xlu0 %1812
      %1814 = vrot.lane.b32.xlu0 %v1749, 16
      %v1815 = vpop.permute.xlu0 %1814
      %1816 = vrot.lane.b32.xlu0 %v1752, 16
      %v1817 = vpop.permute.xlu0 %1816
      %1818 = vrot.lane.b32.xlu0 %v1754, 16
      %v1819 = vpop.permute.xlu0 %1818
      %1820 = vrot.lane.b32.xlu0 %v1757, 16
      %v1821 = vpop.permute.xlu0 %1820
      %1822 = vrot.lane.b32.xlu0 %v1759, 16
      %v1823 = vpop.permute.xlu0 %1822
      %1858 = vrot.lane.b32.xlu0 %v1403, 24
      %v1859 = vpop.permute.xlu0 %1858
      %1860 = vrot.lane.b32.xlu0 %v1404, 24
      %v1861 = vpop.permute.xlu0 %1860
      %1862 = vrot.lane.b32.xlu0 %v1406, 24
      %v1863 = vpop.permute.xlu0 %1862
      %1864 = vrot.lane.b32.xlu0 %v1407, 24
      %v1865 = vpop.permute.xlu0 %1864
      %1866 = vrot.lane.b32.xlu0 %v1409, 24
      %v1867 = vpop.permute.xlu0 %1866
      %1868 = vrot.lane.b32.xlu0 %v1410, 24
      %v1869 = vpop.permute.xlu0 %1868
      %1870 = vrot.lane.b32.xlu0 %v1412, 24
      %v1871 = vpop.permute.xlu0 %1870
      %1872 = vrot.lane.b32.xlu0 %v1413, 24
      %v1873 = vpop.permute.xlu0 %1872
      %1874 = vrot.lane.b32.xlu0 %v1415, 24
      %v1875 = vpop.permute.xlu0 %1874
      %1876 = vrot.lane.b32.xlu0 %v1416, 24
      %v1877 = vpop.permute.xlu0 %1876
      %1878 = vrot.lane.b32.xlu0 %v1418, 24
      %v1879 = vpop.permute.xlu0 %1878
      %1880 = vrot.lane.b32.xlu0 %v1419, 24
      %v1881 = vpop.permute.xlu0 %1880
      %1882 = vrot.lane.b32.xlu0 %v1421, 24
      %v1883 = vpop.permute.xlu0 %1882
      %1884 = vrot.lane.b32.xlu0 %v1422, 24
      %v1885 = vpop.permute.xlu0 %1884
      %1886 = vrot.lane.b32.xlu0 %v1424, 24
      %v1887 = vpop.permute.xlu0 %1886
      %1888 = vrot.lane.b32.xlu0 %v1425, 24
      %v1889 = vpop.permute.xlu0 %1888
      %1890 = vrot.lane.b32.xlu0 %v1427, 24
      %v1891 = vpop.permute.xlu0 %1890
      %1892 = vrot.lane.b32.xlu0 %v1428, 24
      %v1893 = vpop.permute.xlu0 %1892
      %1894 = vrot.lane.b32.xlu0 %v1430, 24
      %v1895 = vpop.permute.xlu0 %1894
      %1896 = vrot.lane.b32.xlu0 %v1431, 24
      %v1897 = vpop.permute.xlu0 %1896
      %1898 = vrot.lane.b32.xlu0 %v1433, 24
      %v1899 = vpop.permute.xlu0 %1898
      %1900 = vrot.lane.b32.xlu0 %v1434, 24
      %v1901 = vpop.permute.xlu0 %1900
      %1902 = vrot.lane.b32.xlu0 %v1436, 24
      %v1903 = vpop.permute.xlu0 %1902
      %1904 = vrot.lane.b32.xlu0 %v1437, 24
      %v1905 = vpop.permute.xlu0 %1904
      %1906 = vrot.lane.b32.xlu0 %v1439, 24
      %v1907 = vpop.permute.xlu0 %1906
      %1908 = vrot.lane.b32.xlu0 %v1440, 24
      %v1909 = vpop.permute.xlu0 %1908
      %1910 = vrot.lane.b32.xlu0 %v1442, 24
      %v1911 = vpop.permute.xlu0 %1910
      %1912 = vrot.lane.b32.xlu0 %v1443, 24
      %v1913 = vpop.permute.xlu0 %1912
      %1914 = vrot.lane.b32.xlu0 %v1445, 24
      %v1915 = vpop.permute.xlu0 %1914
      %1916 = vrot.lane.b32.xlu0 %v1446, 24
      %v1917 = vpop.permute.xlu0 %1916
      %1918 = vrot.lane.b32.xlu0 %v1448, 24
      %v1919 = vpop.permute.xlu0 %1918
      %1920 = vrot.lane.b32.xlu0 %v1449, 24
      %v1921 = vpop.permute.xlu0 %1920
      %v1955 = vrot.slane %v1448, 1
      %v1956 = vrot.slane %v1449, 1
      %v1957 = vsel %vm1502, %v1955, %v1956
      %v1958 = vrot.slane %v1450, 1
      %v1959 = vsel %vm1502, %v1956, %v1958
      %1960 = vrot.lane.b32.xlu0 %v1510, 32
      %v1961 = vpop.permute.xlu0 %1960
      %1962 = vrot.lane.b32.xlu0 %v1512, 32
      %v1963 = vpop.permute.xlu0 %1962
      %1964 = vrot.lane.b32.xlu0 %v1515, 32
      %v1965 = vpop.permute.xlu0 %1964
      %1966 = vrot.lane.b32.xlu0 %v1517, 32
      %v1967 = vpop.permute.xlu0 %1966
      %1968 = vrot.lane.b32.xlu0 %v1520, 32
      %v1969 = vpop.permute.xlu0 %1968
      %1970 = vrot.lane.b32.xlu0 %v1522, 32
      %v1971 = vpop.permute.xlu0 %1970
      %1972 = vrot.lane.b32.xlu0 %v1525, 32
      %v1973 = vpop.permute.xlu0 %1972
      %1974 = vrot.lane.b32.xlu0 %v1527, 32
      %v1975 = vpop.permute.xlu0 %1974
      %1976 = vrot.lane.b32.xlu0 %v1530, 32
      %v1977 = vpop.permute.xlu0 %1976
      %1978 = vrot.lane.b32.xlu0 %v1532, 32
      %v1979 = vpop.permute.xlu0 %1978
      %1980 = vrot.lane.b32.xlu0 %v1535, 32
      %v1981 = vpop.permute.xlu0 %1980
      %1982 = vrot.lane.b32.xlu0 %v1537, 32
      %v1983 = vpop.permute.xlu0 %1982
      %1984 = vrot.lane.b32.xlu0 %v1540, 32
      %v1985 = vpop.permute.xlu0 %1984
      %1986 = vrot.lane.b32.xlu0 %v1542, 32
      %v1987 = vpop.permute.xlu0 %1986
      %1988 = vrot.lane.b32.xlu0 %v1545, 32
      %v1989 = vpop.permute.xlu0 %1988
      %1990 = vrot.lane.b32.xlu0 %v1547, 32
      %v1991 = vpop.permute.xlu0 %1990
      %1992 = vrot.lane.b32.xlu0 %v1550, 32
      %v1993 = vpop.permute.xlu0 %1992
      %1994 = vrot.lane.b32.xlu0 %v1552, 32
      %v1995 = vpop.permute.xlu0 %1994
      %1996 = vrot.lane.b32.xlu0 %v1555, 32
      %v1997 = vpop.permute.xlu0 %1996
      %1998 = vrot.lane.b32.xlu0 %v1557, 32
      %v1999 = vpop.permute.xlu0 %1998
      %2000 = vrot.lane.b32.xlu0 %v1560, 32
      %v2001 = vpop.permute.xlu0 %2000
      %2002 = vrot.lane.b32.xlu0 %v1562, 32
      %v2003 = vpop.permute.xlu0 %2002
      %2004 = vrot.lane.b32.xlu0 %v1565, 32
      %v2005 = vpop.permute.xlu0 %2004
      %2006 = vrot.lane.b32.xlu0 %v1567, 32
      %v2007 = vpop.permute.xlu0 %2006
      %2008 = vrot.lane.b32.xlu0 %v1570, 32
      %v2009 = vpop.permute.xlu0 %2008
      %2010 = vrot.lane.b32.xlu0 %v1572, 32
      %v2011 = vpop.permute.xlu0 %2010
      %2012 = vrot.lane.b32.xlu0 %v1575, 32
      %v2013 = vpop.permute.xlu0 %2012
      %2014 = vrot.lane.b32.xlu0 %v1577, 32
      %v2015 = vpop.permute.xlu0 %2014
      %2016 = vrot.lane.b32.xlu0 %v1580, 32
      %v2017 = vpop.permute.xlu0 %2016
      %2018 = vrot.lane.b32.xlu0 %v1582, 32
      %v2019 = vpop.permute.xlu0 %2018
      %2020 = vrot.lane.b32.xlu0 %v1957, 32
      %v2021 = vpop.permute.xlu0 %2020
      %2022 = vrot.lane.b32.xlu0 %v1959, 32
      %v2023 = vpop.permute.xlu0 %2022
      %v2056 = vrot.slane %v1448, 2
      %v2057 = vrot.slane %v1449, 2
      %v2058 = vsel %vm1679, %v2056, %v2057
      %v2059 = vrot.slane %v1450, 2
      %v2060 = vsel %vm1679, %v2057, %v2059
      %2061 = vrot.lane.b32.xlu0 %v1687, 40
      %v2062 = vpop.permute.xlu0 %2061
      %2063 = vrot.lane.b32.xlu0 %v1689, 40
      %v2064 = vpop.permute.xlu0 %2063
      %2065 = vrot.lane.b32.xlu0 %v1692, 40
      %v2066 = vpop.permute.xlu0 %2065
      %2067 = vrot.lane.b32.xlu0 %v1694, 40
      %v2068 = vpop.permute.xlu0 %2067
      %2069 = vrot.lane.b32.xlu0 %v1697, 40
      %v2070 = vpop.permute.xlu0 %2069
      %2071 = vrot.lane.b32.xlu0 %v1699, 40
      %v2072 = vpop.permute.xlu0 %2071
      %2073 = vrot.lane.b32.xlu0 %v1702, 40
      %v2074 = vpop.permute.xlu0 %2073
      %2075 = vrot.lane.b32.xlu0 %v1704, 40
      %v2076 = vpop.permute.xlu0 %2075
      %2077 = vrot.lane.b32.xlu0 %v1707, 40
      %v2078 = vpop.permute.xlu0 %2077
      %2079 = vrot.lane.b32.xlu0 %v1709, 40
      %v2080 = vpop.permute.xlu0 %2079
      %2081 = vrot.lane.b32.xlu0 %v1712, 40
      %v2082 = vpop.permute.xlu0 %2081
      %2083 = vrot.lane.b32.xlu0 %v1714, 40
      %v2084 = vpop.permute.xlu0 %2083
      %2085 = vrot.lane.b32.xlu0 %v1717, 40
      %v2086 = vpop.permute.xlu0 %2085
      %2087 = vrot.lane.b32.xlu0 %v1719, 40
      %v2088 = vpop.permute.xlu0 %2087
      %2089 = vrot.lane.b32.xlu0 %v1722, 40
      %v2090 = vpop.permute.xlu0 %2089
      %2091 = vrot.lane.b32.xlu0 %v1724, 40
      %v2092 = vpop.permute.xlu0 %2091
      %2093 = vrot.lane.b32.xlu0 %v1727, 40
      %v2094 = vpop.permute.xlu0 %2093
      %2095 = vrot.lane.b32.xlu0 %v1729, 40
      %v2096 = vpop.permute.xlu0 %2095
      %2097 = vrot.lane.b32.xlu0 %v1732, 40
      %v2098 = vpop.permute.xlu0 %2097
      %2099 = vrot.lane.b32.xlu0 %v1734, 40
      %v2100 = vpop.permute.xlu0 %2099
      %2101 = vrot.lane.b32.xlu0 %v1737, 40
      %v2102 = vpop.permute.xlu0 %2101
      %2103 = vrot.lane.b32.xlu0 %v1739, 40
      %v2104 = vpop.permute.xlu0 %2103
      %2105 = vrot.lane.b32.xlu0 %v1742, 40
      %v2106 = vpop.permute.xlu0 %2105
      %2107 = vrot.lane.b32.xlu0 %v1744, 40
      %v2108 = vpop.permute.xlu0 %2107
      %2109 = vrot.lane.b32.xlu0 %v1747, 40
      %v2110 = vpop.permute.xlu0 %2109
      %2111 = vrot.lane.b32.xlu0 %v1749, 40
      %v2112 = vpop.permute.xlu0 %2111
      %2113 = vrot.lane.b32.xlu0 %v1752, 40
      %v2114 = vpop.permute.xlu0 %2113
      %2115 = vrot.lane.b32.xlu0 %v1754, 40
      %v2116 = vpop.permute.xlu0 %2115
      %2117 = vrot.lane.b32.xlu0 %v1757, 40
      %v2118 = vpop.permute.xlu0 %2117
      %2119 = vrot.lane.b32.xlu0 %v1759, 40
      %v2120 = vpop.permute.xlu0 %2119
      %2121 = vrot.lane.b32.xlu0 %v2058, 40
      %v2122 = vpop.permute.xlu0 %2121
      %2123 = vrot.lane.b32.xlu0 %v2060, 40
      %v2124 = vpop.permute.xlu0 %2123
      %2159 = vrot.lane.b32.xlu0 %v1406, 48
      %v2160 = vpop.permute.xlu0 %2159
      %2161 = vrot.lane.b32.xlu0 %v1407, 48
      %v2162 = vpop.permute.xlu0 %2161
      %2163 = vrot.lane.b32.xlu0 %v1409, 48
      %v2164 = vpop.permute.xlu0 %2163
      %2165 = vrot.lane.b32.xlu0 %v1410, 48
      %v2166 = vpop.permute.xlu0 %2165
      %2167 = vrot.lane.b32.xlu0 %v1412, 48
      %v2168 = vpop.permute.xlu0 %2167
      %2169 = vrot.lane.b32.xlu0 %v1413, 48
      %v2170 = vpop.permute.xlu0 %2169
      %2171 = vrot.lane.b32.xlu0 %v1415, 48
      %v2172 = vpop.permute.xlu0 %2171
      %2173 = vrot.lane.b32.xlu0 %v1416, 48
      %v2174 = vpop.permute.xlu0 %2173
      %2175 = vrot.lane.b32.xlu0 %v1418, 48
      %v2176 = vpop.permute.xlu0 %2175
      %2177 = vrot.lane.b32.xlu0 %v1419, 48
      %v2178 = vpop.permute.xlu0 %2177
      %2179 = vrot.lane.b32.xlu0 %v1421, 48
      %v2180 = vpop.permute.xlu0 %2179
      %2181 = vrot.lane.b32.xlu0 %v1422, 48
      %v2182 = vpop.permute.xlu0 %2181
      %2183 = vrot.lane.b32.xlu0 %v1424, 48
      %v2184 = vpop.permute.xlu0 %2183
      %2185 = vrot.lane.b32.xlu0 %v1425, 48
      %v2186 = vpop.permute.xlu0 %2185
      %2187 = vrot.lane.b32.xlu0 %v1427, 48
      %v2188 = vpop.permute.xlu0 %2187
      %2189 = vrot.lane.b32.xlu0 %v1428, 48
      %v2190 = vpop.permute.xlu0 %2189
      %2191 = vrot.lane.b32.xlu0 %v1430, 48
      %v2192 = vpop.permute.xlu0 %2191
      %2193 = vrot.lane.b32.xlu0 %v1431, 48
      %v2194 = vpop.permute.xlu0 %2193
      %2195 = vrot.lane.b32.xlu0 %v1433, 48
      %v2196 = vpop.permute.xlu0 %2195
      %2197 = vrot.lane.b32.xlu0 %v1434, 48
      %v2198 = vpop.permute.xlu0 %2197
      %2199 = vrot.lane.b32.xlu0 %v1436, 48
      %v2200 = vpop.permute.xlu0 %2199
      %2201 = vrot.lane.b32.xlu0 %v1437, 48
      %v2202 = vpop.permute.xlu0 %2201
      %2203 = vrot.lane.b32.xlu0 %v1439, 48
      %v2204 = vpop.permute.xlu0 %2203
      %2205 = vrot.lane.b32.xlu0 %v1440, 48
      %v2206 = vpop.permute.xlu0 %2205
      %2207 = vrot.lane.b32.xlu0 %v1442, 48
      %v2208 = vpop.permute.xlu0 %2207
      %2209 = vrot.lane.b32.xlu0 %v1443, 48
      %v2210 = vpop.permute.xlu0 %2209
      %2211 = vrot.lane.b32.xlu0 %v1445, 48
      %v2212 = vpop.permute.xlu0 %2211
      %2213 = vrot.lane.b32.xlu0 %v1446, 48
      %v2214 = vpop.permute.xlu0 %2213
      %2215 = vrot.lane.b32.xlu0 %v1448, 48
      %v2216 = vpop.permute.xlu0 %2215
      %2217 = vrot.lane.b32.xlu0 %v1449, 48
      %v2218 = vpop.permute.xlu0 %2217
      %2219 = vrot.lane.b32.xlu0 %v1451, 48
      %v2220 = vpop.permute.xlu0 %2219
      %2221 = vrot.lane.b32.xlu0 %v1452, 48
      %v2222 = vpop.permute.xlu0 %2221
      %v2256 = vrot.slane %v1451, 1
      %v2257 = vrot.slane %v1452, 1
      %v2258 = vsel %vm1502, %v2256, %v2257
      %v2259 = vrot.slane %v1453, 1
      %v2260 = vsel %vm1502, %v2257, %v2259
      %2261 = vrot.lane.b32.xlu0 %v1515, 56
      %v2262 = vpop.permute.xlu0 %2261
      %2263 = vrot.lane.b32.xlu0 %v1517, 56
      %v2264 = vpop.permute.xlu0 %2263
      %2265 = vrot.lane.b32.xlu0 %v1520, 56
      %v2266 = vpop.permute.xlu0 %2265
      %2267 = vrot.lane.b32.xlu0 %v1522, 56
      %v2268 = vpop.permute.xlu0 %2267
      %2269 = vrot.lane.b32.xlu0 %v1525, 56
      %v2270 = vpop.permute.xlu0 %2269
      %2271 = vrot.lane.b32.xlu0 %v1527, 56
      %v2272 = vpop.permute.xlu0 %2271
      %2273 = vrot.lane.b32.xlu0 %v1530, 56
      %v2274 = vpop.permute.xlu0 %2273
      %2275 = vrot.lane.b32.xlu0 %v1532, 56
      %v2276 = vpop.permute.xlu0 %2275
      %2277 = vrot.lane.b32.xlu0 %v1535, 56
      %v2278 = vpop.permute.xlu0 %2277
      %2279 = vrot.lane.b32.xlu0 %v1537, 56
      %v2280 = vpop.permute.xlu0 %2279
      %2281 = vrot.lane.b32.xlu0 %v1540, 56
      %v2282 = vpop.permute.xlu0 %2281
      %2283 = vrot.lane.b32.xlu0 %v1542, 56
      %v2284 = vpop.permute.xlu0 %2283
      %2285 = vrot.lane.b32.xlu0 %v1545, 56
      %v2286 = vpop.permute.xlu0 %2285
      %2287 = vrot.lane.b32.xlu0 %v1547, 56
      %v2288 = vpop.permute.xlu0 %2287
      %2289 = vrot.lane.b32.xlu0 %v1550, 56
      %v2290 = vpop.permute.xlu0 %2289
      %2291 = vrot.lane.b32.xlu0 %v1552, 56
      %v2292 = vpop.permute.xlu0 %2291
      %2293 = vrot.lane.b32.xlu0 %v1555, 56
      %v2294 = vpop.permute.xlu0 %2293
      %2295 = vrot.lane.b32.xlu0 %v1557, 56
      %v2296 = vpop.permute.xlu0 %2295
      %2297 = vrot.lane.b32.xlu0 %v1560, 56
      %v2298 = vpop.permute.xlu0 %2297
      %2299 = vrot.lane.b32.xlu0 %v1562, 56
      %v2300 = vpop.permute.xlu0 %2299
      %2301 = vrot.lane.b32.xlu0 %v1565, 56
      %v2302 = vpop.permute.xlu0 %2301
      %2303 = vrot.lane.b32.xlu0 %v1567, 56
      %v2304 = vpop.permute.xlu0 %2303
      %2305 = vrot.lane.b32.xlu0 %v1570, 56
      %v2306 = vpop.permute.xlu0 %2305
      %2307 = vrot.lane.b32.xlu0 %v1572, 56
      %v2308 = vpop.permute.xlu0 %2307
      %2309 = vrot.lane.b32.xlu0 %v1575, 56
      %v2310 = vpop.permute.xlu0 %2309
      %2311 = vrot.lane.b32.xlu0 %v1577, 56
      %v2312 = vpop.permute.xlu0 %2311
      %2313 = vrot.lane.b32.xlu0 %v1580, 56
      %v2314 = vpop.permute.xlu0 %2313
      %2315 = vrot.lane.b32.xlu0 %v1582, 56
      %v2316 = vpop.permute.xlu0 %2315
      %2317 = vrot.lane.b32.xlu0 %v1957, 56
      %v2318 = vpop.permute.xlu0 %2317
      %2319 = vrot.lane.b32.xlu0 %v1959, 56
      %v2320 = vpop.permute.xlu0 %2319
      %2321 = vrot.lane.b32.xlu0 %v2258, 56
      %v2322 = vpop.permute.xlu0 %2321
      %2323 = vrot.lane.b32.xlu0 %v2260, 56
      %v2324 = vpop.permute.xlu0 %2323
      %v2357 = vrot.slane %v1451, 2
      %v2358 = vrot.slane %v1452, 2
      %v2359 = vsel %vm1679, %v2357, %v2358
      %v2360 = vrot.slane %v1453, 2
      %v2361 = vsel %vm1679, %v2358, %v2360
      %2362 = vrot.lane.b32.xlu0 %v1692, 64
      %v2363 = vpop.permute.xlu0 %2362
      %2364 = vrot.lane.b32.xlu0 %v1694, 64
      %v2365 = vpop.permute.xlu0 %2364
      %2366 = vrot.lane.b32.xlu0 %v1697, 64
      %v2367 = vpop.permute.xlu0 %2366
      %2368 = vrot.lane.b32.xlu0 %v1699, 64
      %v2369 = vpop.permute.xlu0 %2368
      %2370 = vrot.lane.b32.xlu0 %v1702, 64
      %v2371 = vpop.permute.xlu0 %2370
      %2372 = vrot.lane.b32.xlu0 %v1704, 64
      %v2373 = vpop.permute.xlu0 %2372
      %2374 = vrot.lane.b32.xlu0 %v1707, 64
      %v2375 = vpop.permute.xlu0 %2374
      %2376 = vrot.lane.b32.xlu0 %v1709, 64
      %v2377 = vpop.permute.xlu0 %2376
      %2378 = vrot.lane.b32.xlu0 %v1712, 64
      %v2379 = vpop.permute.xlu0 %2378
      %2380 = vrot.lane.b32.xlu0 %v1714, 64
      %v2381 = vpop.permute.xlu0 %2380
      %2382 = vrot.lane.b32.xlu0 %v1717, 64
      %v2383 = vpop.permute.xlu0 %2382
      %2384 = vrot.lane.b32.xlu0 %v1719, 64
      %v2385 = vpop.permute.xlu0 %2384
      %2386 = vrot.lane.b32.xlu0 %v1722, 64
      %v2387 = vpop.permute.xlu0 %2386
      %2388 = vrot.lane.b32.xlu0 %v1724, 64
      %v2389 = vpop.permute.xlu0 %2388
      %2390 = vrot.lane.b32.xlu0 %v1727, 64
      %v2391 = vpop.permute.xlu0 %2390
      %2392 = vrot.lane.b32.xlu0 %v1729, 64
      %v2393 = vpop.permute.xlu0 %2392
      %2394 = vrot.lane.b32.xlu0 %v1732, 64
      %v2395 = vpop.permute.xlu0 %2394
      %2396 = vrot.lane.b32.xlu0 %v1734, 64
      %v2397 = vpop.permute.xlu0 %2396
      %2398 = vrot.lane.b32.xlu0 %v1737, 64
      %v2399 = vpop.permute.xlu0 %2398
      %2400 = vrot.lane.b32.xlu0 %v1739, 64
      %v2401 = vpop.permute.xlu0 %2400
      %2402 = vrot.lane.b32.xlu0 %v1742, 64
      %v2403 = vpop.permute.xlu0 %2402
      %2404 = vrot.lane.b32.xlu0 %v1744, 64
      %v2405 = vpop.permute.xlu0 %2404
      %2406 = vrot.lane.b32.xlu0 %v1747, 64
      %v2407 = vpop.permute.xlu0 %2406
      %2408 = vrot.lane.b32.xlu0 %v1749, 64
      %v2409 = vpop.permute.xlu0 %2408
      %2410 = vrot.lane.b32.xlu0 %v1752, 64
      %v2411 = vpop.permute.xlu0 %2410
      %2412 = vrot.lane.b32.xlu0 %v1754, 64
      %v2413 = vpop.permute.xlu0 %2412
      %2414 = vrot.lane.b32.xlu0 %v1757, 64
      %v2415 = vpop.permute.xlu0 %2414
      %2416 = vrot.lane.b32.xlu0 %v1759, 64
      %v2417 = vpop.permute.xlu0 %2416
      %2418 = vrot.lane.b32.xlu0 %v2058, 64
      %v2419 = vpop.permute.xlu0 %2418
      %2420 = vrot.lane.b32.xlu0 %v2060, 64
      %v2421 = vpop.permute.xlu0 %2420
      %2422 = vrot.lane.b32.xlu0 %v2359, 64
      %v2423 = vpop.permute.xlu0 %2422
      %2424 = vrot.lane.b32.xlu0 %v2361, 64
      %v2425 = vpop.permute.xlu0 %2424
      %vm2458 = vcmask 64512
      %v2459 = vsel %vm2458, %v1400, %v1584
      %v2460 = vsel %vm2458, %v1401, %v1586
      %v2461 = vsel %vm2458, %v1403, %v1588
      %v2462 = vsel %vm2458, %v1404, %v1590
      %v2463 = vsel %vm2458, %v1406, %v1592
      %v2464 = vsel %vm2458, %v1407, %v1594
      %v2465 = vsel %vm2458, %v1409, %v1596
      %v2466 = vsel %vm2458, %v1410, %v1598
      %v2467 = vsel %vm2458, %v1412, %v1600
      %v2468 = vsel %vm2458, %v1413, %v1602
      %v2469 = vsel %vm2458, %v1415, %v1604
      %v2470 = vsel %vm2458, %v1416, %v1606
      %v2471 = vsel %vm2458, %v1418, %v1608
      %v2472 = vsel %vm2458, %v1419, %v1610
      %v2473 = vsel %vm2458, %v1421, %v1612
      %v2474 = vsel %vm2458, %v1422, %v1614
      %v2475 = vsel %vm2458, %v1424, %v1616
      %v2476 = vsel %vm2458, %v1425, %v1618
      %v2477 = vsel %vm2458, %v1427, %v1620
      %v2478 = vsel %vm2458, %v1428, %v1622
      %v2479 = vsel %vm2458, %v1430, %v1624
      %v2480 = vsel %vm2458, %v1431, %v1626
      %v2481 = vsel %vm2458, %v1433, %v1628
      %v2482 = vsel %vm2458, %v1434, %v1630
      %v2483 = vsel %vm2458, %v1436, %v1632
      %v2484 = vsel %vm2458, %v1437, %v1634
      %v2485 = vsel %vm2458, %v1439, %v1636
      %v2486 = vsel %vm2458, %v1440, %v1638
      %v2487 = vsel %vm2458, %v1442, %v1640
      %v2488 = vsel %vm2458, %v1443, %v1642
      %v2489 = vsel %vm2458, %v1445, %v1644
      %v2490 = vsel %vm2458, %v1446, %v1646
      %vm2491 = vcmask 130048
      %v2492 = vsel %vm2491, %v2459, %v1761
      %v2493 = vsel %vm2491, %v2460, %v1763
      %v2494 = vsel %vm2491, %v2461, %v1765
      %v2495 = vsel %vm2491, %v2462, %v1767
      %v2496 = vsel %vm2491, %v2463, %v1769
      %v2497 = vsel %vm2491, %v2464, %v1771
      %v2498 = vsel %vm2491, %v2465, %v1773
      %v2499 = vsel %vm2491, %v2466, %v1775
      %v2500 = vsel %vm2491, %v2467, %v1777
      %v2501 = vsel %vm2491, %v2468, %v1779
      %v2502 = vsel %vm2491, %v2469, %v1781
      %v2503 = vsel %vm2491, %v2470, %v1783
      %v2504 = vsel %vm2491, %v2471, %v1785
      %v2505 = vsel %vm2491, %v2472, %v1787
      %v2506 = vsel %vm2491, %v2473, %v1789
      %v2507 = vsel %vm2491, %v2474, %v1791
      %v2508 = vsel %vm2491, %v2475, %v1793
      %v2509 = vsel %vm2491, %v2476, %v1795
      %v2510 = vsel %vm2491, %v2477, %v1797
      %v2511 = vsel %vm2491, %v2478, %v1799
      %v2512 = vsel %vm2491, %v2479, %v1801
      %v2513 = vsel %vm2491, %v2480, %v1803
      %v2514 = vsel %vm2491, %v2481, %v1805
      %v2515 = vsel %vm2491, %v2482, %v1807
      %v2516 = vsel %vm2491, %v2483, %v1809
      %v2517 = vsel %vm2491, %v2484, %v1811
      %v2518 = vsel %vm2491, %v2485, %v1813
      %v2519 = vsel %vm2491, %v2486, %v1815
      %v2520 = vsel %vm2491, %v2487, %v1817
      %v2521 = vsel %vm2491, %v2488, %v1819
      %v2522 = vsel %vm2491, %v2489, %v1821
      %v2523 = vsel %vm2491, %v2490, %v1823
      %vm2524 = vcmask 195584
      %v2525 = vsel %vm2524, %v2492, %v1859
      %v2526 = vsel %vm2524, %v2493, %v1861
      %v2527 = vsel %vm2524, %v2494, %v1863
      %v2528 = vsel %vm2524, %v2495, %v1865
      %v2529 = vsel %vm2524, %v2496, %v1867
      %v2530 = vsel %vm2524, %v2497, %v1869
      %v2531 = vsel %vm2524, %v2498, %v1871
      %v2532 = vsel %vm2524, %v2499, %v1873
      %v2533 = vsel %vm2524, %v2500, %v1875
      %v2534 = vsel %vm2524, %v2501, %v1877
      %v2535 = vsel %vm2524, %v2502, %v1879
      %v2536 = vsel %vm2524, %v2503, %v1881
      %v2537 = vsel %vm2524, %v2504, %v1883
      %v2538 = vsel %vm2524, %v2505, %v1885
      %v2539 = vsel %vm2524, %v2506, %v1887
      %v2540 = vsel %vm2524, %v2507, %v1889
      %v2541 = vsel %vm2524, %v2508, %v1891
      %v2542 = vsel %vm2524, %v2509, %v1893
      %v2543 = vsel %vm2524, %v2510, %v1895
      %v2544 = vsel %vm2524, %v2511, %v1897
      %v2545 = vsel %vm2524, %v2512, %v1899
      %v2546 = vsel %vm2524, %v2513, %v1901
      %v2547 = vsel %vm2524, %v2514, %v1903
      %v2548 = vsel %vm2524, %v2515, %v1905
      %v2549 = vsel %vm2524, %v2516, %v1907
      %v2550 = vsel %vm2524, %v2517, %v1909
      %v2551 = vsel %vm2524, %v2518, %v1911
      %v2552 = vsel %vm2524, %v2519, %v1913
      %v2553 = vsel %vm2524, %v2520, %v1915
      %v2554 = vsel %vm2524, %v2521, %v1917
      %v2555 = vsel %vm2524, %v2522, %v1919
      %v2556 = vsel %vm2524, %v2523, %v1921
      %vm2557 = vcmask 261120
      %v2558 = vsel %vm2557, %v2525, %v1961
      %v2559 = vsel %vm2557, %v2526, %v1963
      %v2560 = vsel %vm2557, %v2527, %v1965
      %v2561 = vsel %vm2557, %v2528, %v1967
      %v2562 = vsel %vm2557, %v2529, %v1969
      %v2563 = vsel %vm2557, %v2530, %v1971
      %v2564 = vsel %vm2557, %v2531, %v1973
      %v2565 = vsel %vm2557, %v2532, %v1975
      %v2566 = vsel %vm2557, %v2533, %v1977
      %v2567 = vsel %vm2557, %v2534, %v1979
      %v2568 = vsel %vm2557, %v2535, %v1981
      %v2569 = vsel %vm2557, %v2536, %v1983
      %v2570 = vsel %vm2557, %v2537, %v1985
      %v2571 = vsel %vm2557, %v2538, %v1987
      %v2572 = vsel %vm2557, %v2539, %v1989
      %v2573 = vsel %vm2557, %v2540, %v1991
      %v2574 = vsel %vm2557, %v2541, %v1993
      %v2575 = vsel %vm2557, %v2542, %v1995
      %v2576 = vsel %vm2557, %v2543, %v1997
      %v2577 = vsel %vm2557, %v2544, %v1999
      %v2578 = vsel %vm2557, %v2545, %v2001
      %v2579 = vsel %vm2557, %v2546, %v2003
      %v2580 = vsel %vm2557, %v2547, %v2005
      %v2581 = vsel %vm2557, %v2548, %v2007
      %v2582 = vsel %vm2557, %v2549, %v2009
      %v2583 = vsel %vm2557, %v2550, %v2011
      %v2584 = vsel %vm2557, %v2551, %v2013
      %v2585 = vsel %vm2557, %v2552, %v2015
      %v2586 = vsel %vm2557, %v2553, %v2017
      %v2587 = vsel %vm2557, %v2554, %v2019
      %v2588 = vsel %vm2557, %v2555, %v2021
      %v2589 = vsel %vm2557, %v2556, %v2023
      %vm2590 = vcmask 326656
      %v2591 = vsel %vm2590, %v2558, %v2062
      %v2592 = vsel %vm2590, %v2559, %v2064
      %v2593 = vsel %vm2590, %v2560, %v2066
      %v2594 = vsel %vm2590, %v2561, %v2068
      %v2595 = vsel %vm2590, %v2562, %v2070
      %v2596 = vsel %vm2590, %v2563, %v2072
      %v2597 = vsel %vm2590, %v2564, %v2074
      %v2598 = vsel %vm2590, %v2565, %v2076
      %v2599 = vsel %vm2590, %v2566, %v2078
      %v2600 = vsel %vm2590, %v2567, %v2080
      %v2601 = vsel %vm2590, %v2568, %v2082
      %v2602 = vsel %vm2590, %v2569, %v2084
      %v2603 = vsel %vm2590, %v2570, %v2086
      %v2604 = vsel %vm2590, %v2571, %v2088
      %v2605 = vsel %vm2590, %v2572, %v2090
      %v2606 = vsel %vm2590, %v2573, %v2092
      %v2607 = vsel %vm2590, %v2574, %v2094
      %v2608 = vsel %vm2590, %v2575, %v2096
      %v2609 = vsel %vm2590, %v2576, %v2098
      %v2610 = vsel %vm2590, %v2577, %v2100
      %v2611 = vsel %vm2590, %v2578, %v2102
      %v2612 = vsel %vm2590, %v2579, %v2104
      %v2613 = vsel %vm2590, %v2580, %v2106
      %v2614 = vsel %vm2590, %v2581, %v2108
      %v2615 = vsel %vm2590, %v2582, %v2110
      %v2616 = vsel %vm2590, %v2583, %v2112
      %v2617 = vsel %vm2590, %v2584, %v2114
      %v2618 = vsel %vm2590, %v2585, %v2116
      %v2619 = vsel %vm2590, %v2586, %v2118
      %v2620 = vsel %vm2590, %v2587, %v2120
      %v2621 = vsel %vm2590, %v2588, %v2122
      %v2622 = vsel %vm2590, %v2589, %v2124
      %vm2623 = vcmask 392192
      %v2624 = vsel %vm2623, %v2591, %v2160
      %v2625 = vsel %vm2623, %v2592, %v2162
      %v2626 = vsel %vm2623, %v2593, %v2164
      %v2627 = vsel %vm2623, %v2594, %v2166
      %v2628 = vsel %vm2623, %v2595, %v2168
      %v2629 = vsel %vm2623, %v2596, %v2170
      %v2630 = vsel %vm2623, %v2597, %v2172
      %v2631 = vsel %vm2623, %v2598, %v2174
      %v2632 = vsel %vm2623, %v2599, %v2176
      %v2633 = vsel %vm2623, %v2600, %v2178
      %v2634 = vsel %vm2623, %v2601, %v2180
      %v2635 = vsel %vm2623, %v2602, %v2182
      %v2636 = vsel %vm2623, %v2603, %v2184
      %v2637 = vsel %vm2623, %v2604, %v2186
      %v2638 = vsel %vm2623, %v2605, %v2188
      %v2639 = vsel %vm2623, %v2606, %v2190
      %v2640 = vsel %vm2623, %v2607, %v2192
      %v2641 = vsel %vm2623, %v2608, %v2194
      %v2642 = vsel %vm2623, %v2609, %v2196
      %v2643 = vsel %vm2623, %v2610, %v2198
      %v2644 = vsel %vm2623, %v2611, %v2200
      %v2645 = vsel %vm2623, %v2612, %v2202
      %v2646 = vsel %vm2623, %v2613, %v2204
      %v2647 = vsel %vm2623, %v2614, %v2206
      %v2648 = vsel %vm2623, %v2615, %v2208
      %v2649 = vsel %vm2623, %v2616, %v2210
      %v2650 = vsel %vm2623, %v2617, %v2212
      %v2651 = vsel %vm2623, %v2618, %v2214
      %v2652 = vsel %vm2623, %v2619, %v2216
      %v2653 = vsel %vm2623, %v2620, %v2218
      %v2654 = vsel %vm2623, %v2621, %v2220
      %v2655 = vsel %vm2623, %v2622, %v2222
      %vm2656 = vcmask 457728
      %v2657 = vsel %vm2656, %v2624, %v2262
      %v2658 = vsel %vm2656, %v2625, %v2264
      %v2659 = vsel %vm2656, %v2626, %v2266
      %v2660 = vsel %vm2656, %v2627, %v2268
      %v2661 = vsel %vm2656, %v2628, %v2270
      %v2662 = vsel %vm2656, %v2629, %v2272
      %v2663 = vsel %vm2656, %v2630, %v2274
      %v2664 = vsel %vm2656, %v2631, %v2276
      %v2665 = vsel %vm2656, %v2632, %v2278
      %v2666 = vsel %vm2656, %v2633, %v2280
      %v2667 = vsel %vm2656, %v2634, %v2282
      %v2668 = vsel %vm2656, %v2635, %v2284
      %v2669 = vsel %vm2656, %v2636, %v2286
      %v2670 = vsel %vm2656, %v2637, %v2288
      %v2671 = vsel %vm2656, %v2638, %v2290
      %v2672 = vsel %vm2656, %v2639, %v2292
      %v2673 = vsel %vm2656, %v2640, %v2294
      %v2674 = vsel %vm2656, %v2641, %v2296
      %v2675 = vsel %vm2656, %v2642, %v2298
      %v2676 = vsel %vm2656, %v2643, %v2300
      %v2677 = vsel %vm2656, %v2644, %v2302
      %v2678 = vsel %vm2656, %v2645, %v2304
      %v2679 = vsel %vm2656, %v2646, %v2306
      %v2680 = vsel %vm2656, %v2647, %v2308
      %v2681 = vsel %vm2656, %v2648, %v2310
      %v2682 = vsel %vm2656, %v2649, %v2312
      %v2683 = vsel %vm2656, %v2650, %v2314
      %v2684 = vsel %vm2656, %v2651, %v2316
      %v2685 = vsel %vm2656, %v2652, %v2318
      %v2686 = vsel %vm2656, %v2653, %v2320
      %v2687 = vsel %vm2656, %v2654, %v2322
      %v2688 = vsel %vm2656, %v2655, %v2324
      %vm2689 = vcmask 523264
      %v2690 = vsel %vm2689, %v2657, %v2363
      %v2691 = vsel %vm2689, %v2658, %v2365
      %v2692 = vsel %vm2689, %v2659, %v2367
      %v2693 = vsel %vm2689, %v2660, %v2369
      %v2694 = vsel %vm2689, %v2661, %v2371
      %v2695 = vsel %vm2689, %v2662, %v2373
      %v2696 = vsel %vm2689, %v2663, %v2375
      %v2697 = vsel %vm2689, %v2664, %v2377
      %v2698 = vsel %vm2689, %v2665, %v2379
      %v2699 = vsel %vm2689, %v2666, %v2381
      %v2700 = vsel %vm2689, %v2667, %v2383
      %v2701 = vsel %vm2689, %v2668, %v2385
      %v2702 = vsel %vm2689, %v2669, %v2387
      %v2703 = vsel %vm2689, %v2670, %v2389
      %v2704 = vsel %vm2689, %v2671, %v2391
      %v2705 = vsel %vm2689, %v2672, %v2393
      %v2706 = vsel %vm2689, %v2673, %v2395
      %v2707 = vsel %vm2689, %v2674, %v2397
      %v2708 = vsel %vm2689, %v2675, %v2399
      %v2709 = vsel %vm2689, %v2676, %v2401
      %v2710 = vsel %vm2689, %v2677, %v2403
      %v2711 = vsel %vm2689, %v2678, %v2405
      %v2712 = vsel %vm2689, %v2679, %v2407
      %v2713 = vsel %vm2689, %v2680, %v2409
      %v2714 = vsel %vm2689, %v2681, %v2411
      %v2715 = vsel %vm2689, %v2682, %v2413
      %v2716 = vsel %vm2689, %v2683, %v2415
      %v2717 = vsel %vm2689, %v2684, %v2417
      %v2718 = vsel %vm2689, %v2685, %v2419
      %v2719 = vsel %vm2689, %v2686, %v2421
      %v2720 = vsel %vm2689, %v2687, %v2423
      %v2721 = vsel %vm2689, %v2688, %v2425
      %v2722 = vld [vmem:[%s3] sm:$0xff]
      %v2723 = vld [vmem:[%s3 + $0x8] sm:$0xff]
      %v2724 = vld [vmem:[%s3 + $0x10] sm:$0xff]
      %v2725 = vld [vmem:[%s3 + $0x18] sm:$0xff]
      %v2726 = vld [vmem:[%s3 + $0x20] sm:$0xff]
      %v2727 = vld [vmem:[%s3 + $0x28] sm:$0xff]
      %v2728 = vld [vmem:[%s3 + $0x30] sm:$0xff]
      %v2729 = vld [vmem:[%s3 + $0x38] sm:$0xff]
      %v2730 = vld [vmem:[%s3 + $0x40] sm:$0xff]
      %vm2731 = vcmask 588800
      %v2733 = vsel %vm2731, %v2690, 0
      %v2736 = vsel %vm2731, %v2691, 0
      %v2739 = vsel %vm2731, %v2692, 0
      %v2742 = vsel %vm2731, %v2693, 0
      %v2745 = vsel %vm2731, %v2694, 0
      %v2748 = vsel %vm2731, %v2695, 0
      %v2751 = vsel %vm2731, %v2696, 0
      %v2754 = vsel %vm2731, %v2697, 0
      %v2757 = vsel %vm2731, %v2698, 0
      %v2760 = vsel %vm2731, %v2699, 0
      %v2763 = vsel %vm2731, %v2700, 0
      %v2766 = vsel %vm2731, %v2701, 0
      %v2769 = vsel %vm2731, %v2702, 0
      %v2772 = vsel %vm2731, %v2703, 0
      %v2775 = vsel %vm2731, %v2704, 0
      %v2778 = vsel %vm2731, %v2705, 0
      %v2781 = vsel %vm2731, %v2706, 0
      %v2784 = vsel %vm2731, %v2707, 0
      %v2787 = vsel %vm2731, %v2708, 0
      %v2790 = vsel %vm2731, %v2709, 0
      %v2793 = vsel %vm2731, %v2710, 0
      %v2796 = vsel %vm2731, %v2711, 0
      %v2799 = vsel %vm2731, %v2712, 0
      %v2802 = vsel %vm2731, %v2713, 0
      %v2805 = vsel %vm2731, %v2714, 0
      %v2808 = vsel %vm2731, %v2715, 0
      %v2811 = vsel %vm2731, %v2716, 0
      %v2814 = vsel %vm2731, %v2717, 0
      %v2817 = vsel %vm2731, %v2718, 0
      %v2820 = vsel %vm2731, %v2719, 0
      %v2823 = vsel %vm2731, %v2720, 0
      %v2826 = vsel %vm2731, %v2721, 0
      %2828 = vmatpush.msra.mxu0 0.0
      %2829 = vmatpush.msra.mxu0 0.0
      %2830 = vmatpush.msra.mxu0 0.0
      %2831 = vmatpush.msra.mxu0 0.0
      %2832 = vmatpush.msra.mxu0 0.0
      %2833 = vmatpush.msra.mxu0 0.0
      %2834 = vmatpush.msra.mxu0 0.0
      %2835 = vmatpush.msra.mxu0 %v2730
      %2836 = vmatpush.msra.mxu0 %v2729
      %2837 = vmatpush.msra.mxu0 %v2728
      %2838 = vmatpush.msra.mxu0 %v2727
      %2839 = vmatpush.msra.mxu0 %v2726
      %2840 = vmatpush.msra.mxu0 %v2725
      %2841 = vmatpush.msra.mxu0 %v2724
      %2842 = vmatpush.msra.mxu0 %v2723
      %2843 = vmatpush.msra.mxu0 %v2722
      %2844 = vmatmul.f32.gmra.mxu0 %v2733
      %v2845 = vpop.f32.mrf.mxu0
      %v2846 = vadd.f32 0.0, %v2845
      %2847 = vmatmul.f32.gmra.mxu0 %v2736
      %v2848 = vpop.f32.mrf.mxu0
      %v2849 = vadd.f32 0.0, %v2848
      %2850 = vmatmul.f32.gmra.mxu0 %v2739
      %v2851 = vpop.f32.mrf.mxu0
      %v2852 = vadd.f32 0.0, %v2851
      %2853 = vmatmul.f32.gmra.mxu0 %v2742
      %v2854 = vpop.f32.mrf.mxu0
      %v2855 = vadd.f32 0.0, %v2854
      %2856 = vmatmul.f32.gmra.mxu0 %v2745
      %v2857 = vpop.f32.mrf.mxu0
      %v2858 = vadd.f32 0.0, %v2857
      %2859 = vmatmul.f32.gmra.mxu0 %v2748
      %v2860 = vpop.f32.mrf.mxu0
      %v2861 = vadd.f32 0.0, %v2860
      %2862 = vmatmul.f32.gmra.mxu0 %v2751
      %v2863 = vpop.f32.mrf.mxu0
      %v2864 = vadd.f32 0.0, %v2863
      %2865 = vmatmul.f32.gmra.mxu0 %v2754
      %v2866 = vpop.f32.mrf.mxu0
      %v2867 = vadd.f32 0.0, %v2866
      %2868 = vmatmul.f32.gmra.mxu0 %v2757
      %v2869 = vpop.f32.mrf.mxu0
      %v2870 = vadd.f32 0.0, %v2869
      %2871 = vmatmul.f32.gmra.mxu0 %v2760
      %v2872 = vpop.f32.mrf.mxu0
      %v2873 = vadd.f32 0.0, %v2872
      %2874 = vmatmul.f32.gmra.mxu0 %v2763
      %v2875 = vpop.f32.mrf.mxu0
      %v2876 = vadd.f32 0.0, %v2875
      %2877 = vmatmul.f32.gmra.mxu0 %v2766
      %v2878 = vpop.f32.mrf.mxu0
      %v2879 = vadd.f32 0.0, %v2878
      %2880 = vmatmul.f32.gmra.mxu0 %v2769
      %v2881 = vpop.f32.mrf.mxu0
      %v2882 = vadd.f32 0.0, %v2881
      %2883 = vmatmul.f32.gmra.mxu0 %v2772
      %v2884 = vpop.f32.mrf.mxu0
      %v2885 = vadd.f32 0.0, %v2884
      %2886 = vmatmul.f32.gmra.mxu0 %v2775
      %v2887 = vpop.f32.mrf.mxu0
      %v2888 = vadd.f32 0.0, %v2887
      %2889 = vmatmul.f32.gmra.mxu0 %v2778
      %v2890 = vpop.f32.mrf.mxu0
      %v2891 = vadd.f32 0.0, %v2890
      %2892 = vmatmul.f32.gmra.mxu0 %v2781
      %v2893 = vpop.f32.mrf.mxu0
      %v2894 = vadd.f32 0.0, %v2893
      %2895 = vmatmul.f32.gmra.mxu0 %v2784
      %v2896 = vpop.f32.mrf.mxu0
      %v2897 = vadd.f32 0.0, %v2896
      %2898 = vmatmul.f32.gmra.mxu0 %v2787
      %v2899 = vpop.f32.mrf.mxu0
      %v2900 = vadd.f32 0.0, %v2899
      %2901 = vmatmul.f32.gmra.mxu0 %v2790
      %v2902 = vpop.f32.mrf.mxu0
      %v2903 = vadd.f32 0.0, %v2902
      %2904 = vmatmul.f32.gmra.mxu0 %v2793
      %v2905 = vpop.f32.mrf.mxu0
      %v2906 = vadd.f32 0.0, %v2905
      %2907 = vmatmul.f32.gmra.mxu0 %v2796
      %v2908 = vpop.f32.mrf.mxu0
      %v2909 = vadd.f32 0.0, %v2908
      %2910 = vmatmul.f32.gmra.mxu0 %v2799
      %v2911 = vpop.f32.mrf.mxu0
      %v2912 = vadd.f32 0.0, %v2911
      %2913 = vmatmul.f32.gmra.mxu0 %v2802
      %v2914 = vpop.f32.mrf.mxu0
      %v2915 = vadd.f32 0.0, %v2914
      %2916 = vmatmul.f32.gmra.mxu0 %v2805
      %v2917 = vpop.f32.mrf.mxu0
      %v2918 = vadd.f32 0.0, %v2917
      %2919 = vmatmul.f32.gmra.mxu0 %v2808
      %v2920 = vpop.f32.mrf.mxu0
      %v2921 = vadd.f32 0.0, %v2920
      %2922 = vmatmul.f32.gmra.mxu0 %v2811
      %v2923 = vpop.f32.mrf.mxu0
      %v2924 = vadd.f32 0.0, %v2923
      %2925 = vmatmul.f32.gmra.mxu0 %v2814
      %v2926 = vpop.f32.mrf.mxu0
      %v2927 = vadd.f32 0.0, %v2926
      %2928 = vmatmul.f32.gmra.mxu0 %v2817
      %v2929 = vpop.f32.mrf.mxu0
      %v2930 = vadd.f32 0.0, %v2929
      %2931 = vmatmul.f32.gmra.mxu0 %v2820
      %v2932 = vpop.f32.mrf.mxu0
      %v2933 = vadd.f32 0.0, %v2932
      %2934 = vmatmul.f32.gmra.mxu0 %v2823
      %v2935 = vpop.f32.mrf.mxu0
      %v2936 = vadd.f32 0.0, %v2935
      %2937 = vmatmul.f32.gmra.mxu0 %v2826
      %v2938 = vpop.f32.mrf.mxu0
      %v2939 = vadd.f32 0.0, %v2938
      %2940 = vdwg.mxu0
      %2941 = vst.msk [vmem:[%s231] sm:$0xff] %vm2458, %v2846
      %2942 = vst.msk [vmem:[%s231 + $0x8] sm:$0xff] %vm2458, %v2849
      %2943 = vst.msk [vmem:[%s231 + $0x10] sm:$0xff] %vm2458, %v2852
      %2944 = vst.msk [vmem:[%s231 + $0x18] sm:$0xff] %vm2458, %v2855
      %2945 = vst.msk [vmem:[%s231 + $0x20] sm:$0xff] %vm2458, %v2858
      %2946 = vst.msk [vmem:[%s231 + $0x28] sm:$0xff] %vm2458, %v2861
      %2947 = vst.msk [vmem:[%s231 + $0x30] sm:$0xff] %vm2458, %v2864
      %2948 = vst.msk [vmem:[%s231 + $0x38] sm:$0xff] %vm2458, %v2867
      %2949 = vst.msk [vmem:[%s231 + $0x40] sm:$0xff] %vm2458, %v2870
      %2950 = vst.msk [vmem:[%s231 + $0x48] sm:$0xff] %vm2458, %v2873
      %2951 = vst.msk [vmem:[%s231 + $0x50] sm:$0xff] %vm2458, %v2876
      %2952 = vst.msk [vmem:[%s231 + $0x58] sm:$0xff] %vm2458, %v2879
      %2953 = vst.msk [vmem:[%s231 + $0x60] sm:$0xff] %vm2458, %v2882
      %2954 = vst.msk [vmem:[%s231 + $0x68] sm:$0xff] %vm2458, %v2885
      %2955 = vst.msk [vmem:[%s231 + $0x70] sm:$0xff] %vm2458, %v2888
      %2956 = vst.msk [vmem:[%s231 + $0x78] sm:$0xff] %vm2458, %v2891
      %2957 = vst.msk [vmem:[%s231 + $0x80] sm:$0xff] %vm2458, %v2894
      %2958 = vst.msk [vmem:[%s231 + $0x88] sm:$0xff] %vm2458, %v2897
      %2959 = vst.msk [vmem:[%s231 + $0x90] sm:$0xff] %vm2458, %v2900
      %2960 = vst.msk [vmem:[%s231 + $0x98] sm:$0xff] %vm2458, %v2903
      %2961 = vst.msk [vmem:[%s231 + $0xa0] sm:$0xff] %vm2458, %v2906
      %2962 = vst.msk [vmem:[%s231 + $0xa8] sm:$0xff] %vm2458, %v2909
      %2963 = vst.msk [vmem:[%s231 + $0xb0] sm:$0xff] %vm2458, %v2912
      %2964 = vst.msk [vmem:[%s231 + $0xb8] sm:$0xff] %vm2458, %v2915
      %2965 = vst.msk [vmem:[%s231 + $0xc0] sm:$0xff] %vm2458, %v2918
      %2966 = vst.msk [vmem:[%s231 + $0xc8] sm:$0xff] %vm2458, %v2921
      %2967 = vst.msk [vmem:[%s231 + $0xd0] sm:$0xff] %vm2458, %v2924
      %2968 = vst.msk [vmem:[%s231 + $0xd8] sm:$0xff] %vm2458, %v2927
      %2969 = vst.msk [vmem:[%s231 + $0xe0] sm:$0xff] %vm2458, %v2930
      %2970 = vst.msk [vmem:[%s231 + $0xe8] sm:$0xff] %vm2458, %v2933
      %2971 = vst.msk [vmem:[%s231 + $0xf0] sm:$0xff] %vm2458, %v2936
      %2972 = vst.msk [vmem:[%s231 + $0xf8] sm:$0xff] %vm2458, %v2939
      %v2973 = vsel %vm2458, %v2846, 0.0
      %v2974 = vsel %vm2458, %v2849, 0.0
      %v2975 = vadd.f32 %v2973, %v2974
      %v2976 = vsel %vm2458, %v2852, 0.0
      %v2977 = vadd.f32 %v2975, %v2976
      %v2978 = vsel %vm2458, %v2855, 0.0
      %v2979 = vadd.f32 %v2977, %v2978
      %v2980 = vsel %vm2458, %v2858, 0.0
      %v2981 = vadd.f32 %v2979, %v2980
      %v2982 = vsel %vm2458, %v2861, 0.0
      %v2983 = vadd.f32 %v2981, %v2982
      %v2984 = vsel %vm2458, %v2864, 0.0
      %v2985 = vadd.f32 %v2983, %v2984
      %v2986 = vsel %vm2458, %v2867, 0.0
      %v2987 = vadd.f32 %v2985, %v2986
      %v2988 = vsel %vm2458, %v2870, 0.0
      %v2989 = vadd.f32 %v2987, %v2988
      %v2990 = vsel %vm2458, %v2873, 0.0
      %v2991 = vadd.f32 %v2989, %v2990
      %v2992 = vsel %vm2458, %v2876, 0.0
      %v2993 = vadd.f32 %v2991, %v2992
      %v2994 = vsel %vm2458, %v2879, 0.0
      %v2995 = vadd.f32 %v2993, %v2994
      %v2996 = vsel %vm2458, %v2882, 0.0
      %v2997 = vadd.f32 %v2995, %v2996
      %v2998 = vsel %vm2458, %v2885, 0.0
      %v2999 = vadd.f32 %v2997, %v2998
      %v3000 = vsel %vm2458, %v2888, 0.0
      %v3001 = vadd.f32 %v2999, %v3000
      %v3002 = vsel %vm2458, %v2891, 0.0
      %v3003 = vadd.f32 %v3001, %v3002
      %v3004 = vsel %vm2458, %v2894, 0.0
      %v3005 = vadd.f32 %v3003, %v3004
      %v3006 = vsel %vm2458, %v2897, 0.0
      %v3007 = vadd.f32 %v3005, %v3006
      %v3008 = vsel %vm2458, %v2900, 0.0
      %v3009 = vadd.f32 %v3007, %v3008
      %v3010 = vsel %vm2458, %v2903, 0.0
      %v3011 = vadd.f32 %v3009, %v3010
      %v3012 = vsel %vm2458, %v2906, 0.0
      %v3013 = vadd.f32 %v3011, %v3012
      %v3014 = vsel %vm2458, %v2909, 0.0
      %v3015 = vadd.f32 %v3013, %v3014
      %v3016 = vsel %vm2458, %v2912, 0.0
      %v3017 = vadd.f32 %v3015, %v3016
      %v3018 = vsel %vm2458, %v2915, 0.0
      %v3019 = vadd.f32 %v3017, %v3018
      %v3020 = vsel %vm2458, %v2918, 0.0
      %v3021 = vadd.f32 %v3019, %v3020
      %v3022 = vsel %vm2458, %v2921, 0.0
      %v3023 = vadd.f32 %v3021, %v3022
      %v3024 = vsel %vm2458, %v2924, 0.0
      %v3025 = vadd.f32 %v3023, %v3024
      %v3026 = vsel %vm2458, %v2927, 0.0
      %v3027 = vadd.f32 %v3025, %v3026
      %v3028 = vsel %vm2458, %v2930, 0.0
      %v3029 = vadd.f32 %v3027, %v3028
      %v3030 = vsel %vm2458, %v2933, 0.0
      %v3031 = vadd.f32 %v3029, %v3030
      %v3032 = vsel %vm2458, %v2936, 0.0
      %v3033 = vadd.f32 %v3031, %v3032
      %v3034 = vsel %vm2458, %v2939, 0.0
      %v3035 = vadd.f32 %v3033, %v3034
      %v3036 = vrot.slane %v3035, 4
      %v3037 = vadd.f32 %v3035, %v3036
      %v3038 = vrot.slane %v3037, 2
      %v3039 = vadd.f32 %v3037, %v3038
      %v3040 = vrot.slane %v3039, 1
      %v3041 = vadd.f32 %v3039, %v3040
      %v3042 = vmul.f32 %v2846, %v2846
      %v3043 = vmul.f32 %v2849, %v2849
      %v3044 = vmul.f32 %v2852, %v2852
      %v3045 = vmul.f32 %v2855, %v2855
      %v3046 = vmul.f32 %v2858, %v2858
      %v3047 = vmul.f32 %v2861, %v2861
      %v3048 = vmul.f32 %v2864, %v2864
      %v3049 = vmul.f32 %v2867, %v2867
      %v3050 = vmul.f32 %v2870, %v2870
      %v3051 = vmul.f32 %v2873, %v2873
      %v3052 = vmul.f32 %v2876, %v2876
      %v3053 = vmul.f32 %v2879, %v2879
      %v3054 = vmul.f32 %v2882, %v2882
      %v3055 = vmul.f32 %v2885, %v2885
      %v3056 = vmul.f32 %v2888, %v2888
      %v3057 = vmul.f32 %v2891, %v2891
      %v3058 = vmul.f32 %v2894, %v2894
      %v3059 = vmul.f32 %v2897, %v2897
      %v3060 = vmul.f32 %v2900, %v2900
      %v3061 = vmul.f32 %v2903, %v2903
      %v3062 = vmul.f32 %v2906, %v2906
      %v3063 = vmul.f32 %v2909, %v2909
      %v3064 = vmul.f32 %v2912, %v2912
      %v3065 = vmul.f32 %v2915, %v2915
      %v3066 = vmul.f32 %v2918, %v2918
      %v3067 = vmul.f32 %v2921, %v2921
      %v3068 = vmul.f32 %v2924, %v2924
      %v3069 = vmul.f32 %v2927, %v2927
      %v3070 = vmul.f32 %v2930, %v2930
      %v3071 = vmul.f32 %v2933, %v2933
      %v3072 = vmul.f32 %v2936, %v2936
      %v3073 = vmul.f32 %v2939, %v2939
      %v3074 = vsel %vm2458, %v3042, 0.0
      %v3075 = vsel %vm2458, %v3043, 0.0
      %v3076 = vadd.f32 %v3074, %v3075
      %v3077 = vsel %vm2458, %v3044, 0.0
      %v3078 = vadd.f32 %v3076, %v3077
      %v3079 = vsel %vm2458, %v3045, 0.0
      %v3080 = vadd.f32 %v3078, %v3079
      %v3081 = vsel %vm2458, %v3046, 0.0
      %v3082 = vadd.f32 %v3080, %v3081
      %v3083 = vsel %vm2458, %v3047, 0.0
      %v3084 = vadd.f32 %v3082, %v3083
      %v3085 = vsel %vm2458, %v3048, 0.0
      %v3086 = vadd.f32 %v3084, %v3085
      %v3087 = vsel %vm2458, %v3049, 0.0
      %v3088 = vadd.f32 %v3086, %v3087
      %v3089 = vsel %vm2458, %v3050, 0.0
      %v3090 = vadd.f32 %v3088, %v3089
      %v3091 = vsel %vm2458, %v3051, 0.0
      %v3092 = vadd.f32 %v3090, %v3091
      %v3093 = vsel %vm2458, %v3052, 0.0
      %v3094 = vadd.f32 %v3092, %v3093
      %v3095 = vsel %vm2458, %v3053, 0.0
      %v3096 = vadd.f32 %v3094, %v3095
      %v3097 = vsel %vm2458, %v3054, 0.0
      %v3098 = vadd.f32 %v3096, %v3097
      %v3099 = vsel %vm2458, %v3055, 0.0
      %v3100 = vadd.f32 %v3098, %v3099
      %v3101 = vsel %vm2458, %v3056, 0.0
      %v3102 = vadd.f32 %v3100, %v3101
      %v3103 = vsel %vm2458, %v3057, 0.0
      %v3104 = vadd.f32 %v3102, %v3103
      %v3105 = vsel %vm2458, %v3058, 0.0
      %v3106 = vadd.f32 %v3104, %v3105
      %v3107 = vsel %vm2458, %v3059, 0.0
      %v3108 = vadd.f32 %v3106, %v3107
      %v3109 = vsel %vm2458, %v3060, 0.0
      %v3110 = vadd.f32 %v3108, %v3109
      %v3111 = vsel %vm2458, %v3061, 0.0
      %v3112 = vadd.f32 %v3110, %v3111
      %v3113 = vsel %vm2458, %v3062, 0.0
      %v3114 = vadd.f32 %v3112, %v3113
      %v3115 = vsel %vm2458, %v3063, 0.0
      %v3116 = vadd.f32 %v3114, %v3115
      %v3117 = vsel %vm2458, %v3064, 0.0
      %v3118 = vadd.f32 %v3116, %v3117
      %v3119 = vsel %vm2458, %v3065, 0.0
      %v3120 = vadd.f32 %v3118, %v3119
      %v3121 = vsel %vm2458, %v3066, 0.0
      %v3122 = vadd.f32 %v3120, %v3121
      %v3123 = vsel %vm2458, %v3067, 0.0
      %v3124 = vadd.f32 %v3122, %v3123
      %v3125 = vsel %vm2458, %v3068, 0.0
      %v3126 = vadd.f32 %v3124, %v3125
      %v3127 = vsel %vm2458, %v3069, 0.0
      %v3128 = vadd.f32 %v3126, %v3127
      %v3129 = vsel %vm2458, %v3070, 0.0
      %v3130 = vadd.f32 %v3128, %v3129
      %v3131 = vsel %vm2458, %v3071, 0.0
      %v3132 = vadd.f32 %v3130, %v3131
      %v3133 = vsel %vm2458, %v3072, 0.0
      %v3134 = vadd.f32 %v3132, %v3133
      %v3135 = vsel %vm2458, %v3073, 0.0
      %v3136 = vadd.f32 %v3134, %v3135
      %v3137 = vrot.slane %v3136, 4
      %v3138 = vadd.f32 %v3136, %v3137
      %v3139 = vrot.slane %v3138, 2
      %v3140 = vadd.f32 %v3138, %v3139
      %v3141 = vrot.slane %v3140, 1
      %v3142 = vadd.f32 %v3140, %v3141
      %vm3143 = vcmask 1040384
      %v3144 = vsel %vm3143, %v3041, %v3142
      %vm3145 = vcmask 58368
      %3146 = vst.msk [vmem:[%s235] sm:$0x3] %vm3145, %v3144
      %p3147 = scmp.lt.s32.totalorder %s17, 1
      %s3148 = scalar_select %p3147, %s17, 1
      %s3149 = smul.addr %s3148, 32
      %s3150 = smul.addr %s3149, 8
      %s3151 = scalar_lea.vmem %s4, %s3150
      %p3152 = scmp.lt.s32.totalorder %s17, 1
      %s3153 = scalar_select %p3152, %s17, 1
      %s3154 = smul.addr %s3153, 2
      %s3155 = scalar_lea.vmem %s5, %s3154
      // Predicated region
      $region37: #{double_conv.4} parent=35 // pred_check
        %p3156 = pneg %p124
      $region38: #{double_conv.4} parent=35 // pred_check_branch
        %3158 = sbr.rel (%p3156) target = $region40
      $region39: #{double_conv.4} parent=35 // pred_region
        _
      $region40: #{double_conv.4} parent=35 // pred_fallthru
        _
      // Predicated region
      $region41: #{double_conv.4} parent=35 // pred_check
        %p3159 = pneg %p150
      $region42: #{double_conv.4} parent=35 // pred_check_branch
        %3161 = sbr.rel (%p3159) target = $region44
      $region43: #{double_conv.4} parent=35 // pred_region
        _
      $region44: #{double_conv.4} parent=35 // pred_fallthru
        _
    $region36: #{double_conv.4} parent=5 // pred_fallthru
      _
    %p3162 = scmp.le.s32.totalorder 2, %s12
    // Predicated region
    $region45: #{double_conv.4} parent=5 // pred_check
      %p3163 = pneg %p3162
    $region46: #{double_conv.4} parent=5 // pred_check_branch
      %3165 = sbr.rel (%p3163) target = $region48
    $region47: #{double_conv.4} parent=5 // pred_region
      %s3166 = ssub.s32 %s12, 2
      // Predicated region
      $region49: #{double_conv.4} parent=47 // pred_check
        %p3167 = pneg %p130
      $region50: #{double_conv.4} parent=47 // pred_check_branch
        %3169 = sbr.rel (%p3167) target = $region52
      $region51: #{double_conv.4} parent=47 // pred_region
        %p3170 = scmp.lt.s32.totalorder %s18, 1
        %s3171 = scalar_select %p3170, %s18, 1
        %s3172 = smul.addr %s3171, 32
        %s3173 = smul.addr %s3172, 8
        %s3174 = scalar_lea.vmem %s4, %s3173
      $region52: #{double_conv.4} parent=47 // pred_fallthru
        _
      // Predicated region
      $region53: #{double_conv.4} parent=47 // pred_check
        %p3175 = pneg %p156
      $region54: #{double_conv.4} parent=47 // pred_check_branch
        %3177 = sbr.rel (%p3175) target = $region56
      $region55: #{double_conv.4} parent=47 // pred_region
        %p3178 = scmp.lt.s32.totalorder %s18, 1
        %s3179 = scalar_select %p3178, %s18, 1
        %s3180 = smul.addr %s3179, 2
        %s3181 = scalar_lea.vmem %s5, %s3180
      $region56: #{double_conv.4} parent=47 // pred_fallthru
        _
    $region48: #{double_conv.4} parent=5 // pred_fallthru
      _
  $region6: #{double_conv.4} parent=0 // loop_footer
    %s16 = sadd.s32 1, %s12
  $region7: #{double_conv.4} parent=0 // loop_footer_branch
    %11 = sbr.rel target = $region3
  $region8: #{double_conv.4} parent=0 // loop_exit
    _

</llo_original>
